<compile_context>
chip_gen: v7x
topology: tpu7x:2x2x1
jax: 0.10.0
libtpu: 0.0.40
codegen_flags: <defaults>
</compile_context>

<pallas_src>
import numpy as np

import jax
import jax.numpy as jnp
from jax.experimental import pallas as pl
from jax.experimental.pallas import tpu as pltpu

NEG_SLOPE = 0.01                                  # nn.LeakyReLU() default
BN_EPS = 1e-5                                     # nn.BatchNorm2d default
BN_SCALE = 1.0 / float(np.sqrt(1.0 + BN_EPS))     # inference BN with default stats
VMEM_LIMIT_BYTES = 32 * 1024 * 1024               # explicit scoped-VMEM cap (v5e/v6e/v7x safe)


# -----------------------------------------------------------------------------
# Fused Pallas kernel
# -----------------------------------------------------------------------------
def _leaky(y):
    return jnp.where(y >= 0.0, y, NEG_SLOPE * y)


def _down_conv_block(x, g_ref, w_ref, s_ref):
    """Conv2d(k=3,s=2,p=1) + folded BN + LeakyReLU on a (P_in, Ci) bf16 activation matrix.

    g_ref : (9*P_out, P_in)  constant 0/1 tap-gather matrix (tap-major im2col).
    w_ref : (9*Ci, Co)       BN-folded conv weights (hwio-flattened, tap-major).
    s_ref : (1, Co)          BN-folded conv bias.
    """
    ci = x.shape[1]
    p_out = g_ref.shape[0] // 9
    co = w_ref.shape[1]
    # Exact shifted-window gather via MXU (at most one 1.0 per row -> bf16-exact copy).
    z = jnp.dot(g_ref[...], x, preferred_element_type=jnp.float32).astype(jnp.bfloat16)
    acc = jnp.zeros((p_out, co), jnp.float32)
    for t in range(9):                                             # unrolled: 9 tap GEMMs
        acc += jnp.dot(z[t * p_out:(t + 1) * p_out, :],
                       w_ref[t * ci:(t + 1) * ci, :],
                       preferred_element_type=jnp.float32)
    return _leaky(acc + s_ref[...]).astype(jnp.bfloat16)


def _cnn_d_fused_kernel(xcol1_ref, mask_ref,
                        w1_ref, s1_ref,
                        g2_ref, w2_ref, s2_ref,
                        g3_ref, w3_ref, s3_ref,
                        wh_ref, sh_ref, pool_ref,
                        o_ref):
    # ---- Dis_Down_Conv 1: Conv2d(1->64,s2)+BN+LeakyReLU as 9 VPU broadcast FMAs ----
    x1 = xcol1_ref[0]                                   # (P1, 9) f32 image taps
    w1 = w1_ref[...]                                    # (9, C1) f32 (BN-folded)
    p1, c1 = x1.shape[0], w1.shape[1]
    acc1 = jnp.zeros((p1, c1), jnp.float32)
    for t in range(9):
        acc1 += x1[:, t:t + 1] * w1[t:t + 1, :]         # (P1,1)*(1,C1) broadcast FMA
    a1 = _leaky(acc1 + s1_ref[...]).astype(jnp.bfloat16)          # (P1, 64)

    # ---- Dis_Down_Conv 2 / 3 (activations stay in registers/VMEM, never hit HBM) ----
    a2 = _down_conv_block(a1, g2_ref, w2_ref, s2_ref)             # (P2, 128)
    a3 = _down_conv_block(a2, g3_ref, w3_ref, s3_ref)             # (P3, 256)

    # ---- Out_Conv (256->1, k3, s1, p1) + BN + LeakyReLU; output positions on lanes ----
    p3 = a3.shape[0]
    acch = jnp.zeros((1, p3), jnp.float32)
    for q in range(p3):                                            # unrolled: P3 = 4
        acch += jnp.dot(a3[q:q + 1, :], wh_ref[q],
                        preferred_element_type=jnp.float32)
    head = _leaky(acch + sh_ref[...])                              # (1, P3)  == i4

    # ---- 3x AvgPool2d(2) of the mask == exact 8x8 mean, as one constant matmul ----
    m3 = jnp.dot(mask_ref[0], pool_ref[...],
                 preferred_element_type=jnp.float32)               # (1, P3)

    # ---- Sigmoid(m3 * i4) ----
    z = m3 * head
    o_ref[0] = 1.0 / (1.0 + jnp.exp(-z))


# -----------------------------------------------------------------------------
# Trace-time constants (numpy -> baked into the program, no per-call XLA cost)
# -----------------------------------------------------------------------------
def _conv_gather_mat(hi, wi, stride):
    """0/1 tap-gather matrix (9*P_out, P_in) for a 3x3, pad-1 conv (tap-major rows)."""
    ho = (hi - 1) // stride + 1
    wo = (wi - 1) // stride + 1
    g = np.zeros((9, ho * wo, hi * wi), np.float32)
    for di in range(3):
        for dj in range(3):
            t = di * 3 + dj
            for oh in range(ho):
                for ow in range(wo):
                    ih, iw = stride * oh + di - 1, stride * ow + dj - 1
                    if 0 <= ih < hi and 0 <= iw < wi:
                        g[t, oh * wo + ow, ih * wi + iw] = 1.0
    return g.reshape(9 * ho * wo, hi * wi)


def _pool_mat(h, w):
    """(H*W, P3) matrix computing the 3x AvgPool2d(2) == 8x8 mean pool."""
    h3, w3 = h // 8, w // 8
    p = np.zeros((h * w, h3 * w3), np.float32)
    for ih in range(h):
        for iw in range(w):
            p[ih * w + iw, (ih // 8) * w3 + (iw // 8)] = 1.0 / 64.0
    return p


def _head_weight(w_out, h3, w3):
    """(P3, C, P3) weights for the 3x3/s1/p1 Cout=1 head on an h3 x w3 spatial input."""
    c = w_out.shape[2]
    zero = jnp.zeros((c,), w_out.dtype)
    rows = []
    for ih in range(h3):
        for iw in range(w3):
            cols = []
            for oh in range(h3):
                for ow in range(w3):
                    di, dj = ih - oh + 1, iw - ow + 1
                    cols.append(w_out[di, dj, :, 0]
                                if 0 <= di <= 2 and 0 <= dj <= 2 else zero)
            rows.append(jnp.stack(cols, axis=-1))      # (C, P3)
    return jnp.stack(rows, axis=0)                      # (P3, C, P3)


def _im2col_image(image_nchw):
    """9-tap im2col of the raw 1-channel image for Down_Conv1: (B, P1, 9) f32."""
    b, _, h, w = image_nchw.shape
    ho, wo = h // 2, w // 2
    xp = jnp.pad(image_nchw[:, 0], ((0, 0), (1, 1), (1, 1)))
    taps = [xp[:, di:di + 2 * ho:2, dj:dj + 2 * wo:2]
            for di in range(3) for dj in range(3)]
    return jnp.stack(taps, axis=-1).reshape(b, ho * wo, 9).astype(jnp.float32)


# -----------------------------------------------------------------------------
# CNN_D forward (single pallas_call)
# -----------------------------------------------------------------------------
def cnn_d_forward(image_nchw, mask_nchw, params):
    b, _, h, w = image_nchw.shape
    assert h % 8 == 0 and w % 8 == 0
    h3, w3 = h // 8, w // 8
    p1, p2, p3 = (h // 2) * (w // 2), (h // 4) * (w // 4), h3 * w3

    # Constant tap-gather / pooling matrices.
    g2 = jnp.asarray(_conv_gather_mat(h // 2, w // 2, 2), jnp.bfloat16)   # (9*P2, P1)
    g3 = jnp.asarray(_conv_gather_mat(h // 4, w // 4, 2), jnp.bfloat16)   # (9*P3, P2)
    pool = jnp.asarray(_pool_mat(h, w), jnp.float32)                      # (H*W, P3)

    # Fold inference BatchNorm (default stats) into the conv weights / biases.
    (wd1, bd1), (wd2, bd2) = params["down1"], params["down2"]
    (wd3, bd3), (who, bho) = params["down3"], params["out"]
    w1m = (wd1.reshape(9, -1) * BN_SCALE).astype(jnp.float32)                  # (9, 64)
    w2m = (wd2.reshape(9 * wd2.shape[2], -1) * BN_SCALE).astype(jnp.bfloat16)  # (576, 128)
    w3m = (wd3.reshape(9 * wd3.shape[2], -1) * BN_SCALE).astype(jnp.bfloat16)  # (1152, 256)
    whm = (_head_weight(who, h3, w3) * BN_SCALE).astype(jnp.bfloat16)          # (P3, 256, P3)
    s1 = (bd1 * BN_SCALE).reshape(1, -1).astype(jnp.float32)
    s2 = (bd2 * BN_SCALE).reshape(1, -1).astype(jnp.float32)
    s3 = (bd3 * BN_SCALE).reshape(1, -1).astype(jnp.float32)
    sh = (bho * BN_SCALE).reshape(1, 1).astype(jnp.float32)

    xcol1 = _im2col_image(image_nchw)                                     # (B, P1, 9)
    mask_flat = mask_nchw.reshape(b, 1, h * w).astype(jnp.float32)        # (B, 1, H*W)

    c1, c2, c3 = w1m.shape[1], w2m.shape[1], w3m.shape[1]
    flops = 2 * b * (p1 * 9 * c1
                     + 9 * p2 * p1 * c1 + 9 * p2 * c1 * c2
                     + 9 * p3 * p2 * c2 + 9 * p3 * c2 * c3
                     + p3 * c3 * p3 + h * w * p3)
    bytes_accessed = int(4 * (xcol1.size + mask_flat.size + w1m.size + s1.size + s2.size
                              + s3.size + sh.size + pool.size + b * p3)
                         + 2 * (g2.size + g3.size + w2m.size + w3m.size + whm.size))
    cost = pl.CostEstimate(flops=flops, transcendentals=b * p3,
                           bytes_accessed=bytes_accessed)

    out = pl.pallas_call(
        _cnn_d_fused_kernel,
        out_shape=jax.ShapeDtypeStruct((b, 1, p3), jnp.float32),
        grid=(b,),
        in_specs=[
            pl.BlockSpec((1, p1, 9), lambda i: (i, 0, 0)),        # image taps (per batch)
            pl.BlockSpec((1, 1, h * w), lambda i: (i, 0, 0)),     # flat mask (per batch)
            pl.BlockSpec((9, c1), lambda i: (0, 0)),              # w1  (folded BN)
            pl.BlockSpec((1, c1), lambda i: (0, 0)),              # shift1
            pl.BlockSpec((9 * p2, p1), lambda i: (0, 0)),         # tap-gather 2
            pl.BlockSpec((9 * c1, c2), lambda i: (0, 0)),         # w2
            pl.BlockSpec((1, c2), lambda i: (0, 0)),              # shift2
            pl.BlockSpec((9 * p3, p2), lambda i: (0, 0)),         # tap-gather 3
            pl.BlockSpec((9 * c2, c3), lambda i: (0, 0)),         # w3
            pl.BlockSpec((1, c3), lambda i: (0, 0)),              # shift3
            pl.BlockSpec((p3, c3, p3), lambda i: (0, 0, 0)),      # head weights
            pl.BlockSpec((1, 1), lambda i: (0, 0)),               # head shift
            pl.BlockSpec((h * w, p3), lambda i: (0, 0)),          # mask pooling matrix
        ],
        out_specs=pl.BlockSpec((1, 1, p3), lambda i: (i, 0, 0)),
        compiler_params=pltpu.CompilerParams(
            dimension_semantics=("parallel",),                    # megacore batch split (v7x)
            vmem_limit_bytes=VMEM_LIMIT_BYTES,
        ),
        cost_estimate=cost,
    )(xcol1, mask_flat, w1m, s1, g2, w2m, s2, g3, w3m, s3, whm, sh, pool)
    return out.reshape(b, 1, h3, w3)


# -----------------------------------------------------------------------------
# Parameter init (deterministic, shapes from the module __init__)
# -----------------------------------------------------------------------------
def _conv_init(key, kh, kw, cin, cout):
    kw_, kb_ = jax.random.split(key)
    std = (2.0 / (cout * kh * kw)) ** 0.5          # kaiming_normal_, mode='fan_out'
    w = std * jax.random.normal(kw_, (kh, kw, cin, cout), jnp.float32)
    b = 0.01 * jax.random.normal(kb_, (cout,), jnp.float32)
    return w, b


def init_params(key):
    k1, k2, k3, k4 = jax.random.split(key, 4)
    return {
        "down1": _conv_init(k1, 3, 3, 1, 64),
        "down2": _conv_init(k2, 3, 3, 64, 128),
        "down3": _conv_init(k3, 3, 3, 128, 256),
        "out":   _conv_init(k4, 3, 3, 256, 1),
    }


if __name__ == "__main__":
    key = jax.random.PRNGKey(0)
    k_img, k_mask, k_params = jax.random.split(key, 3)

    B, H, W = 2, 16, 16
    image = jax.random.normal(k_img, (B, 1, H, W), jnp.float32)
    mask = jax.random.uniform(k_mask, (B, 1, H, W), jnp.float32)

    params = init_params(k_params)
    fwd = jax.jit(cnn_d_forward)
    out = jax.block_until_ready(fwd(image, mask, params))

    assert out.shape == (B, 1, H // 8, W // 8)
    assert bool(jnp.all(jnp.isfinite(out)))
    assert bool(jnp.all((out >= 0.0) & (out <= 1.0)))    # sigmoid range
    print("KERNEL_OK")
</pallas_src>

<mosaic_0001>
module attributes {stable_mosaic.version = 11 : i64} {
  func.func @_cnn_d_fused_kernel(%arg0: i32, %arg1: memref<1x64x9xf32, #tpu.memory_space<vmem>>, %arg2: memref<1x1x256xf32, #tpu.memory_space<vmem>>, %arg3: memref<9x64xf32, #tpu.memory_space<vmem>>, %arg4: memref<1x64xf32, #tpu.memory_space<vmem>>, %arg5: memref<144x64xbf16, #tpu.memory_space<vmem>>, %arg6: memref<576x128xbf16, #tpu.memory_space<vmem>>, %arg7: memref<1x128xf32, #tpu.memory_space<vmem>>, %arg8: memref<36x16xbf16, #tpu.memory_space<vmem>>, %arg9: memref<1152x256xbf16, #tpu.memory_space<vmem>>, %arg10: memref<1x256xf32, #tpu.memory_space<vmem>>, %arg11: memref<4x256x4xbf16, #tpu.memory_space<vmem>>, %arg12: memref<1x1xf32, #tpu.memory_space<vmem>>, %arg13: memref<256x4xf32, #tpu.memory_space<vmem>>, %arg14: memref<1x1x4xf32, #tpu.memory_space<vmem>>) attributes {dimension_semantics = [#tpu.dimension_semantics<parallel>], iteration_bounds = array<i64: 2>, scalar_prefetch = 0 : i64, scratch_operands = 0 : i64, tpu.core_type = #tpu.core_type<tc>, window_params = [{transform_indices = @transform_0, window_bounds = array<i64: 1, 64, 9>}, {transform_indices = @transform_1, window_bounds = array<i64: 1, 1, 256>}, {pipeline_mode = #tpu.pipeline_mode<synchronous>, transform_indices = @transform_2, window_bounds = array<i64: 9, 64>}, {pipeline_mode = #tpu.pipeline_mode<synchronous>, transform_indices = @transform_3, window_bounds = array<i64: 1, 64>}, {pipeline_mode = #tpu.pipeline_mode<synchronous>, transform_indices = @transform_4, window_bounds = array<i64: 144, 64>}, {pipeline_mode = #tpu.pipeline_mode<synchronous>, transform_indices = @transform_5, window_bounds = array<i64: 576, 128>}, {pipeline_mode = #tpu.pipeline_mode<synchronous>, transform_indices = @transform_6, window_bounds = array<i64: 1, 128>}, {pipeline_mode = #tpu.pipeline_mode<synchronous>, transform_indices = @transform_7, window_bounds = array<i64: 36, 16>}, {pipeline_mode = #tpu.pipeline_mode<synchronous>, transform_indices = @transform_8, window_bounds = array<i64: 1152, 256>}, {pipeline_mode = #tpu.pipeline_mode<synchronous>, transform_indices = @transform_9, window_bounds = array<i64: 1, 256>}, {pipeline_mode = #tpu.pipeline_mode<synchronous>, transform_indices = @transform_10, window_bounds = array<i64: 4, 256, 4>}, {pipeline_mode = #tpu.pipeline_mode<synchronous>, transform_indices = @transform_11, window_bounds = array<i64: 1, 1>}, {pipeline_mode = #tpu.pipeline_mode<synchronous>, transform_indices = @transform_12, window_bounds = array<i64: 256, 4>}, {transform_indices = @transform_13, window_bounds = array<i64: 1, 1, 4>}]} {
    %c0 = arith.constant 0 : index
    %c0_0 = arith.constant 0 : index
    %c0_1 = arith.constant 0 : index
    %0 = vector.load %arg1[%c0, %c0_0, %c0_1] : memref<1x64x9xf32, #tpu.memory_space<vmem>>, vector<1x64x9xf32>
    %1 = vector.shape_cast %0 : vector<1x64x9xf32> to vector<64x9xf32>
    %c0_2 = arith.constant 0 : index
    %c0_3 = arith.constant 0 : index
    %2 = vector.load %arg3[%c0_2, %c0_3] : memref<9x64xf32, #tpu.memory_space<vmem>>, vector<9x64xf32>
    %cst = arith.constant 0.000000e+00 : f32
    %3 = vector.broadcast %cst : f32 to vector<64x64xf32>
    %4 = vector.extract_strided_slice %1 {offsets = [0, 0], sizes = [64, 1], strides = [1, 1]} : vector<64x9xf32> to vector<64x1xf32>
    %5 = vector.extract_strided_slice %2 {offsets = [0, 0], sizes = [1, 64], strides = [1, 1]} : vector<9x64xf32> to vector<1x64xf32>
    %6 = vector.broadcast %4 : vector<64x1xf32> to vector<64x64xf32>
    %7 = vector.broadcast %5 : vector<1x64xf32> to vector<64x64xf32>
    %8 = arith.mulf %6, %7 : vector<64x64xf32>
    %9 = arith.addf %3, %8 : vector<64x64xf32>
    %10 = vector.extract_strided_slice %1 {offsets = [0, 1], sizes = [64, 1], strides = [1, 1]} : vector<64x9xf32> to vector<64x1xf32>
    %11 = vector.extract_strided_slice %2 {offsets = [1, 0], sizes = [1, 64], strides = [1, 1]} : vector<9x64xf32> to vector<1x64xf32>
    %12 = vector.broadcast %10 : vector<64x1xf32> to vector<64x64xf32>
    %13 = vector.broadcast %11 : vector<1x64xf32> to vector<64x64xf32>
    %14 = arith.mulf %12, %13 : vector<64x64xf32>
    %15 = arith.addf %9, %14 : vector<64x64xf32>
    %16 = vector.extract_strided_slice %1 {offsets = [0, 2], sizes = [64, 1], strides = [1, 1]} : vector<64x9xf32> to vector<64x1xf32>
    %17 = vector.extract_strided_slice %2 {offsets = [2, 0], sizes = [1, 64], strides = [1, 1]} : vector<9x64xf32> to vector<1x64xf32>
    %18 = vector.broadcast %16 : vector<64x1xf32> to vector<64x64xf32>
    %19 = vector.broadcast %17 : vector<1x64xf32> to vector<64x64xf32>
    %20 = arith.mulf %18, %19 : vector<64x64xf32>
    %21 = arith.addf %15, %20 : vector<64x64xf32>
    %22 = vector.extract_strided_slice %1 {offsets = [0, 3], sizes = [64, 1], strides = [1, 1]} : vector<64x9xf32> to vector<64x1xf32>
    %23 = vector.extract_strided_slice %2 {offsets = [3, 0], sizes = [1, 64], strides = [1, 1]} : vector<9x64xf32> to vector<1x64xf32>
    %24 = vector.broadcast %22 : vector<64x1xf32> to vector<64x64xf32>
    %25 = vector.broadcast %23 : vector<1x64xf32> to vector<64x64xf32>
    %26 = arith.mulf %24, %25 : vector<64x64xf32>
    %27 = arith.addf %21, %26 : vector<64x64xf32>
    %28 = vector.extract_strided_slice %1 {offsets = [0, 4], sizes = [64, 1], strides = [1, 1]} : vector<64x9xf32> to vector<64x1xf32>
    %29 = vector.extract_strided_slice %2 {offsets = [4, 0], sizes = [1, 64], strides = [1, 1]} : vector<9x64xf32> to vector<1x64xf32>
    %30 = vector.broadcast %28 : vector<64x1xf32> to vector<64x64xf32>
    %31 = vector.broadcast %29 : vector<1x64xf32> to vector<64x64xf32>
    %32 = arith.mulf %30, %31 : vector<64x64xf32>
    %33 = arith.addf %27, %32 : vector<64x64xf32>
    %34 = vector.extract_strided_slice %1 {offsets = [0, 5], sizes = [64, 1], strides = [1, 1]} : vector<64x9xf32> to vector<64x1xf32>
    %35 = vector.extract_strided_slice %2 {offsets = [5, 0], sizes = [1, 64], strides = [1, 1]} : vector<9x64xf32> to vector<1x64xf32>
    %36 = vector.broadcast %34 : vector<64x1xf32> to vector<64x64xf32>
    %37 = vector.broadcast %35 : vector<1x64xf32> to vector<64x64xf32>
    %38 = arith.mulf %36, %37 : vector<64x64xf32>
    %39 = arith.addf %33, %38 : vector<64x64xf32>
    %40 = vector.extract_strided_slice %1 {offsets = [0, 6], sizes = [64, 1], strides = [1, 1]} : vector<64x9xf32> to vector<64x1xf32>
    %41 = vector.extract_strided_slice %2 {offsets = [6, 0], sizes = [1, 64], strides = [1, 1]} : vector<9x64xf32> to vector<1x64xf32>
    %42 = vector.broadcast %40 : vector<64x1xf32> to vector<64x64xf32>
    %43 = vector.broadcast %41 : vector<1x64xf32> to vector<64x64xf32>
    %44 = arith.mulf %42, %43 : vector<64x64xf32>
    %45 = arith.addf %39, %44 : vector<64x64xf32>
    %46 = vector.extract_strided_slice %1 {offsets = [0, 7], sizes = [64, 1], strides = [1, 1]} : vector<64x9xf32> to vector<64x1xf32>
    %47 = vector.extract_strided_slice %2 {offsets = [7, 0], sizes = [1, 64], strides = [1, 1]} : vector<9x64xf32> to vector<1x64xf32>
    %48 = vector.broadcast %46 : vector<64x1xf32> to vector<64x64xf32>
    %49 = vector.broadcast %47 : vector<1x64xf32> to vector<64x64xf32>
    %50 = arith.mulf %48, %49 : vector<64x64xf32>
    %51 = arith.addf %45, %50 : vector<64x64xf32>
    %52 = vector.extract_strided_slice %1 {offsets = [0, 8], sizes = [64, 1], strides = [1, 1]} : vector<64x9xf32> to vector<64x1xf32>
    %53 = vector.extract_strided_slice %2 {offsets = [8, 0], sizes = [1, 64], strides = [1, 1]} : vector<9x64xf32> to vector<1x64xf32>
    %54 = vector.broadcast %52 : vector<64x1xf32> to vector<64x64xf32>
    %55 = vector.broadcast %53 : vector<1x64xf32> to vector<64x64xf32>
    %56 = arith.mulf %54, %55 : vector<64x64xf32>
    %57 = arith.addf %51, %56 : vector<64x64xf32>
    %c0_4 = arith.constant 0 : index
    %c0_5 = arith.constant 0 : index
    %58 = vector.load %arg4[%c0_4, %c0_5] : memref<1x64xf32, #tpu.memory_space<vmem>>, vector<1x64xf32>
    %59 = vector.broadcast %58 : vector<1x64xf32> to vector<64x64xf32>
    %60 = arith.addf %57, %59 : vector<64x64xf32>
    %cst_6 = arith.constant 0.000000e+00 : f32
    %61 = vector.broadcast %cst_6 : f32 to vector<64x64xf32>
    %62 = arith.cmpf oge, %60, %61 : vector<64x64xf32>
    %cst_7 = arith.constant 0.00999999977 : f32
    %63 = vector.broadcast %cst_7 : f32 to vector<64x64xf32>
    %64 = arith.mulf %63, %60 : vector<64x64xf32>
    %65 = arith.select %62, %60, %64 : vector<64x64xi1>, vector<64x64xf32>
    %66 = arith.truncf %65 : vector<64x64xf32> to vector<64x64xbf16>
    %c0_8 = arith.constant 0 : index
    %c0_9 = arith.constant 0 : index
    %67 = vector.load %arg5[%c0_8, %c0_9] : memref<144x64xbf16, #tpu.memory_space<vmem>>, vector<144x64xbf16>
    %cst_10 = arith.constant dense<0.000000e+00> : vector<144x64xf32>
    %68 = tpu.matmul %67, %66, %cst_10 {dimension_numbers = #tpu.dot_dimension_numbers<[1], [0], [0], [1], [0, 0, 1, 1], [], []>} : vector<144x64xbf16>, vector<64x64xbf16>, vector<144x64xf32> -> vector<144x64xf32>
    %69 = arith.truncf %68 : vector<144x64xf32> to vector<144x64xbf16>
    %cst_11 = arith.constant 0.000000e+00 : f32
    %70 = vector.broadcast %cst_11 : f32 to vector<16x128xf32>
    %71 = vector.extract_strided_slice %69 {offsets = [0, 0], sizes = [16, 64], strides = [1, 1]} : vector<144x64xbf16> to vector<16x64xbf16>
    %c0_12 = arith.constant 0 : index
    %c0_13 = arith.constant 0 : index
    %72 = vector.load %arg6[%c0_12, %c0_13] : memref<576x128xbf16, #tpu.memory_space<vmem>>, vector<64x128xbf16>
    %cst_14 = arith.constant dense<0.000000e+00> : vector<16x128xf32>
    %73 = tpu.matmul %71, %72, %cst_14 {dimension_numbers = #tpu.dot_dimension_numbers<[1], [0], [0], [1], [0, 0, 1, 1], [], []>} : vector<16x64xbf16>, vector<64x128xbf16>, vector<16x128xf32> -> vector<16x128xf32>
    %74 = arith.addf %70, %73 : vector<16x128xf32>
    %75 = vector.extract_strided_slice %69 {offsets = [16, 0], sizes = [16, 64], strides = [1, 1]} : vector<144x64xbf16> to vector<16x64xbf16>
    %c64 = arith.constant 64 : index
    %c0_15 = arith.constant 0 : index
    %76 = vector.load %arg6[%c64, %c0_15] : memref<576x128xbf16, #tpu.memory_space<vmem>>, vector<64x128xbf16>
    %cst_16 = arith.constant dense<0.000000e+00> : vector<16x128xf32>
    %77 = tpu.matmul %75, %76, %cst_16 {dimension_numbers = #tpu.dot_dimension_numbers<[1], [0], [0], [1], [0, 0, 1, 1], [], []>} : vector<16x64xbf16>, vector<64x128xbf16>, vector<16x128xf32> -> vector<16x128xf32>
    %78 = arith.addf %74, %77 : vector<16x128xf32>
    %79 = vector.extract_strided_slice %69 {offsets = [32, 0], sizes = [16, 64], strides = [1, 1]} : vector<144x64xbf16> to vector<16x64xbf16>
    %c128 = arith.constant 128 : index
    %c0_17 = arith.constant 0 : index
    %80 = vector.load %arg6[%c128, %c0_17] : memref<576x128xbf16, #tpu.memory_space<vmem>>, vector<64x128xbf16>
    %cst_18 = arith.constant dense<0.000000e+00> : vector<16x128xf32>
    %81 = tpu.matmul %79, %80, %cst_18 {dimension_numbers = #tpu.dot_dimension_numbers<[1], [0], [0], [1], [0, 0, 1, 1], [], []>} : vector<16x64xbf16>, vector<64x128xbf16>, vector<16x128xf32> -> vector<16x128xf32>
    %82 = arith.addf %78, %81 : vector<16x128xf32>
    %83 = vector.extract_strided_slice %69 {offsets = [48, 0], sizes = [16, 64], strides = [1, 1]} : vector<144x64xbf16> to vector<16x64xbf16>
    %c192 = arith.constant 192 : index
    %c0_19 = arith.constant 0 : index
    %84 = vector.load %arg6[%c192, %c0_19] : memref<576x128xbf16, #tpu.memory_space<vmem>>, vector<64x128xbf16>
    %cst_20 = arith.constant dense<0.000000e+00> : vector<16x128xf32>
    %85 = tpu.matmul %83, %84, %cst_20 {dimension_numbers = #tpu.dot_dimension_numbers<[1], [0], [0], [1], [0, 0, 1, 1], [], []>} : vector<16x64xbf16>, vector<64x128xbf16>, vector<16x128xf32> -> vector<16x128xf32>
    %86 = arith.addf %82, %85 : vector<16x128xf32>
    %87 = vector.extract_strided_slice %69 {offsets = [64, 0], sizes = [16, 64], strides = [1, 1]} : vector<144x64xbf16> to vector<16x64xbf16>
    %c256 = arith.constant 256 : index
    %c0_21 = arith.constant 0 : index
    %88 = vector.load %arg6[%c256, %c0_21] : memref<576x128xbf16, #tpu.memory_space<vmem>>, vector<64x128xbf16>
    %cst_22 = arith.constant dense<0.000000e+00> : vector<16x128xf32>
    %89 = tpu.matmul %87, %88, %cst_22 {dimension_numbers = #tpu.dot_dimension_numbers<[1], [0], [0], [1], [0, 0, 1, 1], [], []>} : vector<16x64xbf16>, vector<64x128xbf16>, vector<16x128xf32> -> vector<16x128xf32>
    %90 = arith.addf %86, %89 : vector<16x128xf32>
    %91 = vector.extract_strided_slice %69 {offsets = [80, 0], sizes = [16, 64], strides = [1, 1]} : vector<144x64xbf16> to vector<16x64xbf16>
    %c320 = arith.constant 320 : index
    %c0_23 = arith.constant 0 : index
    %92 = vector.load %arg6[%c320, %c0_23] : memref<576x128xbf16, #tpu.memory_space<vmem>>, vector<64x128xbf16>
    %cst_24 = arith.constant dense<0.000000e+00> : vector<16x128xf32>
    %93 = tpu.matmul %91, %92, %cst_24 {dimension_numbers = #tpu.dot_dimension_numbers<[1], [0], [0], [1], [0, 0, 1, 1], [], []>} : vector<16x64xbf16>, vector<64x128xbf16>, vector<16x128xf32> -> vector<16x128xf32>
    %94 = arith.addf %90, %93 : vector<16x128xf32>
    %95 = vector.extract_strided_slice %69 {offsets = [96, 0], sizes = [16, 64], strides = [1, 1]} : vector<144x64xbf16> to vector<16x64xbf16>
    %c384 = arith.constant 384 : index
    %c0_25 = arith.constant 0 : index
    %96 = vector.load %arg6[%c384, %c0_25] : memref<576x128xbf16, #tpu.memory_space<vmem>>, vector<64x128xbf16>
    %cst_26 = arith.constant dense<0.000000e+00> : vector<16x128xf32>
    %97 = tpu.matmul %95, %96, %cst_26 {dimension_numbers = #tpu.dot_dimension_numbers<[1], [0], [0], [1], [0, 0, 1, 1], [], []>} : vector<16x64xbf16>, vector<64x128xbf16>, vector<16x128xf32> -> vector<16x128xf32>
    %98 = arith.addf %94, %97 : vector<16x128xf32>
    %99 = vector.extract_strided_slice %69 {offsets = [112, 0], sizes = [16, 64], strides = [1, 1]} : vector<144x64xbf16> to vector<16x64xbf16>
    %c448 = arith.constant 448 : index
    %c0_27 = arith.constant 0 : index
    %100 = vector.load %arg6[%c448, %c0_27] : memref<576x128xbf16, #tpu.memory_space<vmem>>, vector<64x128xbf16>
    %cst_28 = arith.constant dense<0.000000e+00> : vector<16x128xf32>
    %101 = tpu.matmul %99, %100, %cst_28 {dimension_numbers = #tpu.dot_dimension_numbers<[1], [0], [0], [1], [0, 0, 1, 1], [], []>} : vector<16x64xbf16>, vector<64x128xbf16>, vector<16x128xf32> -> vector<16x128xf32>
    %102 = arith.addf %98, %101 : vector<16x128xf32>
    %103 = vector.extract_strided_slice %69 {offsets = [128, 0], sizes = [16, 64], strides = [1, 1]} : vector<144x64xbf16> to vector<16x64xbf16>
    %c512 = arith.constant 512 : index
    %c0_29 = arith.constant 0 : index
    %104 = vector.load %arg6[%c512, %c0_29] : memref<576x128xbf16, #tpu.memory_space<vmem>>, vector<64x128xbf16>
    %cst_30 = arith.constant dense<0.000000e+00> : vector<16x128xf32>
    %105 = tpu.matmul %103, %104, %cst_30 {dimension_numbers = #tpu.dot_dimension_numbers<[1], [0], [0], [1], [0, 0, 1, 1], [], []>} : vector<16x64xbf16>, vector<64x128xbf16>, vector<16x128xf32> -> vector<16x128xf32>
    %106 = arith.addf %102, %105 : vector<16x128xf32>
    %c0_31 = arith.constant 0 : index
    %c0_32 = arith.constant 0 : index
    %107 = vector.load %arg7[%c0_31, %c0_32] : memref<1x128xf32, #tpu.memory_space<vmem>>, vector<1x128xf32>
    %108 = vector.broadcast %107 : vector<1x128xf32> to vector<16x128xf32>
    %109 = arith.addf %106, %108 : vector<16x128xf32>
    %cst_33 = arith.constant 0.000000e+00 : f32
    %110 = vector.broadcast %cst_33 : f32 to vector<16x128xf32>
    %111 = arith.cmpf oge, %109, %110 : vector<16x128xf32>
    %cst_34 = arith.constant 0.00999999977 : f32
    %112 = vector.broadcast %cst_34 : f32 to vector<16x128xf32>
    %113 = arith.mulf %112, %109 : vector<16x128xf32>
    %114 = arith.select %111, %109, %113 : vector<16x128xi1>, vector<16x128xf32>
    %115 = arith.truncf %114 : vector<16x128xf32> to vector<16x128xbf16>
    %c0_35 = arith.constant 0 : index
    %c0_36 = arith.constant 0 : index
    %116 = vector.load %arg8[%c0_35, %c0_36] : memref<36x16xbf16, #tpu.memory_space<vmem>>, vector<36x16xbf16>
    %cst_37 = arith.constant dense<0.000000e+00> : vector<36x128xf32>
    %117 = tpu.matmul %116, %115, %cst_37 {dimension_numbers = #tpu.dot_dimension_numbers<[1], [0], [0], [1], [0, 0, 1, 1], [], []>} : vector<36x16xbf16>, vector<16x128xbf16>, vector<36x128xf32> -> vector<36x128xf32>
    %118 = arith.truncf %117 : vector<36x128xf32> to vector<36x128xbf16>
    %cst_38 = arith.constant 0.000000e+00 : f32
    %119 = vector.broadcast %cst_38 : f32 to vector<4x256xf32>
    %120 = vector.extract_strided_slice %118 {offsets = [0, 0], sizes = [4, 128], strides = [1, 1]} : vector<36x128xbf16> to vector<4x128xbf16>
    %c0_39 = arith.constant 0 : index
    %c0_40 = arith.constant 0 : index
    %121 = vector.load %arg9[%c0_39, %c0_40] : memref<1152x256xbf16, #tpu.memory_space<vmem>>, vector<128x256xbf16>
    %cst_41 = arith.constant dense<0.000000e+00> : vector<4x256xf32>
    %122 = tpu.matmul %120, %121, %cst_41 {dimension_numbers = #tpu.dot_dimension_numbers<[1], [0], [0], [1], [0, 0, 1, 1], [], []>} : vector<4x128xbf16>, vector<128x256xbf16>, vector<4x256xf32> -> vector<4x256xf32>
    %123 = arith.addf %119, %122 : vector<4x256xf32>
    %124 = vector.extract_strided_slice %118 {offsets = [4, 0], sizes = [4, 128], strides = [1, 1]} : vector<36x128xbf16> to vector<4x128xbf16>
    %c128_42 = arith.constant 128 : index
    %c0_43 = arith.constant 0 : index
    %125 = vector.load %arg9[%c128_42, %c0_43] : memref<1152x256xbf16, #tpu.memory_space<vmem>>, vector<128x256xbf16>
    %cst_44 = arith.constant dense<0.000000e+00> : vector<4x256xf32>
    %126 = tpu.matmul %124, %125, %cst_44 {dimension_numbers = #tpu.dot_dimension_numbers<[1], [0], [0], [1], [0, 0, 1, 1], [], []>} : vector<4x128xbf16>, vector<128x256xbf16>, vector<4x256xf32> -> vector<4x256xf32>
    %127 = arith.addf %123, %126 : vector<4x256xf32>
    %128 = vector.extract_strided_slice %118 {offsets = [8, 0], sizes = [4, 128], strides = [1, 1]} : vector<36x128xbf16> to vector<4x128xbf16>
    %c256_45 = arith.constant 256 : index
    %c0_46 = arith.constant 0 : index
    %129 = vector.load %arg9[%c256_45, %c0_46] : memref<1152x256xbf16, #tpu.memory_space<vmem>>, vector<128x256xbf16>
    %cst_47 = arith.constant dense<0.000000e+00> : vector<4x256xf32>
    %130 = tpu.matmul %128, %129, %cst_47 {dimension_numbers = #tpu.dot_dimension_numbers<[1], [0], [0], [1], [0, 0, 1, 1], [], []>} : vector<4x128xbf16>, vector<128x256xbf16>, vector<4x256xf32> -> vector<4x256xf32>
    %131 = arith.addf %127, %130 : vector<4x256xf32>
    %132 = vector.extract_strided_slice %118 {offsets = [12, 0], sizes = [4, 128], strides = [1, 1]} : vector<36x128xbf16> to vector<4x128xbf16>
    %c384_48 = arith.constant 384 : index
    %c0_49 = arith.constant 0 : index
    %133 = vector.load %arg9[%c384_48, %c0_49] : memref<1152x256xbf16, #tpu.memory_space<vmem>>, vector<128x256xbf16>
    %cst_50 = arith.constant dense<0.000000e+00> : vector<4x256xf32>
    %134 = tpu.matmul %132, %133, %cst_50 {dimension_numbers = #tpu.dot_dimension_numbers<[1], [0], [0], [1], [0, 0, 1, 1], [], []>} : vector<4x128xbf16>, vector<128x256xbf16>, vector<4x256xf32> -> vector<4x256xf32>
    %135 = arith.addf %131, %134 : vector<4x256xf32>
    %136 = vector.extract_strided_slice %118 {offsets = [16, 0], sizes = [4, 128], strides = [1, 1]} : vector<36x128xbf16> to vector<4x128xbf16>
    %c512_51 = arith.constant 512 : index
    %c0_52 = arith.constant 0 : index
    %137 = vector.load %arg9[%c512_51, %c0_52] : memref<1152x256xbf16, #tpu.memory_space<vmem>>, vector<128x256xbf16>
    %cst_53 = arith.constant dense<0.000000e+00> : vector<4x256xf32>
    %138 = tpu.matmul %136, %137, %cst_53 {dimension_numbers = #tpu.dot_dimension_numbers<[1], [0], [0], [1], [0, 0, 1, 1], [], []>} : vector<4x128xbf16>, vector<128x256xbf16>, vector<4x256xf32> -> vector<4x256xf32>
    %139 = arith.addf %135, %138 : vector<4x256xf32>
    %140 = vector.extract_strided_slice %118 {offsets = [20, 0], sizes = [4, 128], strides = [1, 1]} : vector<36x128xbf16> to vector<4x128xbf16>
    %c640 = arith.constant 640 : index
    %c0_54 = arith.constant 0 : index
    %141 = vector.load %arg9[%c640, %c0_54] : memref<1152x256xbf16, #tpu.memory_space<vmem>>, vector<128x256xbf16>
    %cst_55 = arith.constant dense<0.000000e+00> : vector<4x256xf32>
    %142 = tpu.matmul %140, %141, %cst_55 {dimension_numbers = #tpu.dot_dimension_numbers<[1], [0], [0], [1], [0, 0, 1, 1], [], []>} : vector<4x128xbf16>, vector<128x256xbf16>, vector<4x256xf32> -> vector<4x256xf32>
    %143 = arith.addf %139, %142 : vector<4x256xf32>
    %144 = vector.extract_strided_slice %118 {offsets = [24, 0], sizes = [4, 128], strides = [1, 1]} : vector<36x128xbf16> to vector<4x128xbf16>
    %c768 = arith.constant 768 : index
    %c0_56 = arith.constant 0 : index
    %145 = vector.load %arg9[%c768, %c0_56] : memref<1152x256xbf16, #tpu.memory_space<vmem>>, vector<128x256xbf16>
    %cst_57 = arith.constant dense<0.000000e+00> : vector<4x256xf32>
    %146 = tpu.matmul %144, %145, %cst_57 {dimension_numbers = #tpu.dot_dimension_numbers<[1], [0], [0], [1], [0, 0, 1, 1], [], []>} : vector<4x128xbf16>, vector<128x256xbf16>, vector<4x256xf32> -> vector<4x256xf32>
    %147 = arith.addf %143, %146 : vector<4x256xf32>
    %148 = vector.extract_strided_slice %118 {offsets = [28, 0], sizes = [4, 128], strides = [1, 1]} : vector<36x128xbf16> to vector<4x128xbf16>
    %c896 = arith.constant 896 : index
    %c0_58 = arith.constant 0 : index
    %149 = vector.load %arg9[%c896, %c0_58] : memref<1152x256xbf16, #tpu.memory_space<vmem>>, vector<128x256xbf16>
    %cst_59 = arith.constant dense<0.000000e+00> : vector<4x256xf32>
    %150 = tpu.matmul %148, %149, %cst_59 {dimension_numbers = #tpu.dot_dimension_numbers<[1], [0], [0], [1], [0, 0, 1, 1], [], []>} : vector<4x128xbf16>, vector<128x256xbf16>, vector<4x256xf32> -> vector<4x256xf32>
    %151 = arith.addf %147, %150 : vector<4x256xf32>
    %152 = vector.extract_strided_slice %118 {offsets = [32, 0], sizes = [4, 128], strides = [1, 1]} : vector<36x128xbf16> to vector<4x128xbf16>
    %c1024 = arith.constant 1024 : index
    %c0_60 = arith.constant 0 : index
    %153 = vector.load %arg9[%c1024, %c0_60] : memref<1152x256xbf16, #tpu.memory_space<vmem>>, vector<128x256xbf16>
    %cst_61 = arith.constant dense<0.000000e+00> : vector<4x256xf32>
    %154 = tpu.matmul %152, %153, %cst_61 {dimension_numbers = #tpu.dot_dimension_numbers<[1], [0], [0], [1], [0, 0, 1, 1], [], []>} : vector<4x128xbf16>, vector<128x256xbf16>, vector<4x256xf32> -> vector<4x256xf32>
    %155 = arith.addf %151, %154 : vector<4x256xf32>
    %c0_62 = arith.constant 0 : index
    %c0_63 = arith.constant 0 : index
    %156 = vector.load %arg10[%c0_62, %c0_63] : memref<1x256xf32, #tpu.memory_space<vmem>>, vector<1x256xf32>
    %157 = vector.broadcast %156 : vector<1x256xf32> to vector<4x256xf32>
    %158 = arith.addf %155, %157 : vector<4x256xf32>
    %cst_64 = arith.constant 0.000000e+00 : f32
    %159 = vector.broadcast %cst_64 : f32 to vector<4x256xf32>
    %160 = arith.cmpf oge, %158, %159 : vector<4x256xf32>
    %cst_65 = arith.constant 0.00999999977 : f32
    %161 = vector.broadcast %cst_65 : f32 to vector<4x256xf32>
    %162 = arith.mulf %161, %158 : vector<4x256xf32>
    %163 = arith.select %160, %158, %162 : vector<4x256xi1>, vector<4x256xf32>
    %164 = arith.truncf %163 : vector<4x256xf32> to vector<4x256xbf16>
    %cst_66 = arith.constant 0.000000e+00 : f32
    %165 = vector.broadcast %cst_66 : f32 to vector<1x4xf32>
    %166 = vector.extract_strided_slice %164 {offsets = [0, 0], sizes = [1, 256], strides = [1, 1]} : vector<4x256xbf16> to vector<1x256xbf16>
    %c0_67 = arith.constant 0 : index
    %c0_68 = arith.constant 0 : index
    %c0_69 = arith.constant 0 : index
    %167 = vector.load %arg11[%c0_67, %c0_68, %c0_69] : memref<4x256x4xbf16, #tpu.memory_space<vmem>>, vector<1x256x4xbf16>
    %168 = vector.shape_cast %167 : vector<1x256x4xbf16> to vector<256x4xbf16>
    %cst_70 = arith.constant dense<0.000000e+00> : vector<1x4xf32>
    %169 = tpu.matmul %166, %168, %cst_70 {dimension_numbers = #tpu.dot_dimension_numbers<[1], [0], [0], [1], [0, 0, 1, 1], [], []>} : vector<1x256xbf16>, vector<256x4xbf16>, vector<1x4xf32> -> vector<1x4xf32>
    %170 = arith.addf %165, %169 : vector<1x4xf32>
    %171 = vector.extract_strided_slice %164 {offsets = [1, 0], sizes = [1, 256], strides = [1, 1]} : vector<4x256xbf16> to vector<1x256xbf16>
    %c1 = arith.constant 1 : index
    %c0_71 = arith.constant 0 : index
    %c0_72 = arith.constant 0 : index
    %172 = vector.load %arg11[%c1, %c0_71, %c0_72] : memref<4x256x4xbf16, #tpu.memory_space<vmem>>, vector<1x256x4xbf16>
    %173 = vector.shape_cast %172 : vector<1x256x4xbf16> to vector<256x4xbf16>
    %cst_73 = arith.constant dense<0.000000e+00> : vector<1x4xf32>
    %174 = tpu.matmul %171, %173, %cst_73 {dimension_numbers = #tpu.dot_dimension_numbers<[1], [0], [0], [1], [0, 0, 1, 1], [], []>} : vector<1x256xbf16>, vector<256x4xbf16>, vector<1x4xf32> -> vector<1x4xf32>
    %175 = arith.addf %170, %174 : vector<1x4xf32>
    %176 = vector.extract_strided_slice %164 {offsets = [2, 0], sizes = [1, 256], strides = [1, 1]} : vector<4x256xbf16> to vector<1x256xbf16>
    %c2 = arith.constant 2 : index
    %c0_74 = arith.constant 0 : index
    %c0_75 = arith.constant 0 : index
    %177 = vector.load %arg11[%c2, %c0_74, %c0_75] : memref<4x256x4xbf16, #tpu.memory_space<vmem>>, vector<1x256x4xbf16>
    %178 = vector.shape_cast %177 : vector<1x256x4xbf16> to vector<256x4xbf16>
    %cst_76 = arith.constant dense<0.000000e+00> : vector<1x4xf32>
    %179 = tpu.matmul %176, %178, %cst_76 {dimension_numbers = #tpu.dot_dimension_numbers<[1], [0], [0], [1], [0, 0, 1, 1], [], []>} : vector<1x256xbf16>, vector<256x4xbf16>, vector<1x4xf32> -> vector<1x4xf32>
    %180 = arith.addf %175, %179 : vector<1x4xf32>
    %181 = vector.extract_strided_slice %164 {offsets = [3, 0], sizes = [1, 256], strides = [1, 1]} : vector<4x256xbf16> to vector<1x256xbf16>
    %c3 = arith.constant 3 : index
    %c0_77 = arith.constant 0 : index
    %c0_78 = arith.constant 0 : index
    %182 = vector.load %arg11[%c3, %c0_77, %c0_78] : memref<4x256x4xbf16, #tpu.memory_space<vmem>>, vector<1x256x4xbf16>
    %183 = vector.shape_cast %182 : vector<1x256x4xbf16> to vector<256x4xbf16>
    %cst_79 = arith.constant dense<0.000000e+00> : vector<1x4xf32>
    %184 = tpu.matmul %181, %183, %cst_79 {dimension_numbers = #tpu.dot_dimension_numbers<[1], [0], [0], [1], [0, 0, 1, 1], [], []>} : vector<1x256xbf16>, vector<256x4xbf16>, vector<1x4xf32> -> vector<1x4xf32>
    %185 = arith.addf %180, %184 : vector<1x4xf32>
    %c0_80 = arith.constant 0 : index
    %c0_81 = arith.constant 0 : index
    %186 = vector.load %arg12[%c0_80, %c0_81] : memref<1x1xf32, #tpu.memory_space<vmem>>, vector<1x1xf32>
    %187 = vector.broadcast %186 : vector<1x1xf32> to vector<1x4xf32>
    %188 = arith.addf %185, %187 : vector<1x4xf32>
    %cst_82 = arith.constant 0.000000e+00 : f32
    %189 = vector.broadcast %cst_82 : f32 to vector<1x4xf32>
    %190 = arith.cmpf oge, %188, %189 : vector<1x4xf32>
    %cst_83 = arith.constant 0.00999999977 : f32
    %191 = vector.broadcast %cst_83 : f32 to vector<1x4xf32>
    %192 = arith.mulf %191, %188 : vector<1x4xf32>
    %193 = arith.select %190, %188, %192 : vector<1x4xi1>, vector<1x4xf32>
    %c0_84 = arith.constant 0 : index
    %c0_85 = arith.constant 0 : index
    %c0_86 = arith.constant 0 : index
    %194 = vector.load %arg2[%c0_84, %c0_85, %c0_86] : memref<1x1x256xf32, #tpu.memory_space<vmem>>, vector<1x1x256xf32>
    %195 = vector.shape_cast %194 : vector<1x1x256xf32> to vector<1x256xf32>
    %c0_87 = arith.constant 0 : index
    %c0_88 = arith.constant 0 : index
    %196 = vector.load %arg13[%c0_87, %c0_88] : memref<256x4xf32, #tpu.memory_space<vmem>>, vector<256x4xf32>
    %cst_89 = arith.constant dense<0.000000e+00> : vector<1x4xf32>
    %197 = tpu.matmul %195, %196, %cst_89 {dimension_numbers = #tpu.dot_dimension_numbers<[1], [0], [0], [1], [0, 0, 1, 1], [], []>} : vector<1x256xf32>, vector<256x4xf32>, vector<1x4xf32> -> vector<1x4xf32>
    %198 = arith.mulf %197, %193 : vector<1x4xf32>
    %cst_90 = arith.constant 0.000000e+00 : f32
    %199 = vector.broadcast %cst_90 : f32 to vector<1x4xf32>
    %200 = arith.subf %199, %198 : vector<1x4xf32>
    %201 = math.exp %200 : vector<1x4xf32>
    %cst_91 = arith.constant 1.000000e+00 : f32
    %202 = vector.broadcast %cst_91 : f32 to vector<1x4xf32>
    %203 = arith.addf %202, %201 : vector<1x4xf32>
    %cst_92 = arith.constant 1.000000e+00 : f32
    %204 = vector.broadcast %cst_92 : f32 to vector<1x4xf32>
    %205 = arith.divf %204, %203 : vector<1x4xf32>
    %c0_93 = arith.constant 0 : index
    %c0_94 = arith.constant 0 : index
    %c0_95 = arith.constant 0 : index
    %206 = vector.load %arg14[%c0_93, %c0_94, %c0_95] : memref<1x1x4xf32, #tpu.memory_space<vmem>>, vector<1x1x4xf32>
    %207 = vector.shape_cast %206 : vector<1x1x4xf32> to vector<1x4xf32>
    %208 = vector.shape_cast %205 : vector<1x4xf32> to vector<1x1x4xf32>
    tpu.vector_store %arg14[%c0_93, %c0_94, %c0_95], %208 {strides = array<i32>} : memref<1x1x4xf32, #tpu.memory_space<vmem>>, vector<1x1x4xf32>,
    return
  }
  func.func @transform_0(%arg0: i32) -> (i32, i32, i32) {
    %c0_i32 = arith.constant 0 : i32
    %c0_i32_0 = arith.constant 0 : i32
    %c0_i32_1 = arith.constant 0 : i32
    return %arg0, %c0_i32, %c0_i32_0 : i32, i32, i32
  }
  func.func @transform_1(%arg0: i32) -> (i32, i32, i32) {
    %c0_i32 = arith.constant 0 : i32
    %c0_i32_0 = arith.constant 0 : i32
    %c0_i32_1 = arith.constant 0 : i32
    return %arg0, %c0_i32, %c0_i32_0 : i32, i32, i32
  }
  func.func @transform_2(%arg0: i32) -> (i32, i32) {
    %c0_i32 = arith.constant 0 : i32
    %c0_i32_0 = arith.constant 0 : i32
    %c0_i32_1 = arith.constant 0 : i32
    return %c0_i32, %c0_i32_0 : i32, i32
  }
  func.func @transform_3(%arg0: i32) -> (i32, i32) {
    %c0_i32 = arith.constant 0 : i32
    %c0_i32_0 = arith.constant 0 : i32
    %c0_i32_1 = arith.constant 0 : i32
    return %c0_i32, %c0_i32_0 : i32, i32
  }
  func.func @transform_4(%arg0: i32) -> (i32, i32) {
    %c0_i32 = arith.constant 0 : i32
    %c0_i32_0 = arith.constant 0 : i32
    %c0_i32_1 = arith.constant 0 : i32
    return %c0_i32, %c0_i32_0 : i32, i32
  }
  func.func @transform_5(%arg0: i32) -> (i32, i32) {
    %c0_i32 = arith.constant 0 : i32
    %c0_i32_0 = arith.constant 0 : i32
    %c0_i32_1 = arith.constant 0 : i32
    return %c0_i32, %c0_i32_0 : i32, i32
  }
  func.func @transform_6(%arg0: i32) -> (i32, i32) {
    %c0_i32 = arith.constant 0 : i32
    %c0_i32_0 = arith.constant 0 : i32
    %c0_i32_1 = arith.constant 0 : i32
    return %c0_i32, %c0_i32_0 : i32, i32
  }
  func.func @transform_7(%arg0: i32) -> (i32, i32) {
    %c0_i32 = arith.constant 0 : i32
    %c0_i32_0 = arith.constant 0 : i32
    %c0_i32_1 = arith.constant 0 : i32
    return %c0_i32, %c0_i32_0 : i32, i32
  }
  func.func @transform_8(%arg0: i32) -> (i32, i32) {
    %c0_i32 = arith.constant 0 : i32
    %c0_i32_0 = arith.constant 0 : i32
    %c0_i32_1 = arith.constant 0 : i32
    return %c0_i32, %c0_i32_0 : i32, i32
  }
  func.func @transform_9(%arg0: i32) -> (i32, i32) {
    %c0_i32 = arith.constant 0 : i32
    %c0_i32_0 = arith.constant 0 : i32
    %c0_i32_1 = arith.constant 0 : i32
    return %c0_i32, %c0_i32_0 : i32, i32
  }
  func.func @transform_10(%arg0: i32) -> (i32, i32, i32) {
    %c0_i32 = arith.constant 0 : i32
    %c0_i32_0 = arith.constant 0 : i32
    %c0_i32_1 = arith.constant 0 : i32
    %c0_i32_2 = arith.constant 0 : i32
    return %c0_i32, %c0_i32_0, %c0_i32_1 : i32, i32, i32
  }
  func.func @transform_11(%arg0: i32) -> (i32, i32) {
    %c0_i32 = arith.constant 0 : i32
    %c0_i32_0 = arith.constant 0 : i32
    %c0_i32_1 = arith.constant 0 : i32
    return %c0_i32, %c0_i32_0 : i32, i32
  }
  func.func @transform_12(%arg0: i32) -> (i32, i32) {
    %c0_i32 = arith.constant 0 : i32
    %c0_i32_0 = arith.constant 0 : i32
    %c0_i32_1 = arith.constant 0 : i32
    return %c0_i32, %c0_i32_0 : i32, i32
  }
  func.func @transform_13(%arg0: i32) -> (i32, i32, i32) {
    %c0_i32 = arith.constant 0 : i32
    %c0_i32_0 = arith.constant 0 : i32
    %c0_i32_1 = arith.constant 0 : i32
    return %arg0, %c0_i32, %c0_i32_0 : i32, i32, i32
  }
}

</mosaic_0001>

<llo_original>
// kernel: cnn_d_forward.1
$region0: #{cnn_d_forward.1}
  #allocation0 [shape = 'u32[]', space=smem, size = 0x4, offset = 0x4, fixed_abs, tag = 'smem constant byte address 0x4 - core index']
  #allocation1 [shape = 'u32[144,128]{1,0:T(1,128)}', space=vmem, size = 0x12000, scoped, tag = 'internal scratch']
  #allocation2 [shape = 'f32[1,1]{1,0:T(1,128)S(1)}', space=vmem, size = 0x200, scoped, tag = 'scoped memory for cnn_d_forward.1']
  %s0 = inlined_call_operand.vmem [shape: f32[2,64,9], index: 0, kind: input, shape index: {}]
  %s1 = inlined_call_operand.vmem [shape: f32[2,1,256], index: 1, kind: input, shape index: {}]
  %s2 = inlined_call_operand.vmem [shape: f32[9,64], index: 2, kind: input, shape index: {}]
  %s3 = inlined_call_operand.vmem [shape: f32[1,64], index: 3, kind: input, shape index: {}]
  %s4 = inlined_call_operand.vmem [shape: bf16[144,64], index: 4, kind: input, shape index: {}]
  %s5 = inlined_call_operand.vmem [shape: bf16[576,128], index: 5, kind: input, shape index: {}]
  %s6 = inlined_call_operand.vmem [shape: f32[1,128], index: 6, kind: input, shape index: {}]
  %s7 = inlined_call_operand.vmem [shape: bf16[36,16], index: 7, kind: input, shape index: {}]
  %s8 = inlined_call_operand.vmem [shape: bf16[1152,256], index: 8, kind: input, shape index: {}]
  %s9 = inlined_call_operand.vmem [shape: f32[1,256], index: 9, kind: input, shape index: {}]
  %s10 = inlined_call_operand.vmem [shape: bf16[4,256,4], index: 10, kind: input, shape index: {}]
  %s11 = inlined_call_operand.<no memory space> [shape: f32[1,1], index: 11, kind: input, shape index: {}]
  %s12 = inlined_call_operand.vmem [shape: f32[256,4], index: 12, kind: input, shape index: {}]
  %s13 = inlined_call_operand.vmem [shape: f32[2,1,4], index: 13, kind: output, shape index: {}]
  %s14 = sld [smem:[#allocation0]]
  $region85: #{cnn_d_forward.1} parent=0
    _
  %s16 = ssub.s32 1, %s14
  %s17 = scalar_select 0, %s16, %s14
  %v18 = vstv %s11
  %19 = vst [vmem:[#allocation2] sm:$0x1] %v18
  loop: start=0, step=1, limit=4
  $region2: #{cnn_d_forward.1} parent=0 // loop_pre_header
    _
  $region3: #{cnn_d_forward.1} parent=0 // loop_header
    %s21 = sphi 0, %s25
    %p22 = scmp.ge.s32.totalorder %s21, 4
    %s31 = sphi 0, %s33
    %s34 = sphi 0, %s31
    %s35 = sphi 0, %s34
    %s51 = sphi 0, %s35
    %s57 = sphi 0, %s59
    %s60 = sphi 0, %s57
    %s61 = sphi 0, %s60
    %s77 = sphi 0, %s61
    %s81 = sphi 0, %s81
    %s83 = sphi 0, %s81
    %s84 = sphi 0, %s83
    %s98 = sphi 0, %s84
    %s102 = sphi 0, %s102
    %s104 = sphi 0, %s102
    %s105 = sphi 0, %s104
    %s119 = sphi 0, %s105
    %s123 = sphi 0, %s123
    %s125 = sphi 0, %s123
    %s126 = sphi 0, %s125
    %s140 = sphi 0, %s126
    %s144 = sphi 0, %s144
    %s146 = sphi 0, %s144
    %s147 = sphi 0, %s146
    %s161 = sphi 0, %s147
    %s165 = sphi 0, %s165
    %s167 = sphi 0, %s165
    %s168 = sphi 0, %s167
    %s182 = sphi 0, %s168
    %s186 = sphi 0, %s186
    %s188 = sphi 0, %s186
    %s189 = sphi 0, %s188
    %s203 = sphi 0, %s189
    %s207 = sphi 0, %s207
    %s209 = sphi 0, %s207
    %s210 = sphi 0, %s209
    %s224 = sphi 0, %s210
    %s228 = sphi 0, %s228
    %s230 = sphi 0, %s228
    %s231 = sphi 0, %s230
    %s245 = sphi 0, %s231
    %s249 = sphi 0, %s249
    %s251 = sphi 0, %s249
    %s252 = sphi 0, %s251
    %s266 = sphi 0, %s252
    %s270 = sphi 0, %s270
    %s272 = sphi 0, %s270
    %s273 = sphi 0, %s272
    %s287 = sphi 0, %s273
    %s291 = sphi 0, %s291
    %s293 = sphi 0, %s291
    %s294 = sphi 0, %s293
    %s308 = sphi 0, %s294
    %s314 = sphi 0, %s316
    %s317 = sphi 0, %s314
    %s318 = sphi 0, %s317
    %s334 = sphi 0, %s318
  $region4: #{cnn_d_forward.1} parent=0 // loop_header_branch
    %24 = sbr.rel (%p22) target = $region8
  $region5: #{cnn_d_forward.1} parent=0 // loop_body
    %s26 = ssub.s32 %s21, 1
    %s27 = ssub.s32 %s21, 2
    %s28 = sadd.s32 %s21, 1
    %s29 = ssub.s32 %s21, %s28
    %p30 = scmp.eq.s32.totalorder %s29, 0
    %s32 = sadd.s32 %s31, 1
    %s33 = scalar_select %p30, %s31, %s32
    %p36 = pneg %p30
    %p37 = scmp.eq.s32.totalorder %s21, 1
    %p38 = por %p36, %p37
    %p39 = scmp.ne.s32.totalorder %s31, %s34
    %p40 = scmp.eq.s32.totalorder %s21, 0
    %p41 = por %p39, %p40
    %p42 = scmp.ne.s32.totalorder %s31, %s34
    %p43 = scmp.eq.s32.totalorder %s26, 1
    %p44 = por %p42, %p43
    %p45 = scmp.ne.s32.totalorder %s34, %s35
    %p46 = scmp.eq.s32.totalorder %s26, 0
    %p47 = por %p45, %p46
    %p48 = scmp.ne.s32.totalorder %s34, %s35
    %p49 = scmp.eq.s32.totalorder %s27, 1
    %p50 = por %p48, %p49
    %p52 = scmp.ne.s32.totalorder %s35, %s51
    %p53 = scmp.eq.s32.totalorder %s27, 0
    %p54 = por %p52, %p53
    %s55 = ssub.s32 %s21, %s28
    %p56 = scmp.eq.s32.totalorder %s55, 0
    %s58 = sadd.s32 %s57, 1
    %s59 = scalar_select %p56, %s57, %s58
    %p62 = pneg %p56
    %p63 = scmp.eq.s32.totalorder %s21, 1
    %p64 = por %p62, %p63
    %p65 = scmp.ne.s32.totalorder %s57, %s60
    %p66 = scmp.eq.s32.totalorder %s21, 0
    %p67 = por %p65, %p66
    %p68 = scmp.ne.s32.totalorder %s57, %s60
    %p69 = scmp.eq.s32.totalorder %s26, 1
    %p70 = por %p68, %p69
    %p71 = scmp.ne.s32.totalorder %s60, %s61
    %p72 = scmp.eq.s32.totalorder %s26, 0
    %p73 = por %p71, %p72
    %p74 = scmp.ne.s32.totalorder %s60, %s61
    %p75 = scmp.eq.s32.totalorder %s27, 1
    %p76 = por %p74, %p75
    %p78 = scmp.ne.s32.totalorder %s61, %s77
    %p79 = scmp.eq.s32.totalorder %s27, 0
    %p80 = por %p78, %p79
    %s82 = sadd.s32 %s81, 1
    %p85 = scmp.eq.s32.totalorder %s21, 1
    %p86 = scmp.ne.s32.totalorder %s81, %s83
    %p87 = scmp.eq.s32.totalorder %s21, 0
    %p88 = por %p86, %p87
    %p89 = scmp.ne.s32.totalorder %s81, %s83
    %p90 = scmp.eq.s32.totalorder %s26, 1
    %p91 = por %p89, %p90
    %p92 = scmp.ne.s32.totalorder %s83, %s84
    %p93 = scmp.eq.s32.totalorder %s26, 0
    %p94 = por %p92, %p93
    %p95 = scmp.ne.s32.totalorder %s83, %s84
    %p96 = scmp.eq.s32.totalorder %s27, 1
    %p97 = por %p95, %p96
    %p99 = scmp.ne.s32.totalorder %s84, %s98
    %p100 = scmp.eq.s32.totalorder %s27, 0
    %p101 = por %p99, %p100
    %s103 = sadd.s32 %s102, 1
    %p106 = scmp.eq.s32.totalorder %s21, 1
    %p107 = scmp.ne.s32.totalorder %s102, %s104
    %p108 = scmp.eq.s32.totalorder %s21, 0
    %p109 = por %p107, %p108
    %p110 = scmp.ne.s32.totalorder %s102, %s104
    %p111 = scmp.eq.s32.totalorder %s26, 1
    %p112 = por %p110, %p111
    %p113 = scmp.ne.s32.totalorder %s104, %s105
    %p114 = scmp.eq.s32.totalorder %s26, 0
    %p115 = por %p113, %p114
    %p116 = scmp.ne.s32.totalorder %s104, %s105
    %p117 = scmp.eq.s32.totalorder %s27, 1
    %p118 = por %p116, %p117
    %p120 = scmp.ne.s32.totalorder %s105, %s119
    %p121 = scmp.eq.s32.totalorder %s27, 0
    %p122 = por %p120, %p121
    %s124 = sadd.s32 %s123, 1
    %p127 = scmp.eq.s32.totalorder %s21, 1
    %p128 = scmp.ne.s32.totalorder %s123, %s125
    %p129 = scmp.eq.s32.totalorder %s21, 0
    %p130 = por %p128, %p129
    %p131 = scmp.ne.s32.totalorder %s123, %s125
    %p132 = scmp.eq.s32.totalorder %s26, 1
    %p133 = por %p131, %p132
    %p134 = scmp.ne.s32.totalorder %s125, %s126
    %p135 = scmp.eq.s32.totalorder %s26, 0
    %p136 = por %p134, %p135
    %p137 = scmp.ne.s32.totalorder %s125, %s126
    %p138 = scmp.eq.s32.totalorder %s27, 1
    %p139 = por %p137, %p138
    %p141 = scmp.ne.s32.totalorder %s126, %s140
    %p142 = scmp.eq.s32.totalorder %s27, 0
    %p143 = por %p141, %p142
    %s145 = sadd.s32 %s144, 1
    %p148 = scmp.eq.s32.totalorder %s21, 1
    %p149 = scmp.ne.s32.totalorder %s144, %s146
    %p150 = scmp.eq.s32.totalorder %s21, 0
    %p151 = por %p149, %p150
    %p152 = scmp.ne.s32.totalorder %s144, %s146
    %p153 = scmp.eq.s32.totalorder %s26, 1
    %p154 = por %p152, %p153
    %p155 = scmp.ne.s32.totalorder %s146, %s147
    %p156 = scmp.eq.s32.totalorder %s26, 0
    %p157 = por %p155, %p156
    %p158 = scmp.ne.s32.totalorder %s146, %s147
    %p159 = scmp.eq.s32.totalorder %s27, 1
    %p160 = por %p158, %p159
    %p162 = scmp.ne.s32.totalorder %s147, %s161
    %p163 = scmp.eq.s32.totalorder %s27, 0
    %p164 = por %p162, %p163
    %s166 = sadd.s32 %s165, 1
    %p169 = scmp.eq.s32.totalorder %s21, 1
    %p170 = scmp.ne.s32.totalorder %s165, %s167
    %p171 = scmp.eq.s32.totalorder %s21, 0
    %p172 = por %p170, %p171
    %p173 = scmp.ne.s32.totalorder %s165, %s167
    %p174 = scmp.eq.s32.totalorder %s26, 1
    %p175 = por %p173, %p174
    %p176 = scmp.ne.s32.totalorder %s167, %s168
    %p177 = scmp.eq.s32.totalorder %s26, 0
    %p178 = por %p176, %p177
    %p179 = scmp.ne.s32.totalorder %s167, %s168
    %p180 = scmp.eq.s32.totalorder %s27, 1
    %p181 = por %p179, %p180
    %p183 = scmp.ne.s32.totalorder %s168, %s182
    %p184 = scmp.eq.s32.totalorder %s27, 0
    %p185 = por %p183, %p184
    %s187 = sadd.s32 %s186, 1
    %p190 = scmp.eq.s32.totalorder %s21, 1
    %p191 = scmp.ne.s32.totalorder %s186, %s188
    %p192 = scmp.eq.s32.totalorder %s21, 0
    %p193 = por %p191, %p192
    %p194 = scmp.ne.s32.totalorder %s186, %s188
    %p195 = scmp.eq.s32.totalorder %s26, 1
    %p196 = por %p194, %p195
    %p197 = scmp.ne.s32.totalorder %s188, %s189
    %p198 = scmp.eq.s32.totalorder %s26, 0
    %p199 = por %p197, %p198
    %p200 = scmp.ne.s32.totalorder %s188, %s189
    %p201 = scmp.eq.s32.totalorder %s27, 1
    %p202 = por %p200, %p201
    %p204 = scmp.ne.s32.totalorder %s189, %s203
    %p205 = scmp.eq.s32.totalorder %s27, 0
    %p206 = por %p204, %p205
    %s208 = sadd.s32 %s207, 1
    %p211 = scmp.eq.s32.totalorder %s21, 1
    %p212 = scmp.ne.s32.totalorder %s207, %s209
    %p213 = scmp.eq.s32.totalorder %s21, 0
    %p214 = por %p212, %p213
    %p215 = scmp.ne.s32.totalorder %s207, %s209
    %p216 = scmp.eq.s32.totalorder %s26, 1
    %p217 = por %p215, %p216
    %p218 = scmp.ne.s32.totalorder %s209, %s210
    %p219 = scmp.eq.s32.totalorder %s26, 0
    %p220 = por %p218, %p219
    %p221 = scmp.ne.s32.totalorder %s209, %s210
    %p222 = scmp.eq.s32.totalorder %s27, 1
    %p223 = por %p221, %p222
    %p225 = scmp.ne.s32.totalorder %s210, %s224
    %p226 = scmp.eq.s32.totalorder %s27, 0
    %p227 = por %p225, %p226
    %s229 = sadd.s32 %s228, 1
    %p232 = scmp.eq.s32.totalorder %s21, 1
    %p233 = scmp.ne.s32.totalorder %s228, %s230
    %p234 = scmp.eq.s32.totalorder %s21, 0
    %p235 = por %p233, %p234
    %p236 = scmp.ne.s32.totalorder %s228, %s230
    %p237 = scmp.eq.s32.totalorder %s26, 1
    %p238 = por %p236, %p237
    %p239 = scmp.ne.s32.totalorder %s230, %s231
    %p240 = scmp.eq.s32.totalorder %s26, 0
    %p241 = por %p239, %p240
    %p242 = scmp.ne.s32.totalorder %s230, %s231
    %p243 = scmp.eq.s32.totalorder %s27, 1
    %p244 = por %p242, %p243
    %p246 = scmp.ne.s32.totalorder %s231, %s245
    %p247 = scmp.eq.s32.totalorder %s27, 0
    %p248 = por %p246, %p247
    %s250 = sadd.s32 %s249, 1
    %p253 = scmp.eq.s32.totalorder %s21, 1
    %p254 = scmp.ne.s32.totalorder %s249, %s251
    %p255 = scmp.eq.s32.totalorder %s21, 0
    %p256 = por %p254, %p255
    %p257 = scmp.ne.s32.totalorder %s249, %s251
    %p258 = scmp.eq.s32.totalorder %s26, 1
    %p259 = por %p257, %p258
    %p260 = scmp.ne.s32.totalorder %s251, %s252
    %p261 = scmp.eq.s32.totalorder %s26, 0
    %p262 = por %p260, %p261
    %p263 = scmp.ne.s32.totalorder %s251, %s252
    %p264 = scmp.eq.s32.totalorder %s27, 1
    %p265 = por %p263, %p264
    %p267 = scmp.ne.s32.totalorder %s252, %s266
    %p268 = scmp.eq.s32.totalorder %s27, 0
    %p269 = por %p267, %p268
    %s271 = sadd.s32 %s270, 1
    %p274 = scmp.eq.s32.totalorder %s21, 1
    %p275 = scmp.ne.s32.totalorder %s270, %s272
    %p276 = scmp.eq.s32.totalorder %s21, 0
    %p277 = por %p275, %p276
    %p278 = scmp.ne.s32.totalorder %s270, %s272
    %p279 = scmp.eq.s32.totalorder %s26, 1
    %p280 = por %p278, %p279
    %p281 = scmp.ne.s32.totalorder %s272, %s273
    %p282 = scmp.eq.s32.totalorder %s26, 0
    %p283 = por %p281, %p282
    %p284 = scmp.ne.s32.totalorder %s272, %s273
    %p285 = scmp.eq.s32.totalorder %s27, 1
    %p286 = por %p284, %p285
    %p288 = scmp.ne.s32.totalorder %s273, %s287
    %p289 = scmp.eq.s32.totalorder %s27, 0
    %p290 = por %p288, %p289
    %s292 = sadd.s32 %s291, 1
    %p295 = scmp.eq.s32.totalorder %s21, 1
    %p296 = scmp.ne.s32.totalorder %s291, %s293
    %p297 = scmp.eq.s32.totalorder %s21, 0
    %p298 = por %p296, %p297
    %p299 = scmp.ne.s32.totalorder %s291, %s293
    %p300 = scmp.eq.s32.totalorder %s26, 1
    %p301 = por %p299, %p300
    %p302 = scmp.ne.s32.totalorder %s293, %s294
    %p303 = scmp.eq.s32.totalorder %s26, 0
    %p304 = por %p302, %p303
    %p305 = scmp.ne.s32.totalorder %s293, %s294
    %p306 = scmp.eq.s32.totalorder %s27, 1
    %p307 = por %p305, %p306
    %p309 = scmp.ne.s32.totalorder %s294, %s308
    %p310 = scmp.eq.s32.totalorder %s27, 0
    %p311 = por %p309, %p310
    %s312 = ssub.s32 %s21, %s28
    %p313 = scmp.eq.s32.totalorder %s312, 0
    %s315 = sadd.s32 %s314, 1
    %s316 = scalar_select %p313, %s314, %s315
    %p319 = pneg %p313
    %p320 = scmp.eq.s32.totalorder %s21, 1
    %p321 = por %p319, %p320
    %p322 = scmp.ne.s32.totalorder %s314, %s317
    %p323 = scmp.eq.s32.totalorder %s21, 0
    %p324 = por %p322, %p323
    %p325 = scmp.ne.s32.totalorder %s314, %s317
    %p326 = scmp.eq.s32.totalorder %s26, 1
    %p327 = por %p325, %p326
    %p328 = scmp.ne.s32.totalorder %s317, %s318
    %p329 = scmp.eq.s32.totalorder %s26, 0
    %p330 = por %p328, %p329
    %p331 = scmp.ne.s32.totalorder %s317, %s318
    %p332 = scmp.eq.s32.totalorder %s27, 1
    %p333 = por %p331, %p332
    %p335 = scmp.ne.s32.totalorder %s318, %s334
    %p336 = scmp.eq.s32.totalorder %s27, 0
    %p337 = por %p335, %p336
    %p338 = scmp.le.s32.totalorder 1, %s21
    %p339 = scmp.lt.s32.totalorder %s21, 3
    %p340 = pnand %p338, %p339
    %p341 = pneg %p340
    // Predicated region
    $region9: #{cnn_d_forward.1} parent=5 // pred_check
      _
    $region10: #{cnn_d_forward.1} parent=5 // pred_check_branch
      %343 = sbr.rel (%p340) target = $region12
    $region11: #{cnn_d_forward.1} parent=5 // pred_region
      %s344 = ssub.s32 %s21, 1
      // Predicated region
      $region13: #{cnn_d_forward.1} parent=11 // pred_check
        %p345 = pneg %p94
      $region14: #{cnn_d_forward.1} parent=11 // pred_check_branch
        %347 = sbr.rel (%p345) target = $region16
      $region15: #{cnn_d_forward.1} parent=11 // pred_region
        _
      $region16: #{cnn_d_forward.1} parent=11 // pred_fallthru
        _
      // Predicated region
      $region17: #{cnn_d_forward.1} parent=11 // pred_check
        %p348 = pneg %p115
      $region18: #{cnn_d_forward.1} parent=11 // pred_check_branch
        %350 = sbr.rel (%p348) target = $region20
      $region19: #{cnn_d_forward.1} parent=11 // pred_region
        _
      $region20: #{cnn_d_forward.1} parent=11 // pred_fallthru
        _
      // Predicated region
      $region21: #{cnn_d_forward.1} parent=11 // pred_check
        %p351 = pneg %p136
      $region22: #{cnn_d_forward.1} parent=11 // pred_check_branch
        %353 = sbr.rel (%p351) target = $region24
      $region23: #{cnn_d_forward.1} parent=11 // pred_region
        _
      $region24: #{cnn_d_forward.1} parent=11 // pred_fallthru
        _
      // Predicated region
      $region25: #{cnn_d_forward.1} parent=11 // pred_check
        %p354 = pneg %p157
      $region26: #{cnn_d_forward.1} parent=11 // pred_check_branch
        %356 = sbr.rel (%p354) target = $region28
      $region27: #{cnn_d_forward.1} parent=11 // pred_region
        _
      $region28: #{cnn_d_forward.1} parent=11 // pred_fallthru
        _
      // Predicated region
      $region29: #{cnn_d_forward.1} parent=11 // pred_check
        %p357 = pneg %p178
      $region30: #{cnn_d_forward.1} parent=11 // pred_check_branch
        %359 = sbr.rel (%p357) target = $region32
      $region31: #{cnn_d_forward.1} parent=11 // pred_region
        _
      $region32: #{cnn_d_forward.1} parent=11 // pred_fallthru
        _
      // Predicated region
      $region33: #{cnn_d_forward.1} parent=11 // pred_check
        %p360 = pneg %p199
      $region34: #{cnn_d_forward.1} parent=11 // pred_check_branch
        %362 = sbr.rel (%p360) target = $region36
      $region35: #{cnn_d_forward.1} parent=11 // pred_region
        _
      $region36: #{cnn_d_forward.1} parent=11 // pred_fallthru
        _
      // Predicated region
      $region37: #{cnn_d_forward.1} parent=11 // pred_check
        %p363 = pneg %p220
      $region38: #{cnn_d_forward.1} parent=11 // pred_check_branch
        %365 = sbr.rel (%p363) target = $region40
      $region39: #{cnn_d_forward.1} parent=11 // pred_region
        _
      $region40: #{cnn_d_forward.1} parent=11 // pred_fallthru
        _
      // Predicated region
      $region41: #{cnn_d_forward.1} parent=11 // pred_check
        %p366 = pneg %p241
      $region42: #{cnn_d_forward.1} parent=11 // pred_check_branch
        %368 = sbr.rel (%p366) target = $region44
      $region43: #{cnn_d_forward.1} parent=11 // pred_region
        _
      $region44: #{cnn_d_forward.1} parent=11 // pred_fallthru
        _
      // Predicated region
      $region45: #{cnn_d_forward.1} parent=11 // pred_check
        %p369 = pneg %p262
      $region46: #{cnn_d_forward.1} parent=11 // pred_check_branch
        %371 = sbr.rel (%p369) target = $region48
      $region47: #{cnn_d_forward.1} parent=11 // pred_region
        _
      $region48: #{cnn_d_forward.1} parent=11 // pred_fallthru
        _
      // Predicated region
      $region49: #{cnn_d_forward.1} parent=11 // pred_check
        %p372 = pneg %p283
      $region50: #{cnn_d_forward.1} parent=11 // pred_check_branch
        %374 = sbr.rel (%p372) target = $region52
      $region51: #{cnn_d_forward.1} parent=11 // pred_region
        _
      $region52: #{cnn_d_forward.1} parent=11 // pred_fallthru
        _
      // Predicated region
      $region53: #{cnn_d_forward.1} parent=11 // pred_check
        %p375 = pneg %p304
      $region54: #{cnn_d_forward.1} parent=11 // pred_check_branch
        %377 = sbr.rel (%p375) target = $region56
      $region55: #{cnn_d_forward.1} parent=11 // pred_region
        _
      $region56: #{cnn_d_forward.1} parent=11 // pred_fallthru
        _
    $region12: #{cnn_d_forward.1} parent=5 // pred_fallthru
      _
    %p378 = scmp.lt.s32.totalorder %s21, 2
    // Predicated region
    $region57: #{cnn_d_forward.1} parent=5 // pred_check
      %p379 = pneg %p378
    $region58: #{cnn_d_forward.1} parent=5 // pred_check_branch
      %381 = sbr.rel (%p379) target = $region60
    $region59: #{cnn_d_forward.1} parent=5 // pred_region
      // Predicated region
      $region61: #{cnn_d_forward.1} parent=59 // pred_check
        %p382 = pneg %p41
      $region62: #{cnn_d_forward.1} parent=59 // pred_check_branch
        %384 = sbr.rel (%p382) target = $region64
      $region63: #{cnn_d_forward.1} parent=59 // pred_region
        %p385 = scmp.lt.s32.totalorder %s21, 1
        %s386 = scalar_select %p385, %s21, 1
        %s387 = smul.addr %s386, 8
        %s388 = smul.addr %s387, 8
        %s389 = scalar_lea.vmem %s0, %s388
      $region64: #{cnn_d_forward.1} parent=59 // pred_fallthru
        _
      // Predicated region
      $region65: #{cnn_d_forward.1} parent=59 // pred_check
        %p390 = pneg %p67
      $region66: #{cnn_d_forward.1} parent=59 // pred_check_branch
        %392 = sbr.rel (%p390) target = $region68
      $region67: #{cnn_d_forward.1} parent=59 // pred_region
        %p393 = scmp.lt.s32.totalorder %s21, 1
        %s394 = scalar_select %p393, %s21, 1
        %s395 = smul.addr %s394, 2
        %s396 = scalar_lea.vmem %s1, %s395
      $region68: #{cnn_d_forward.1} parent=59 // pred_fallthru
        _
    $region60: #{cnn_d_forward.1} parent=5 // pred_fallthru
      _
    %p397 = scmp.le.s32.totalorder 1, %s21
    %p398 = scmp.lt.s32.totalorder %s21, 3
    %p399 = pnand %p397, %p398
    %p400 = pneg %p399
    // Predicated region
    $region69: #{cnn_d_forward.1} parent=5 // pred_check
      _
    $region70: #{cnn_d_forward.1} parent=5 // pred_check_branch
      %402 = sbr.rel (%p399) target = $region72
    $region71: #{cnn_d_forward.1} parent=5 // pred_region
      %s403 = ssub.s32 %s21, 1
      %p404 = scmp.lt.s32.totalorder %s26, 1
      %s405 = scalar_select %p404, %s26, 1
      %s406 = smul.addr %s405, 8
      %s407 = smul.addr %s406, 8
      %s408 = scalar_lea.vmem %s0, %s407
      %p409 = pneg %p47
      %p410 = pneg %p44
      %p411 = scmp.lt.s32.totalorder %s26, 1
      %s412 = scalar_select %p411, %s26, 1
      %s413 = smul.addr %s412, 2
      %s414 = scalar_lea.vmem %s1, %s413
      %p415 = pneg %p73
      %p416 = pneg %p70
      %p417 = pneg %p94
      %p418 = pneg %p91
      %p419 = pneg %p115
      %p420 = pneg %p112
      %p421 = pneg %p136
      %p422 = pneg %p133
      %p423 = pneg %p157
      %p424 = pneg %p154
      %p425 = pneg %p178
      %p426 = pneg %p175
      %p427 = pneg %p199
      %p428 = pneg %p196
      %p429 = pneg %p220
      %p430 = pneg %p217
      %p431 = pneg %p241
      %p432 = pneg %p238
      %p433 = pneg %p262
      %p434 = pneg %p259
      %p435 = pneg %p283
      %p436 = pneg %p280
      %p437 = pneg %p304
      %p438 = pneg %p301
      %p439 = pneg %p330
      %p440 = pneg %p327
      %p441 = scmp.lt.s32.totalorder %s26, 1
      %s442 = scalar_select %p441, %s26, 1
      %s443 = scalar_lea.vmem %s13, %s442
      %p444 = scmp.lt.s32.totalorder %s26, 1
      %s445 = scalar_select %p444, %s26, 1
      %s446 = smul.addr %s445, 8
      %s447 = smul.addr %s446, 8
      %s448 = scalar_lea.vmem %s0, %s447
      %p449 = scmp.lt.s32.totalorder %s26, 1
      %s450 = scalar_select %p449, %s26, 1
      %s451 = smul.addr %s450, 2
      %s452 = scalar_lea.vmem %s1, %s451
      %p453 = scmp.lt.s32.totalorder %s26, 1
      %s454 = scalar_select %p453, %s26, 1
      %s455 = scalar_lea.vmem %s13, %s454
      %v457 = vld [vmem:[%s448] sm:$0xff]
      %v458 = vld [vmem:[%s448 + $0x8] sm:$0xff]
      %v459 = vld [vmem:[%s448 + $0x10] sm:$0xff]
      %v460 = vld [vmem:[%s448 + $0x18] sm:$0xff]
      %v461 = vld [vmem:[%s448 + $0x20] sm:$0xff]
      %v462 = vld [vmem:[%s448 + $0x28] sm:$0xff]
      %v463 = vld [vmem:[%s448 + $0x30] sm:$0xff]
      %v464 = vld [vmem:[%s448 + $0x38] sm:$0xff]
      %v465 = vld [vmem:[%s2] sm:$0xff]
      %v466 = vld [vmem:[%s2 + $0x8] sm:$0x1]
      %468 = vset.pattern.permute.xlu0 0
      %469 = vperm.xlu0 %468, %v457
      %v470 = vpop.permute.xlu0 %469
      %473 = vset.pattern.permute.xlu0 0
      %474 = vperm.xlu0 %473, %v458
      %v475 = vpop.permute.xlu0 %474
      %478 = vset.pattern.permute.xlu0 0
      %479 = vperm.xlu0 %478, %v459
      %v480 = vpop.permute.xlu0 %479
      %483 = vset.pattern.permute.xlu0 0
      %484 = vperm.xlu0 %483, %v460
      %v485 = vpop.permute.xlu0 %484
      %488 = vset.pattern.permute.xlu0 0
      %489 = vperm.xlu0 %488, %v461
      %v490 = vpop.permute.xlu0 %489
      %493 = vset.pattern.permute.xlu0 0
      %494 = vperm.xlu0 %493, %v462
      %v495 = vpop.permute.xlu0 %494
      %498 = vset.pattern.permute.xlu0 0
      %499 = vperm.xlu0 %498, %v463
      %v500 = vpop.permute.xlu0 %499
      %503 = vset.pattern.permute.xlu0 0
      %504 = vperm.xlu0 %503, %v464
      %v505 = vpop.permute.xlu0 %504
      %v507 = vlaneseq
      %v508 = vshrl.u32 %v507, 7
      %v509 = vsub.s32 0, %v508
      %v510 = vrot.slane %v465, %v509
      %v511 = vmul.f32 %v470, %v510
      %v512 = vmul.f32 %v475, %v510
      %v513 = vmul.f32 %v480, %v510
      %v514 = vmul.f32 %v485, %v510
      %v515 = vmul.f32 %v490, %v510
      %v516 = vmul.f32 %v495, %v510
      %v517 = vmul.f32 %v500, %v510
      %v518 = vmul.f32 %v505, %v510
      %v519 = vadd.f32 %v511, 0.0
      %v520 = vadd.f32 %v512, 0.0
      %v521 = vadd.f32 %v513, 0.0
      %v522 = vadd.f32 %v514, 0.0
      %v523 = vadd.f32 %v515, 0.0
      %v524 = vadd.f32 %v516, 0.0
      %v525 = vadd.f32 %v517, 0.0
      %v526 = vadd.f32 %v518, 0.0
      %527 = vset.pattern.permute.xlu0 1
      %528 = vperm.xlu0 %527, %v457
      %v529 = vpop.permute.xlu0 %528
      %531 = vset.pattern.permute.xlu0 1
      %532 = vperm.xlu0 %531, %v458
      %v533 = vpop.permute.xlu0 %532
      %535 = vset.pattern.permute.xlu0 1
      %536 = vperm.xlu0 %535, %v459
      %v537 = vpop.permute.xlu0 %536
      %539 = vset.pattern.permute.xlu0 1
      %540 = vperm.xlu0 %539, %v460
      %v541 = vpop.permute.xlu0 %540
      %543 = vset.pattern.permute.xlu0 1
      %544 = vperm.xlu0 %543, %v461
      %v545 = vpop.permute.xlu0 %544
      %547 = vset.pattern.permute.xlu0 1
      %548 = vperm.xlu0 %547, %v462
      %v549 = vpop.permute.xlu0 %548
      %551 = vset.pattern.permute.xlu0 1
      %552 = vperm.xlu0 %551, %v463
      %v553 = vpop.permute.xlu0 %552
      %555 = vset.pattern.permute.xlu0 1
      %556 = vperm.xlu0 %555, %v464
      %v557 = vpop.permute.xlu0 %556
      %v559 = vlaneseq
      %v560 = vshrl.u32 %v559, 7
      %v561 = vsub.s32 1, %v560
      %v562 = vrot.slane %v465, %v561
      %v563 = vmul.f32 %v529, %v562
      %v564 = vmul.f32 %v533, %v562
      %v565 = vmul.f32 %v537, %v562
      %v566 = vmul.f32 %v541, %v562
      %v567 = vmul.f32 %v545, %v562
      %v568 = vmul.f32 %v549, %v562
      %v569 = vmul.f32 %v553, %v562
      %v570 = vmul.f32 %v557, %v562
      %v571 = vadd.f32 %v519, %v563
      %v572 = vadd.f32 %v520, %v564
      %v573 = vadd.f32 %v521, %v565
      %v574 = vadd.f32 %v522, %v566
      %v575 = vadd.f32 %v523, %v567
      %v576 = vadd.f32 %v524, %v568
      %v577 = vadd.f32 %v525, %v569
      %v578 = vadd.f32 %v526, %v570
      %579 = vset.pattern.permute.xlu0 2
      %580 = vperm.xlu0 %579, %v457
      %v581 = vpop.permute.xlu0 %580
      %583 = vset.pattern.permute.xlu0 2
      %584 = vperm.xlu0 %583, %v458
      %v585 = vpop.permute.xlu0 %584
      %587 = vset.pattern.permute.xlu0 2
      %588 = vperm.xlu0 %587, %v459
      %v589 = vpop.permute.xlu0 %588
      %591 = vset.pattern.permute.xlu0 2
      %592 = vperm.xlu0 %591, %v460
      %v593 = vpop.permute.xlu0 %592
      %595 = vset.pattern.permute.xlu0 2
      %596 = vperm.xlu0 %595, %v461
      %v597 = vpop.permute.xlu0 %596
      %599 = vset.pattern.permute.xlu0 2
      %600 = vperm.xlu0 %599, %v462
      %v601 = vpop.permute.xlu0 %600
      %603 = vset.pattern.permute.xlu0 2
      %604 = vperm.xlu0 %603, %v463
      %v605 = vpop.permute.xlu0 %604
      %607 = vset.pattern.permute.xlu0 2
      %608 = vperm.xlu0 %607, %v464
      %v609 = vpop.permute.xlu0 %608
      %v611 = vlaneseq
      %v612 = vshrl.u32 %v611, 7
      %v613 = vsub.s32 2, %v612
      %v614 = vrot.slane %v465, %v613
      %v615 = vmul.f32 %v581, %v614
      %v616 = vmul.f32 %v585, %v614
      %v617 = vmul.f32 %v589, %v614
      %v618 = vmul.f32 %v593, %v614
      %v619 = vmul.f32 %v597, %v614
      %v620 = vmul.f32 %v601, %v614
      %v621 = vmul.f32 %v605, %v614
      %v622 = vmul.f32 %v609, %v614
      %v623 = vadd.f32 %v571, %v615
      %v624 = vadd.f32 %v572, %v616
      %v625 = vadd.f32 %v573, %v617
      %v626 = vadd.f32 %v574, %v618
      %v627 = vadd.f32 %v575, %v619
      %v628 = vadd.f32 %v576, %v620
      %v629 = vadd.f32 %v577, %v621
      %v630 = vadd.f32 %v578, %v622
      %631 = vset.pattern.permute.xlu0 3
      %632 = vperm.xlu0 %631, %v457
      %v633 = vpop.permute.xlu0 %632
      %635 = vset.pattern.permute.xlu0 3
      %636 = vperm.xlu0 %635, %v458
      %v637 = vpop.permute.xlu0 %636
      %639 = vset.pattern.permute.xlu0 3
      %640 = vperm.xlu0 %639, %v459
      %v641 = vpop.permute.xlu0 %640
      %643 = vset.pattern.permute.xlu0 3
      %644 = vperm.xlu0 %643, %v460
      %v645 = vpop.permute.xlu0 %644
      %647 = vset.pattern.permute.xlu0 3
      %648 = vperm.xlu0 %647, %v461
      %v649 = vpop.permute.xlu0 %648
      %651 = vset.pattern.permute.xlu0 3
      %652 = vperm.xlu0 %651, %v462
      %v653 = vpop.permute.xlu0 %652
      %655 = vset.pattern.permute.xlu0 3
      %656 = vperm.xlu0 %655, %v463
      %v657 = vpop.permute.xlu0 %656
      %659 = vset.pattern.permute.xlu0 3
      %660 = vperm.xlu0 %659, %v464
      %v661 = vpop.permute.xlu0 %660
      %v663 = vlaneseq
      %v664 = vshrl.u32 %v663, 7
      %v665 = vsub.s32 3, %v664
      %v666 = vrot.slane %v465, %v665
      %v667 = vmul.f32 %v633, %v666
      %v668 = vmul.f32 %v637, %v666
      %v669 = vmul.f32 %v641, %v666
      %v670 = vmul.f32 %v645, %v666
      %v671 = vmul.f32 %v649, %v666
      %v672 = vmul.f32 %v653, %v666
      %v673 = vmul.f32 %v657, %v666
      %v674 = vmul.f32 %v661, %v666
      %v675 = vadd.f32 %v623, %v667
      %v676 = vadd.f32 %v624, %v668
      %v677 = vadd.f32 %v625, %v669
      %v678 = vadd.f32 %v626, %v670
      %v679 = vadd.f32 %v627, %v671
      %v680 = vadd.f32 %v628, %v672
      %v681 = vadd.f32 %v629, %v673
      %v682 = vadd.f32 %v630, %v674
      %683 = vset.pattern.permute.xlu0 4
      %684 = vperm.xlu0 %683, %v457
      %v685 = vpop.permute.xlu0 %684
      %687 = vset.pattern.permute.xlu0 4
      %688 = vperm.xlu0 %687, %v458
      %v689 = vpop.permute.xlu0 %688
      %691 = vset.pattern.permute.xlu0 4
      %692 = vperm.xlu0 %691, %v459
      %v693 = vpop.permute.xlu0 %692
      %695 = vset.pattern.permute.xlu0 4
      %696 = vperm.xlu0 %695, %v460
      %v697 = vpop.permute.xlu0 %696
      %699 = vset.pattern.permute.xlu0 4
      %700 = vperm.xlu0 %699, %v461
      %v701 = vpop.permute.xlu0 %700
      %703 = vset.pattern.permute.xlu0 4
      %704 = vperm.xlu0 %703, %v462
      %v705 = vpop.permute.xlu0 %704
      %707 = vset.pattern.permute.xlu0 4
      %708 = vperm.xlu0 %707, %v463
      %v709 = vpop.permute.xlu0 %708
      %711 = vset.pattern.permute.xlu0 4
      %712 = vperm.xlu0 %711, %v464
      %v713 = vpop.permute.xlu0 %712
      %v715 = vlaneseq
      %v716 = vshrl.u32 %v715, 7
      %v717 = vsub.s32 4, %v716
      %v718 = vrot.slane %v465, %v717
      %v719 = vmul.f32 %v685, %v718
      %v720 = vmul.f32 %v689, %v718
      %v721 = vmul.f32 %v693, %v718
      %v722 = vmul.f32 %v697, %v718
      %v723 = vmul.f32 %v701, %v718
      %v724 = vmul.f32 %v705, %v718
      %v725 = vmul.f32 %v709, %v718
      %v726 = vmul.f32 %v713, %v718
      %v727 = vadd.f32 %v675, %v719
      %v728 = vadd.f32 %v676, %v720
      %v729 = vadd.f32 %v677, %v721
      %v730 = vadd.f32 %v678, %v722
      %v731 = vadd.f32 %v679, %v723
      %v732 = vadd.f32 %v680, %v724
      %v733 = vadd.f32 %v681, %v725
      %v734 = vadd.f32 %v682, %v726
      %735 = vset.pattern.permute.xlu0 5
      %736 = vperm.xlu0 %735, %v457
      %v737 = vpop.permute.xlu0 %736
      %739 = vset.pattern.permute.xlu0 5
      %740 = vperm.xlu0 %739, %v458
      %v741 = vpop.permute.xlu0 %740
      %743 = vset.pattern.permute.xlu0 5
      %744 = vperm.xlu0 %743, %v459
      %v745 = vpop.permute.xlu0 %744
      %747 = vset.pattern.permute.xlu0 5
      %748 = vperm.xlu0 %747, %v460
      %v749 = vpop.permute.xlu0 %748
      %751 = vset.pattern.permute.xlu0 5
      %752 = vperm.xlu0 %751, %v461
      %v753 = vpop.permute.xlu0 %752
      %755 = vset.pattern.permute.xlu0 5
      %756 = vperm.xlu0 %755, %v462
      %v757 = vpop.permute.xlu0 %756
      %759 = vset.pattern.permute.xlu0 5
      %760 = vperm.xlu0 %759, %v463
      %v761 = vpop.permute.xlu0 %760
      %763 = vset.pattern.permute.xlu0 5
      %764 = vperm.xlu0 %763, %v464
      %v765 = vpop.permute.xlu0 %764
      %v767 = vlaneseq
      %v768 = vshrl.u32 %v767, 7
      %v769 = vsub.s32 5, %v768
      %v770 = vrot.slane %v465, %v769
      %v771 = vmul.f32 %v737, %v770
      %v772 = vmul.f32 %v741, %v770
      %v773 = vmul.f32 %v745, %v770
      %v774 = vmul.f32 %v749, %v770
      %v775 = vmul.f32 %v753, %v770
      %v776 = vmul.f32 %v757, %v770
      %v777 = vmul.f32 %v761, %v770
      %v778 = vmul.f32 %v765, %v770
      %v779 = vadd.f32 %v727, %v771
      %v780 = vadd.f32 %v728, %v772
      %v781 = vadd.f32 %v729, %v773
      %v782 = vadd.f32 %v730, %v774
      %v783 = vadd.f32 %v731, %v775
      %v784 = vadd.f32 %v732, %v776
      %v785 = vadd.f32 %v733, %v777
      %v786 = vadd.f32 %v734, %v778
      %787 = vset.pattern.permute.xlu0 6
      %788 = vperm.xlu0 %787, %v457
      %v789 = vpop.permute.xlu0 %788
      %791 = vset.pattern.permute.xlu0 6
      %792 = vperm.xlu0 %791, %v458
      %v793 = vpop.permute.xlu0 %792
      %795 = vset.pattern.permute.xlu0 6
      %796 = vperm.xlu0 %795, %v459
      %v797 = vpop.permute.xlu0 %796
      %799 = vset.pattern.permute.xlu0 6
      %800 = vperm.xlu0 %799, %v460
      %v801 = vpop.permute.xlu0 %800
      %803 = vset.pattern.permute.xlu0 6
      %804 = vperm.xlu0 %803, %v461
      %v805 = vpop.permute.xlu0 %804
      %807 = vset.pattern.permute.xlu0 6
      %808 = vperm.xlu0 %807, %v462
      %v809 = vpop.permute.xlu0 %808
      %811 = vset.pattern.permute.xlu0 6
      %812 = vperm.xlu0 %811, %v463
      %v813 = vpop.permute.xlu0 %812
      %815 = vset.pattern.permute.xlu0 6
      %816 = vperm.xlu0 %815, %v464
      %v817 = vpop.permute.xlu0 %816
      %v819 = vlaneseq
      %v820 = vshrl.u32 %v819, 7
      %v821 = vsub.s32 6, %v820
      %v822 = vrot.slane %v465, %v821
      %v823 = vmul.f32 %v789, %v822
      %v824 = vmul.f32 %v793, %v822
      %v825 = vmul.f32 %v797, %v822
      %v826 = vmul.f32 %v801, %v822
      %v827 = vmul.f32 %v805, %v822
      %v828 = vmul.f32 %v809, %v822
      %v829 = vmul.f32 %v813, %v822
      %v830 = vmul.f32 %v817, %v822
      %v831 = vadd.f32 %v779, %v823
      %v832 = vadd.f32 %v780, %v824
      %v833 = vadd.f32 %v781, %v825
      %v834 = vadd.f32 %v782, %v826
      %v835 = vadd.f32 %v783, %v827
      %v836 = vadd.f32 %v784, %v828
      %v837 = vadd.f32 %v785, %v829
      %v838 = vadd.f32 %v786, %v830
      %839 = vset.pattern.permute.xlu0 7
      %840 = vperm.xlu0 %839, %v457
      %v841 = vpop.permute.xlu0 %840
      %843 = vset.pattern.permute.xlu0 7
      %844 = vperm.xlu0 %843, %v458
      %v845 = vpop.permute.xlu0 %844
      %847 = vset.pattern.permute.xlu0 7
      %848 = vperm.xlu0 %847, %v459
      %v849 = vpop.permute.xlu0 %848
      %851 = vset.pattern.permute.xlu0 7
      %852 = vperm.xlu0 %851, %v460
      %v853 = vpop.permute.xlu0 %852
      %855 = vset.pattern.permute.xlu0 7
      %856 = vperm.xlu0 %855, %v461
      %v857 = vpop.permute.xlu0 %856
      %859 = vset.pattern.permute.xlu0 7
      %860 = vperm.xlu0 %859, %v462
      %v861 = vpop.permute.xlu0 %860
      %863 = vset.pattern.permute.xlu0 7
      %864 = vperm.xlu0 %863, %v463
      %v865 = vpop.permute.xlu0 %864
      %867 = vset.pattern.permute.xlu0 7
      %868 = vperm.xlu0 %867, %v464
      %v869 = vpop.permute.xlu0 %868
      %v871 = vlaneseq
      %v872 = vshrl.u32 %v871, 7
      %v873 = vsub.s32 7, %v872
      %v874 = vrot.slane %v465, %v873
      %v875 = vmul.f32 %v841, %v874
      %v876 = vmul.f32 %v845, %v874
      %v877 = vmul.f32 %v849, %v874
      %v878 = vmul.f32 %v853, %v874
      %v879 = vmul.f32 %v857, %v874
      %v880 = vmul.f32 %v861, %v874
      %v881 = vmul.f32 %v865, %v874
      %v882 = vmul.f32 %v869, %v874
      %v883 = vadd.f32 %v831, %v875
      %v884 = vadd.f32 %v832, %v876
      %v885 = vadd.f32 %v833, %v877
      %v886 = vadd.f32 %v834, %v878
      %v887 = vadd.f32 %v835, %v879
      %v888 = vadd.f32 %v836, %v880
      %v889 = vadd.f32 %v837, %v881
      %v890 = vadd.f32 %v838, %v882
      %891 = vset.pattern.permute.xlu0 8
      %892 = vperm.xlu0 %891, %v457
      %v893 = vpop.permute.xlu0 %892
      %895 = vset.pattern.permute.xlu0 8
      %896 = vperm.xlu0 %895, %v458
      %v897 = vpop.permute.xlu0 %896
      %899 = vset.pattern.permute.xlu0 8
      %900 = vperm.xlu0 %899, %v459
      %v901 = vpop.permute.xlu0 %900
      %903 = vset.pattern.permute.xlu0 8
      %904 = vperm.xlu0 %903, %v460
      %v905 = vpop.permute.xlu0 %904
      %907 = vset.pattern.permute.xlu0 8
      %908 = vperm.xlu0 %907, %v461
      %v909 = vpop.permute.xlu0 %908
      %911 = vset.pattern.permute.xlu0 8
      %912 = vperm.xlu0 %911, %v462
      %v913 = vpop.permute.xlu0 %912
      %915 = vset.pattern.permute.xlu0 8
      %916 = vperm.xlu0 %915, %v463
      %v917 = vpop.permute.xlu0 %916
      %919 = vset.pattern.permute.xlu0 8
      %920 = vperm.xlu0 %919, %v464
      %v921 = vpop.permute.xlu0 %920
      %v923 = vlaneseq
      %v924 = vshrl.u32 %v923, 7
      %v925 = vsub.s32 0, %v924
      %v926 = vrot.slane %v466, %v925
      %v927 = vmul.f32 %v893, %v926
      %v928 = vmul.f32 %v897, %v926
      %v929 = vmul.f32 %v901, %v926
      %v930 = vmul.f32 %v905, %v926
      %v931 = vmul.f32 %v909, %v926
      %v932 = vmul.f32 %v913, %v926
      %v933 = vmul.f32 %v917, %v926
      %v934 = vmul.f32 %v921, %v926
      %v935 = vadd.f32 %v883, %v927
      %v936 = vadd.f32 %v884, %v928
      %v937 = vadd.f32 %v885, %v929
      %v938 = vadd.f32 %v886, %v930
      %v939 = vadd.f32 %v887, %v931
      %v940 = vadd.f32 %v888, %v932
      %v941 = vadd.f32 %v889, %v933
      %v942 = vadd.f32 %v890, %v934
      %v943 = vld [vmem:[%s3] sm:$0x1]
      %v945 = vlaneseq
      %v946 = vshrl.u32 %v945, 7
      %v947 = vsub.s32 0, %v946
      %v948 = vrot.slane %v943, %v947
      %v950 = vadd.f32 %v935, %v948
      %v951 = vadd.f32 %v936, %v948
      %v952 = vadd.f32 %v937, %v948
      %v953 = vadd.f32 %v938, %v948
      %v954 = vadd.f32 %v939, %v948
      %v955 = vadd.f32 %v940, %v948
      %v956 = vadd.f32 %v941, %v948
      %v957 = vadd.f32 %v942, %v948
      %vm958 = vcmp.ge.f32.partialorder %v950, 0.0
      %vm959 = vcmp.ge.f32.partialorder %v951, 0.0
      %vm960 = vcmp.ge.f32.partialorder %v952, 0.0
      %vm961 = vcmp.ge.f32.partialorder %v953, 0.0
      %vm962 = vcmp.ge.f32.partialorder %v954, 0.0
      %vm963 = vcmp.ge.f32.partialorder %v955, 0.0
      %vm964 = vcmp.ge.f32.partialorder %v956, 0.0
      %vm965 = vcmp.ge.f32.partialorder %v957, 0.0
      %v966 = vmul.f32 %v950, 0.01
      %v967 = vmul.f32 %v951, 0.01
      %v968 = vmul.f32 %v952, 0.01
      %v969 = vmul.f32 %v953, 0.01
      %v970 = vmul.f32 %v954, 0.01
      %v971 = vmul.f32 %v955, 0.01
      %v972 = vmul.f32 %v956, 0.01
      %v973 = vmul.f32 %v957, 0.01
      %v974 = vsel %vm958, %v950, %v966
      %v975 = vsel %vm959, %v951, %v967
      %v976 = vsel %vm960, %v952, %v968
      %v977 = vsel %vm961, %v953, %v969
      %v978 = vsel %vm962, %v954, %v970
      %v979 = vsel %vm963, %v955, %v971
      %v980 = vsel %vm964, %v956, %v972
      %v981 = vsel %vm965, %v957, %v973
      %v982 = vpack.c.bf16 %v975, %v974
      %v983 = vpack.c.bf16 %v977, %v976
      %v984 = vpack.c.bf16 %v979, %v978
      %v985 = vpack.c.bf16 %v981, %v980
      %v986 = vld [vmem:[%s4] sm:$0xf]
      %v987 = vld [vmem:[%s4 + $0x4] sm:$0xf]
      %v988 = vld [vmem:[%s4 + $0x8] sm:$0xf]
      %v989 = vld [vmem:[%s4 + $0xc] sm:$0xf]
      %v990 = vld [vmem:[%s4 + $0x10] sm:$0xf]
      %v991 = vld [vmem:[%s4 + $0x14] sm:$0xf]
      %v992 = vld [vmem:[%s4 + $0x18] sm:$0xf]
      %v993 = vld [vmem:[%s4 + $0x1c] sm:$0xf]
      %v994 = vld [vmem:[%s4 + $0x20] sm:$0xf]
      %v995 = vld [vmem:[%s4 + $0x24] sm:$0xf]
      %v996 = vld [vmem:[%s4 + $0x28] sm:$0xf]
      %v997 = vld [vmem:[%s4 + $0x2c] sm:$0xf]
      %v998 = vld [vmem:[%s4 + $0x30] sm:$0xf]
      %v999 = vld [vmem:[%s4 + $0x34] sm:$0xf]
      %v1000 = vld [vmem:[%s4 + $0x38] sm:$0xf]
      %v1001 = vld [vmem:[%s4 + $0x3c] sm:$0xf]
      %v1002 = vld [vmem:[%s4 + $0x40] sm:$0xf]
      %v1003 = vld [vmem:[%s4 + $0x44] sm:$0xf]
      %v1022 = vunpack.c.l.b16 %v986
      %v1023 = vunpack.c.l.b16 %v987
      %v1024 = vunpack.c.l.b16 %v988
      %v1025 = vunpack.c.l.b16 %v989
      %v1026 = vunpack.c.l.b16 %v990
      %v1027 = vunpack.c.l.b16 %v991
      %v1028 = vunpack.c.l.b16 %v992
      %v1029 = vunpack.c.l.b16 %v993
      %v1030 = vunpack.c.l.b16 %v994
      %v1031 = vunpack.c.l.b16 %v995
      %v1032 = vunpack.c.l.b16 %v996
      %v1033 = vunpack.c.l.b16 %v997
      %v1034 = vunpack.c.l.b16 %v998
      %v1035 = vunpack.c.l.b16 %v999
      %v1036 = vunpack.c.l.b16 %v1000
      %v1037 = vunpack.c.l.b16 %v1001
      %v1038 = vunpack.c.l.b16 %v1002
      %v1039 = vunpack.c.l.b16 %v1003
      %v1040 = vpack.c.b16 %v1023, %v1022
      %v1041 = vpack.c.b16 %v1025, %v1024
      %v1042 = vpack.c.b16 %v1027, %v1026
      %v1043 = vpack.c.b16 %v1029, %v1028
      %v1044 = vpack.c.b16 %v1031, %v1030
      %v1045 = vpack.c.b16 %v1033, %v1032
      %v1046 = vpack.c.b16 %v1035, %v1034
      %v1047 = vpack.c.b16 %v1037, %v1036
      %v1048 = vpack.c.b16 %v1039, %v1038
      %vm1049 = vcmask 523264
      %v1051 = vsel %vm1049, %v1040, 0
      %v1054 = vsel %vm1049, %v1041, 0
      %v1057 = vsel %vm1049, %v1042, 0
      %v1060 = vsel %vm1049, %v1043, 0
      %v1063 = vsel %vm1049, %v1044, 0
      %v1066 = vsel %vm1049, %v1045, 0
      %v1069 = vsel %vm1049, %v1046, 0
      %v1072 = vsel %vm1049, %v1047, 0
      %v1075 = vsel %vm1049, %v1048, 0
      %1077 = vmatprep.subr.bf16.mxu0 0
      %1078 = vmatpush1.bf16.msra.mxu0 %v982
      %1079 = vmatprep.subr.bf16.mxu0 0
      %1080 = vmatpush1.bf16.msra.mxu0 %v983
      %1081 = vmatprep.subr.bf16.mxu0 0
      %1082 = vmatpush1.bf16.msra.mxu0 %v984
      %1083 = vmatprep.subr.bf16.mxu0 0
      %1084 = vmatpush1.bf16.msra.mxu0 %v985
      %1085 = vmatprep.subr.bf16.mxu0 0
      %1086 = vmatpush1.bf16.msra.mxu0 0
      %1087 = vmatprep.subr.bf16.mxu0 0
      %1088 = vmatpush1.bf16.msra.mxu0 0
      %1089 = vmatprep.subr.bf16.mxu0 0
      %1090 = vmatpush1.bf16.msra.mxu0 0
      %1091 = vmatprep.subr.bf16.mxu0 0
      %1092 = vmatpush1.bf16.msra.mxu0 0
      %1093 = vmatprep.subr.bf16.mxu0 0
      %1094 = vmatpush1.bf16.msra.mxu0 0
      %1095 = vmatprep.subr.bf16.mxu0 0
      %1096 = vmatpush1.bf16.msra.mxu0 0
      %1097 = vmatprep.subr.bf16.mxu0 0
      %1098 = vmatpush1.bf16.msra.mxu0 0
      %1099 = vmatprep.subr.bf16.mxu0 0
      %1100 = vmatpush1.bf16.msra.mxu0 0
      %1101 = vmatprep.subr.bf16.mxu0 0
      %1102 = vmatpush1.bf16.msra.mxu0 0
      %1103 = vmatprep.subr.bf16.mxu0 0
      %1104 = vmatpush1.bf16.msra.mxu0 0
      %1105 = vmatprep.subr.bf16.mxu0 0
      %1106 = vmatpush1.bf16.msra.mxu0 0
      %1107 = vmatprep.subr.bf16.mxu0 0
      %1108 = vmatpush1.bf16.msra.mxu0 0
      %1109 = vmatprep.mubr.bf16.mxu0 0
      %1110 = vmatmul.mubr.bf16.gmra.mrb[0].mxu0 %v1051
      %v1111 = vpop.f32.mrb[0].mxu0
      %v1112 = vadd.f32 0.0, %v1111
      %v1113 = vpop.f32.mrb[0].mxu0
      %v1114 = vpop.f32.mrb[0].mxu0
      %v1115 = vadd.f32 0.0, %v1114
      %v1116 = vpop.f32.mrb[0].mxu0
      %1117 = vmatprep.mubr.bf16.mxu0 0
      %1118 = vmatmul.mubr.bf16.gmra.mrb[0].mxu0 %v1054
      %v1119 = vpop.f32.mrb[0].mxu0
      %v1120 = vadd.f32 0.0, %v1119
      %v1121 = vpop.f32.mrb[0].mxu0
      %v1122 = vpop.f32.mrb[0].mxu0
      %v1123 = vadd.f32 0.0, %v1122
      %v1124 = vpop.f32.mrb[0].mxu0
      %1125 = vmatprep.mubr.bf16.mxu0 0
      %1126 = vmatmul.mubr.bf16.gmra.mrb[0].mxu0 %v1057
      %v1127 = vpop.f32.mrb[0].mxu0
      %v1128 = vadd.f32 0.0, %v1127
      %v1129 = vpop.f32.mrb[0].mxu0
      %v1130 = vpop.f32.mrb[0].mxu0
      %v1131 = vadd.f32 0.0, %v1130
      %v1132 = vpop.f32.mrb[0].mxu0
      %1133 = vmatprep.mubr.bf16.mxu0 0
      %1134 = vmatmul.mubr.bf16.gmra.mrb[0].mxu0 %v1060
      %v1135 = vpop.f32.mrb[0].mxu0
      %v1136 = vadd.f32 0.0, %v1135
      %v1137 = vpop.f32.mrb[0].mxu0
      %v1138 = vpop.f32.mrb[0].mxu0
      %v1139 = vadd.f32 0.0, %v1138
      %v1140 = vpop.f32.mrb[0].mxu0
      %1141 = vmatprep.mubr.bf16.mxu0 0
      %1142 = vmatmul.mubr.bf16.gmra.mrb[0].mxu0 %v1063
      %v1143 = vpop.f32.mrb[0].mxu0
      %v1144 = vadd.f32 0.0, %v1143
      %v1145 = vpop.f32.mrb[0].mxu0
      %v1146 = vpop.f32.mrb[0].mxu0
      %v1147 = vadd.f32 0.0, %v1146
      %v1148 = vpop.f32.mrb[0].mxu0
      %1149 = vmatprep.mubr.bf16.mxu0 0
      %1150 = vmatmul.mubr.bf16.gmra.mrb[0].mxu0 %v1066
      %v1151 = vpop.f32.mrb[0].mxu0
      %v1152 = vadd.f32 0.0, %v1151
      %v1153 = vpop.f32.mrb[0].mxu0
      %v1154 = vpop.f32.mrb[0].mxu0
      %v1155 = vadd.f32 0.0, %v1154
      %v1156 = vpop.f32.mrb[0].mxu0
      %1157 = vmatprep.mubr.bf16.mxu0 0
      %1158 = vmatmul.mubr.bf16.gmra.mrb[0].mxu0 %v1069
      %v1159 = vpop.f32.mrb[0].mxu0
      %v1160 = vadd.f32 0.0, %v1159
      %v1161 = vpop.f32.mrb[0].mxu0
      %v1162 = vpop.f32.mrb[0].mxu0
      %v1163 = vadd.f32 0.0, %v1162
      %v1164 = vpop.f32.mrb[0].mxu0
      %1165 = vmatprep.mubr.bf16.mxu0 0
      %1166 = vmatmul.mubr.bf16.gmra.mrb[0].mxu0 %v1072
      %v1167 = vpop.f32.mrb[0].mxu0
      %v1168 = vadd.f32 0.0, %v1167
      %v1169 = vpop.f32.mrb[0].mxu0
      %v1170 = vpop.f32.mrb[0].mxu0
      %v1171 = vadd.f32 0.0, %v1170
      %v1172 = vpop.f32.mrb[0].mxu0
      %1173 = vmatprep.mubr.bf16.mxu0 0
      %1174 = vmatmul.mubr.bf16.gmra.mrb[0].mxu0 %v1075
      %v1175 = vpop.f32.mrb[0].mxu0
      %v1176 = vadd.f32 0.0, %v1175
      %v1177 = vpop.f32.mrb[0].mxu0
      %v1178 = vpop.f32.mrb[0].mxu0
      %v1179 = vadd.f32 0.0, %v1178
      %v1180 = vpop.f32.mrb[0].mxu0
      %1181 = vdwg.mxu0
      %v1182 = vpack.c.bf16 %v1115, %v1112
      %v1183 = vpack.c.bf16 %v1123, %v1120
      %v1184 = vpack.c.bf16 %v1131, %v1128
      %v1185 = vpack.c.bf16 %v1139, %v1136
      %v1186 = vpack.c.bf16 %v1147, %v1144
      %v1187 = vpack.c.bf16 %v1155, %v1152
      %v1188 = vpack.c.bf16 %v1163, %v1160
      %v1189 = vpack.c.bf16 %v1171, %v1168
      %v1190 = vpack.c.bf16 %v1179, %v1176
      %v1191 = vld [vmem:[%s5] sm:$0xf]
      %v1192 = vld [vmem:[%s5 + $0x4] sm:$0xf]
      %v1193 = vld [vmem:[%s5 + $0x8] sm:$0xf]
      %v1194 = vld [vmem:[%s5 + $0xc] sm:$0xf]
      %v1195 = vld [vmem:[%s5 + $0x10] sm:$0xf]
      %v1196 = vld [vmem:[%s5 + $0x14] sm:$0xf]
      %v1197 = vld [vmem:[%s5 + $0x18] sm:$0xf]
      %v1198 = vld [vmem:[%s5 + $0x1c] sm:$0xf]
      %v1199 = vld [vmem:[%s5 + $0x20] sm:$0xf]
      %v1200 = vld [vmem:[%s5 + $0x24] sm:$0xf]
      %v1201 = vld [vmem:[%s5 + $0x28] sm:$0xf]
      %v1202 = vld [vmem:[%s5 + $0x2c] sm:$0xf]
      %v1203 = vld [vmem:[%s5 + $0x30] sm:$0xf]
      %v1204 = vld [vmem:[%s5 + $0x34] sm:$0xf]
      %v1205 = vld [vmem:[%s5 + $0x38] sm:$0xf]
      %v1206 = vld [vmem:[%s5 + $0x3c] sm:$0xf]
      %v1215 = vunpack.c.l.b16 %v1199
      %v1216 = vunpack.c.l.b16 %v1200
      %v1217 = vunpack.c.l.b16 %v1201
      %v1218 = vunpack.c.l.b16 %v1202
      %v1219 = vunpack.c.l.b16 %v1203
      %v1220 = vunpack.c.l.b16 %v1204
      %v1221 = vunpack.c.l.b16 %v1205
      %v1222 = vunpack.c.l.b16 %v1206
      %v1223 = vpack.c.b16 %v1216, %v1215
      %v1224 = vpack.c.b16 %v1218, %v1217
      %v1225 = vpack.c.b16 %v1220, %v1219
      %v1226 = vpack.c.b16 %v1222, %v1221
      %v1232 = vsel %vm1049, %v1183, 0
      %1234 = vmatprep.subr.bf16.mxu0 0
      %1235 = vmatpush1.bf16.msra.mxu0 %v1223
      %1236 = vmatprep.subr.bf16.mxu0 0
      %1237 = vmatpush1.bf16.msra.mxu0 %v1224
      %1238 = vmatprep.subr.bf16.mxu0 0
      %1239 = vmatpush1.bf16.msra.mxu0 %v1225
      %1240 = vmatprep.subr.bf16.mxu0 0
      %1241 = vmatpush1.bf16.msra.mxu0 %v1226
      %1242 = vmatprep.subr.bf16.mxu0 0
      %1243 = vmatpush1.bf16.msra.mxu0 0
      %1244 = vmatprep.subr.bf16.mxu0 0
      %1245 = vmatpush1.bf16.msra.mxu0 0
      %1246 = vmatprep.subr.bf16.mxu0 0
      %1247 = vmatpush1.bf16.msra.mxu0 0
      %1248 = vmatprep.subr.bf16.mxu0 0
      %1249 = vmatpush1.bf16.msra.mxu0 0
      %1250 = vmatprep.subr.bf16.mxu0 0
      %1251 = vmatpush1.bf16.msra.mxu0 0
      %1252 = vmatprep.subr.bf16.mxu0 0
      %1253 = vmatpush1.bf16.msra.mxu0 0
      %1254 = vmatprep.subr.bf16.mxu0 0
      %1255 = vmatpush1.bf16.msra.mxu0 0
      %1256 = vmatprep.subr.bf16.mxu0 0
      %1257 = vmatpush1.bf16.msra.mxu0 0
      %1258 = vmatprep.subr.bf16.mxu0 0
      %1259 = vmatpush1.bf16.msra.mxu0 0
      %1260 = vmatprep.subr.bf16.mxu0 0
      %1261 = vmatpush1.bf16.msra.mxu0 0
      %1262 = vmatprep.subr.bf16.mxu0 0
      %1263 = vmatpush1.bf16.msra.mxu0 0
      %1264 = vmatprep.subr.bf16.mxu0 0
      %1265 = vmatpush1.bf16.msra.mxu0 0
      %1266 = vmatprep.mubr.bf16.mxu0 0
      %1267 = vmatmul.mubr.bf16.gmra.mrb[0].mxu0 %v1232
      %v1268 = vpop.f32.mrb[0].mxu0
      %v1269 = vadd.f32 0.0, %v1268
      %v1270 = vpop.f32.mrb[0].mxu0
      %v1271 = vpop.f32.mrb[0].mxu0
      %v1272 = vadd.f32 0.0, %v1271
      %v1273 = vpop.f32.mrb[0].mxu0
      %1274 = vdwg.mxu0
      %v1283 = vunpack.c.l.b16 %v1191
      %v1284 = vunpack.c.l.b16 %v1192
      %v1285 = vunpack.c.l.b16 %v1193
      %v1286 = vunpack.c.l.b16 %v1194
      %v1287 = vunpack.c.l.b16 %v1195
      %v1288 = vunpack.c.l.b16 %v1196
      %v1289 = vunpack.c.l.b16 %v1197
      %v1290 = vunpack.c.l.b16 %v1198
      %v1291 = vpack.c.b16 %v1284, %v1283
      %v1292 = vpack.c.b16 %v1286, %v1285
      %v1293 = vpack.c.b16 %v1288, %v1287
      %v1294 = vpack.c.b16 %v1290, %v1289
      %v1300 = vsel %vm1049, %v1182, 0
      %1302 = vmatprep.subr.bf16.mxu0 0
      %1303 = vmatpush1.bf16.msra.mxu0 %v1291
      %1304 = vmatprep.subr.bf16.mxu0 0
      %1305 = vmatpush1.bf16.msra.mxu0 %v1292
      %1306 = vmatprep.subr.bf16.mxu0 0
      %1307 = vmatpush1.bf16.msra.mxu0 %v1293
      %1308 = vmatprep.subr.bf16.mxu0 0
      %1309 = vmatpush1.bf16.msra.mxu0 %v1294
      %1310 = vmatprep.subr.bf16.mxu0 0
      %1311 = vmatpush1.bf16.msra.mxu0 0
      %1312 = vmatprep.subr.bf16.mxu0 0
      %1313 = vmatpush1.bf16.msra.mxu0 0
      %1314 = vmatprep.subr.bf16.mxu0 0
      %1315 = vmatpush1.bf16.msra.mxu0 0
      %1316 = vmatprep.subr.bf16.mxu0 0
      %1317 = vmatpush1.bf16.msra.mxu0 0
      %1318 = vmatprep.subr.bf16.mxu0 0
      %1319 = vmatpush1.bf16.msra.mxu0 0
      %1320 = vmatprep.subr.bf16.mxu0 0
      %1321 = vmatpush1.bf16.msra.mxu0 0
      %1322 = vmatprep.subr.bf16.mxu0 0
      %1323 = vmatpush1.bf16.msra.mxu0 0
      %1324 = vmatprep.subr.bf16.mxu0 0
      %1325 = vmatpush1.bf16.msra.mxu0 0
      %1326 = vmatprep.subr.bf16.mxu0 0
      %1327 = vmatpush1.bf16.msra.mxu0 0
      %1328 = vmatprep.subr.bf16.mxu0 0
      %1329 = vmatpush1.bf16.msra.mxu0 0
      %1330 = vmatprep.subr.bf16.mxu0 0
      %1331 = vmatpush1.bf16.msra.mxu0 0
      %1332 = vmatprep.subr.bf16.mxu0 0
      %1333 = vmatpush1.bf16.msra.mxu0 0
      %1334 = vmatprep.mubr.bf16.mxu0 0
      %1335 = vmatmul.mubr.bf16.gmra.mrb[0].mxu0 %v1300
      %v1336 = vpop.f32.mrb[0].mxu0
      %v1337 = vadd.f32 %v1269, %v1336
      %v1338 = vpop.f32.mrb[0].mxu0
      %v1339 = vpop.f32.mrb[0].mxu0
      %v1340 = vadd.f32 %v1272, %v1339
      %v1341 = vpop.f32.mrb[0].mxu0
      %1342 = vdwg.mxu0
      %v1343 = vld [vmem:[%s5 + $0x40] sm:$0xf]
      %v1344 = vld [vmem:[%s5 + $0x44] sm:$0xf]
      %v1345 = vld [vmem:[%s5 + $0x48] sm:$0xf]
      %v1346 = vld [vmem:[%s5 + $0x4c] sm:$0xf]
      %v1347 = vld [vmem:[%s5 + $0x50] sm:$0xf]
      %v1348 = vld [vmem:[%s5 + $0x54] sm:$0xf]
      %v1349 = vld [vmem:[%s5 + $0x58] sm:$0xf]
      %v1350 = vld [vmem:[%s5 + $0x5c] sm:$0xf]
      %v1359 = vunpack.c.l.b16 %v1343
      %v1360 = vunpack.c.l.b16 %v1344
      %v1361 = vunpack.c.l.b16 %v1345
      %v1362 = vunpack.c.l.b16 %v1346
      %v1363 = vunpack.c.l.b16 %v1347
      %v1364 = vunpack.c.l.b16 %v1348
      %v1365 = vunpack.c.l.b16 %v1349
      %v1366 = vunpack.c.l.b16 %v1350
      %v1367 = vpack.c.b16 %v1360, %v1359
      %v1368 = vpack.c.b16 %v1362, %v1361
      %v1369 = vpack.c.b16 %v1364, %v1363
      %v1370 = vpack.c.b16 %v1366, %v1365
      %v1376 = vsel %vm1049, %v1184, 0
      %1378 = vmatprep.subr.bf16.mxu0 0
      %1379 = vmatpush1.bf16.msra.mxu0 %v1367
      %1380 = vmatprep.subr.bf16.mxu0 0
      %1381 = vmatpush1.bf16.msra.mxu0 %v1368
      %1382 = vmatprep.subr.bf16.mxu0 0
      %1383 = vmatpush1.bf16.msra.mxu0 %v1369
      %1384 = vmatprep.subr.bf16.mxu0 0
      %1385 = vmatpush1.bf16.msra.mxu0 %v1370
      %1386 = vmatprep.subr.bf16.mxu0 0
      %1387 = vmatpush1.bf16.msra.mxu0 0
      %1388 = vmatprep.subr.bf16.mxu0 0
      %1389 = vmatpush1.bf16.msra.mxu0 0
      %1390 = vmatprep.subr.bf16.mxu0 0
      %1391 = vmatpush1.bf16.msra.mxu0 0
      %1392 = vmatprep.subr.bf16.mxu0 0
      %1393 = vmatpush1.bf16.msra.mxu0 0
      %1394 = vmatprep.subr.bf16.mxu0 0
      %1395 = vmatpush1.bf16.msra.mxu0 0
      %1396 = vmatprep.subr.bf16.mxu0 0
      %1397 = vmatpush1.bf16.msra.mxu0 0
      %1398 = vmatprep.subr.bf16.mxu0 0
      %1399 = vmatpush1.bf16.msra.mxu0 0
      %1400 = vmatprep.subr.bf16.mxu0 0
      %1401 = vmatpush1.bf16.msra.mxu0 0
      %1402 = vmatprep.subr.bf16.mxu0 0
      %1403 = vmatpush1.bf16.msra.mxu0 0
      %1404 = vmatprep.subr.bf16.mxu0 0
      %1405 = vmatpush1.bf16.msra.mxu0 0
      %1406 = vmatprep.subr.bf16.mxu0 0
      %1407 = vmatpush1.bf16.msra.mxu0 0
      %1408 = vmatprep.subr.bf16.mxu0 0
      %1409 = vmatpush1.bf16.msra.mxu0 0
      %1410 = vmatprep.mubr.bf16.mxu0 0
      %1411 = vmatmul.mubr.bf16.gmra.mrb[0].mxu0 %v1376
      %v1412 = vpop.f32.mrb[0].mxu0
      %v1413 = vadd.f32 0.0, %v1412
      %v1414 = vpop.f32.mrb[0].mxu0
      %v1415 = vpop.f32.mrb[0].mxu0
      %v1416 = vadd.f32 0.0, %v1415
      %v1417 = vpop.f32.mrb[0].mxu0
      %1418 = vdwg.mxu0
      %v1419 = vadd.f32 %v1337, %v1413
      %v1420 = vadd.f32 %v1340, %v1416
      %v1421 = vld [vmem:[%s5 + $0x60] sm:$0xf]
      %v1422 = vld [vmem:[%s5 + $0x64] sm:$0xf]
      %v1423 = vld [vmem:[%s5 + $0x68] sm:$0xf]
      %v1424 = vld [vmem:[%s5 + $0x6c] sm:$0xf]
      %v1425 = vld [vmem:[%s5 + $0x70] sm:$0xf]
      %v1426 = vld [vmem:[%s5 + $0x74] sm:$0xf]
      %v1427 = vld [vmem:[%s5 + $0x78] sm:$0xf]
      %v1428 = vld [vmem:[%s5 + $0x7c] sm:$0xf]
      %v1437 = vunpack.c.l.b16 %v1421
      %v1438 = vunpack.c.l.b16 %v1422
      %v1439 = vunpack.c.l.b16 %v1423
      %v1440 = vunpack.c.l.b16 %v1424
      %v1441 = vunpack.c.l.b16 %v1425
      %v1442 = vunpack.c.l.b16 %v1426
      %v1443 = vunpack.c.l.b16 %v1427
      %v1444 = vunpack.c.l.b16 %v1428
      %v1445 = vpack.c.b16 %v1438, %v1437
      %v1446 = vpack.c.b16 %v1440, %v1439
      %v1447 = vpack.c.b16 %v1442, %v1441
      %v1448 = vpack.c.b16 %v1444, %v1443
      %v1454 = vsel %vm1049, %v1185, 0
      %1456 = vmatprep.subr.bf16.mxu0 0
      %1457 = vmatpush1.bf16.msra.mxu0 %v1445
      %1458 = vmatprep.subr.bf16.mxu0 0
      %1459 = vmatpush1.bf16.msra.mxu0 %v1446
      %1460 = vmatprep.subr.bf16.mxu0 0
      %1461 = vmatpush1.bf16.msra.mxu0 %v1447
      %1462 = vmatprep.subr.bf16.mxu0 0
      %1463 = vmatpush1.bf16.msra.mxu0 %v1448
      %1464 = vmatprep.subr.bf16.mxu0 0
      %1465 = vmatpush1.bf16.msra.mxu0 0
      %1466 = vmatprep.subr.bf16.mxu0 0
      %1467 = vmatpush1.bf16.msra.mxu0 0
      %1468 = vmatprep.subr.bf16.mxu0 0
      %1469 = vmatpush1.bf16.msra.mxu0 0
      %1470 = vmatprep.subr.bf16.mxu0 0
      %1471 = vmatpush1.bf16.msra.mxu0 0
      %1472 = vmatprep.subr.bf16.mxu0 0
      %1473 = vmatpush1.bf16.msra.mxu0 0
      %1474 = vmatprep.subr.bf16.mxu0 0
      %1475 = vmatpush1.bf16.msra.mxu0 0
      %1476 = vmatprep.subr.bf16.mxu0 0
      %1477 = vmatpush1.bf16.msra.mxu0 0
      %1478 = vmatprep.subr.bf16.mxu0 0
      %1479 = vmatpush1.bf16.msra.mxu0 0
      %1480 = vmatprep.subr.bf16.mxu0 0
      %1481 = vmatpush1.bf16.msra.mxu0 0
      %1482 = vmatprep.subr.bf16.mxu0 0
      %1483 = vmatpush1.bf16.msra.mxu0 0
      %1484 = vmatprep.subr.bf16.mxu0 0
      %1485 = vmatpush1.bf16.msra.mxu0 0
      %1486 = vmatprep.subr.bf16.mxu0 0
      %1487 = vmatpush1.bf16.msra.mxu0 0
      %1488 = vmatprep.mubr.bf16.mxu0 0
      %1489 = vmatmul.mubr.bf16.gmra.mrb[0].mxu0 %v1454
      %v1490 = vpop.f32.mrb[0].mxu0
      %v1491 = vadd.f32 0.0, %v1490
      %v1492 = vpop.f32.mrb[0].mxu0
      %v1493 = vpop.f32.mrb[0].mxu0
      %v1494 = vadd.f32 0.0, %v1493
      %v1495 = vpop.f32.mrb[0].mxu0
      %1496 = vdwg.mxu0
      %v1497 = vadd.f32 %v1419, %v1491
      %v1498 = vadd.f32 %v1420, %v1494
      %v1499 = vld [vmem:[%s5 + $0x80] sm:$0xf]
      %v1500 = vld [vmem:[%s5 + $0x84] sm:$0xf]
      %v1501 = vld [vmem:[%s5 + $0x88] sm:$0xf]
      %v1502 = vld [vmem:[%s5 + $0x8c] sm:$0xf]
      %v1503 = vld [vmem:[%s5 + $0x90] sm:$0xf]
      %v1504 = vld [vmem:[%s5 + $0x94] sm:$0xf]
      %v1505 = vld [vmem:[%s5 + $0x98] sm:$0xf]
      %v1506 = vld [vmem:[%s5 + $0x9c] sm:$0xf]
      %v1515 = vunpack.c.l.b16 %v1499
      %v1516 = vunpack.c.l.b16 %v1500
      %v1517 = vunpack.c.l.b16 %v1501
      %v1518 = vunpack.c.l.b16 %v1502
      %v1519 = vunpack.c.l.b16 %v1503
      %v1520 = vunpack.c.l.b16 %v1504
      %v1521 = vunpack.c.l.b16 %v1505
      %v1522 = vunpack.c.l.b16 %v1506
      %v1523 = vpack.c.b16 %v1516, %v1515
      %v1524 = vpack.c.b16 %v1518, %v1517
      %v1525 = vpack.c.b16 %v1520, %v1519
      %v1526 = vpack.c.b16 %v1522, %v1521
      %v1532 = vsel %vm1049, %v1186, 0
      %1534 = vmatprep.subr.bf16.mxu0 0
      %1535 = vmatpush1.bf16.msra.mxu0 %v1523
      %1536 = vmatprep.subr.bf16.mxu0 0
      %1537 = vmatpush1.bf16.msra.mxu0 %v1524
      %1538 = vmatprep.subr.bf16.mxu0 0
      %1539 = vmatpush1.bf16.msra.mxu0 %v1525
      %1540 = vmatprep.subr.bf16.mxu0 0
      %1541 = vmatpush1.bf16.msra.mxu0 %v1526
      %1542 = vmatprep.subr.bf16.mxu0 0
      %1543 = vmatpush1.bf16.msra.mxu0 0
      %1544 = vmatprep.subr.bf16.mxu0 0
      %1545 = vmatpush1.bf16.msra.mxu0 0
      %1546 = vmatprep.subr.bf16.mxu0 0
      %1547 = vmatpush1.bf16.msra.mxu0 0
      %1548 = vmatprep.subr.bf16.mxu0 0
      %1549 = vmatpush1.bf16.msra.mxu0 0
      %1550 = vmatprep.subr.bf16.mxu0 0
      %1551 = vmatpush1.bf16.msra.mxu0 0
      %1552 = vmatprep.subr.bf16.mxu0 0
      %1553 = vmatpush1.bf16.msra.mxu0 0
      %1554 = vmatprep.subr.bf16.mxu0 0
      %1555 = vmatpush1.bf16.msra.mxu0 0
      %1556 = vmatprep.subr.bf16.mxu0 0
      %1557 = vmatpush1.bf16.msra.mxu0 0
      %1558 = vmatprep.subr.bf16.mxu0 0
      %1559 = vmatpush1.bf16.msra.mxu0 0
      %1560 = vmatprep.subr.bf16.mxu0 0
      %1561 = vmatpush1.bf16.msra.mxu0 0
      %1562 = vmatprep.subr.bf16.mxu0 0
      %1563 = vmatpush1.bf16.msra.mxu0 0
      %1564 = vmatprep.subr.bf16.mxu0 0
      %1565 = vmatpush1.bf16.msra.mxu0 0
      %1566 = vmatprep.mubr.bf16.mxu0 0
      %1567 = vmatmul.mubr.bf16.gmra.mrb[0].mxu0 %v1532
      %v1568 = vpop.f32.mrb[0].mxu0
      %v1569 = vadd.f32 0.0, %v1568
      %v1570 = vpop.f32.mrb[0].mxu0
      %v1571 = vpop.f32.mrb[0].mxu0
      %v1572 = vadd.f32 0.0, %v1571
      %v1573 = vpop.f32.mrb[0].mxu0
      %1574 = vdwg.mxu0
      %v1575 = vadd.f32 %v1497, %v1569
      %v1576 = vadd.f32 %v1498, %v1572
      %v1577 = vld [vmem:[%s5 + $0xa0] sm:$0xf]
      %v1578 = vld [vmem:[%s5 + $0xa4] sm:$0xf]
      %v1579 = vld [vmem:[%s5 + $0xa8] sm:$0xf]
      %v1580 = vld [vmem:[%s5 + $0xac] sm:$0xf]
      %v1581 = vld [vmem:[%s5 + $0xb0] sm:$0xf]
      %v1582 = vld [vmem:[%s5 + $0xb4] sm:$0xf]
      %v1583 = vld [vmem:[%s5 + $0xb8] sm:$0xf]
      %v1584 = vld [vmem:[%s5 + $0xbc] sm:$0xf]
      %v1593 = vunpack.c.l.b16 %v1577
      %v1594 = vunpack.c.l.b16 %v1578
      %v1595 = vunpack.c.l.b16 %v1579
      %v1596 = vunpack.c.l.b16 %v1580
      %v1597 = vunpack.c.l.b16 %v1581
      %v1598 = vunpack.c.l.b16 %v1582
      %v1599 = vunpack.c.l.b16 %v1583
      %v1600 = vunpack.c.l.b16 %v1584
      %v1601 = vpack.c.b16 %v1594, %v1593
      %v1602 = vpack.c.b16 %v1596, %v1595
      %v1603 = vpack.c.b16 %v1598, %v1597
      %v1604 = vpack.c.b16 %v1600, %v1599
      %v1610 = vsel %vm1049, %v1187, 0
      %1612 = vmatprep.subr.bf16.mxu0 0
      %1613 = vmatpush1.bf16.msra.mxu0 %v1601
      %1614 = vmatprep.subr.bf16.mxu0 0
      %1615 = vmatpush1.bf16.msra.mxu0 %v1602
      %1616 = vmatprep.subr.bf16.mxu0 0
      %1617 = vmatpush1.bf16.msra.mxu0 %v1603
      %1618 = vmatprep.subr.bf16.mxu0 0
      %1619 = vmatpush1.bf16.msra.mxu0 %v1604
      %1620 = vmatprep.subr.bf16.mxu0 0
      %1621 = vmatpush1.bf16.msra.mxu0 0
      %1622 = vmatprep.subr.bf16.mxu0 0
      %1623 = vmatpush1.bf16.msra.mxu0 0
      %1624 = vmatprep.subr.bf16.mxu0 0
      %1625 = vmatpush1.bf16.msra.mxu0 0
      %1626 = vmatprep.subr.bf16.mxu0 0
      %1627 = vmatpush1.bf16.msra.mxu0 0
      %1628 = vmatprep.subr.bf16.mxu0 0
      %1629 = vmatpush1.bf16.msra.mxu0 0
      %1630 = vmatprep.subr.bf16.mxu0 0
      %1631 = vmatpush1.bf16.msra.mxu0 0
      %1632 = vmatprep.subr.bf16.mxu0 0
      %1633 = vmatpush1.bf16.msra.mxu0 0
      %1634 = vmatprep.subr.bf16.mxu0 0
      %1635 = vmatpush1.bf16.msra.mxu0 0
      %1636 = vmatprep.subr.bf16.mxu0 0
      %1637 = vmatpush1.bf16.msra.mxu0 0
      %1638 = vmatprep.subr.bf16.mxu0 0
      %1639 = vmatpush1.bf16.msra.mxu0 0
      %1640 = vmatprep.subr.bf16.mxu0 0
      %1641 = vmatpush1.bf16.msra.mxu0 0
      %1642 = vmatprep.subr.bf16.mxu0 0
      %1643 = vmatpush1.bf16.msra.mxu0 0
      %1644 = vmatprep.mubr.bf16.mxu0 0
      %1645 = vmatmul.mubr.bf16.gmra.mrb[0].mxu0 %v1610
      %v1646 = vpop.f32.mrb[0].mxu0
      %v1647 = vadd.f32 0.0, %v1646
      %v1648 = vpop.f32.mrb[0].mxu0
      %v1649 = vpop.f32.mrb[0].mxu0
      %v1650 = vadd.f32 0.0, %v1649
      %v1651 = vpop.f32.mrb[0].mxu0
      %1652 = vdwg.mxu0
      %v1653 = vadd.f32 %v1575, %v1647
      %v1654 = vadd.f32 %v1576, %v1650
      %v1655 = vld [vmem:[%s5 + $0xc0] sm:$0xf]
      %v1656 = vld [vmem:[%s5 + $0xc4] sm:$0xf]
      %v1657 = vld [vmem:[%s5 + $0xc8] sm:$0xf]
      %v1658 = vld [vmem:[%s5 + $0xcc] sm:$0xf]
      %v1659 = vld [vmem:[%s5 + $0xd0] sm:$0xf]
      %v1660 = vld [vmem:[%s5 + $0xd4] sm:$0xf]
      %v1661 = vld [vmem:[%s5 + $0xd8] sm:$0xf]
      %v1662 = vld [vmem:[%s5 + $0xdc] sm:$0xf]
      %v1671 = vunpack.c.l.b16 %v1655
      %v1672 = vunpack.c.l.b16 %v1656
      %v1673 = vunpack.c.l.b16 %v1657
      %v1674 = vunpack.c.l.b16 %v1658
      %v1675 = vunpack.c.l.b16 %v1659
      %v1676 = vunpack.c.l.b16 %v1660
      %v1677 = vunpack.c.l.b16 %v1661
      %v1678 = vunpack.c.l.b16 %v1662
      %v1679 = vpack.c.b16 %v1672, %v1671
      %v1680 = vpack.c.b16 %v1674, %v1673
      %v1681 = vpack.c.b16 %v1676, %v1675
      %v1682 = vpack.c.b16 %v1678, %v1677
      %v1688 = vsel %vm1049, %v1188, 0
      %1690 = vmatprep.subr.bf16.mxu0 0
      %1691 = vmatpush1.bf16.msra.mxu0 %v1679
      %1692 = vmatprep.subr.bf16.mxu0 0
      %1693 = vmatpush1.bf16.msra.mxu0 %v1680
      %1694 = vmatprep.subr.bf16.mxu0 0
      %1695 = vmatpush1.bf16.msra.mxu0 %v1681
      %1696 = vmatprep.subr.bf16.mxu0 0
      %1697 = vmatpush1.bf16.msra.mxu0 %v1682
      %1698 = vmatprep.subr.bf16.mxu0 0
      %1699 = vmatpush1.bf16.msra.mxu0 0
      %1700 = vmatprep.subr.bf16.mxu0 0
      %1701 = vmatpush1.bf16.msra.mxu0 0
      %1702 = vmatprep.subr.bf16.mxu0 0
      %1703 = vmatpush1.bf16.msra.mxu0 0
      %1704 = vmatprep.subr.bf16.mxu0 0
      %1705 = vmatpush1.bf16.msra.mxu0 0
      %1706 = vmatprep.subr.bf16.mxu0 0
      %1707 = vmatpush1.bf16.msra.mxu0 0
      %1708 = vmatprep.subr.bf16.mxu0 0
      %1709 = vmatpush1.bf16.msra.mxu0 0
      %1710 = vmatprep.subr.bf16.mxu0 0
      %1711 = vmatpush1.bf16.msra.mxu0 0
      %1712 = vmatprep.subr.bf16.mxu0 0
      %1713 = vmatpush1.bf16.msra.mxu0 0
      %1714 = vmatprep.subr.bf16.mxu0 0
      %1715 = vmatpush1.bf16.msra.mxu0 0
      %1716 = vmatprep.subr.bf16.mxu0 0
      %1717 = vmatpush1.bf16.msra.mxu0 0
      %1718 = vmatprep.subr.bf16.mxu0 0
      %1719 = vmatpush1.bf16.msra.mxu0 0
      %1720 = vmatprep.subr.bf16.mxu0 0
      %1721 = vmatpush1.bf16.msra.mxu0 0
      %1722 = vmatprep.mubr.bf16.mxu0 0
      %1723 = vmatmul.mubr.bf16.gmra.mrb[0].mxu0 %v1688
      %v1724 = vpop.f32.mrb[0].mxu0
      %v1725 = vadd.f32 0.0, %v1724
      %v1726 = vpop.f32.mrb[0].mxu0
      %v1727 = vpop.f32.mrb[0].mxu0
      %v1728 = vadd.f32 0.0, %v1727
      %v1729 = vpop.f32.mrb[0].mxu0
      %1730 = vdwg.mxu0
      %v1731 = vadd.f32 %v1653, %v1725
      %v1732 = vadd.f32 %v1654, %v1728
      %v1733 = vld [vmem:[%s5 + $0xe0] sm:$0xf]
      %v1734 = vld [vmem:[%s5 + $0xe4] sm:$0xf]
      %v1735 = vld [vmem:[%s5 + $0xe8] sm:$0xf]
      %v1736 = vld [vmem:[%s5 + $0xec] sm:$0xf]
      %v1737 = vld [vmem:[%s5 + $0xf0] sm:$0xf]
      %v1738 = vld [vmem:[%s5 + $0xf4] sm:$0xf]
      %v1739 = vld [vmem:[%s5 + $0xf8] sm:$0xf]
      %v1740 = vld [vmem:[%s5 + $0xfc] sm:$0xf]
      %v1749 = vunpack.c.l.b16 %v1733
      %v1750 = vunpack.c.l.b16 %v1734
      %v1751 = vunpack.c.l.b16 %v1735
      %v1752 = vunpack.c.l.b16 %v1736
      %v1753 = vunpack.c.l.b16 %v1737
      %v1754 = vunpack.c.l.b16 %v1738
      %v1755 = vunpack.c.l.b16 %v1739
      %v1756 = vunpack.c.l.b16 %v1740
      %v1757 = vpack.c.b16 %v1750, %v1749
      %v1758 = vpack.c.b16 %v1752, %v1751
      %v1759 = vpack.c.b16 %v1754, %v1753
      %v1760 = vpack.c.b16 %v1756, %v1755
      %v1766 = vsel %vm1049, %v1189, 0
      %1768 = vmatprep.subr.bf16.mxu0 0
      %1769 = vmatpush1.bf16.msra.mxu0 %v1757
      %1770 = vmatprep.subr.bf16.mxu0 0
      %1771 = vmatpush1.bf16.msra.mxu0 %v1758
      %1772 = vmatprep.subr.bf16.mxu0 0
      %1773 = vmatpush1.bf16.msra.mxu0 %v1759
      %1774 = vmatprep.subr.bf16.mxu0 0
      %1775 = vmatpush1.bf16.msra.mxu0 %v1760
      %1776 = vmatprep.subr.bf16.mxu0 0
      %1777 = vmatpush1.bf16.msra.mxu0 0
      %1778 = vmatprep.subr.bf16.mxu0 0
      %1779 = vmatpush1.bf16.msra.mxu0 0
      %1780 = vmatprep.subr.bf16.mxu0 0
      %1781 = vmatpush1.bf16.msra.mxu0 0
      %1782 = vmatprep.subr.bf16.mxu0 0
      %1783 = vmatpush1.bf16.msra.mxu0 0
      %1784 = vmatprep.subr.bf16.mxu0 0
      %1785 = vmatpush1.bf16.msra.mxu0 0
      %1786 = vmatprep.subr.bf16.mxu0 0
      %1787 = vmatpush1.bf16.msra.mxu0 0
      %1788 = vmatprep.subr.bf16.mxu0 0
      %1789 = vmatpush1.bf16.msra.mxu0 0
      %1790 = vmatprep.subr.bf16.mxu0 0
      %1791 = vmatpush1.bf16.msra.mxu0 0
      %1792 = vmatprep.subr.bf16.mxu0 0
      %1793 = vmatpush1.bf16.msra.mxu0 0
      %1794 = vmatprep.subr.bf16.mxu0 0
      %1795 = vmatpush1.bf16.msra.mxu0 0
      %1796 = vmatprep.subr.bf16.mxu0 0
      %1797 = vmatpush1.bf16.msra.mxu0 0
      %1798 = vmatprep.subr.bf16.mxu0 0
      %1799 = vmatpush1.bf16.msra.mxu0 0
      %1800 = vmatprep.mubr.bf16.mxu0 0
      %1801 = vmatmul.mubr.bf16.gmra.mrb[0].mxu0 %v1766
      %v1802 = vpop.f32.mrb[0].mxu0
      %v1803 = vadd.f32 0.0, %v1802
      %v1804 = vpop.f32.mrb[0].mxu0
      %v1805 = vpop.f32.mrb[0].mxu0
      %v1806 = vadd.f32 0.0, %v1805
      %v1807 = vpop.f32.mrb[0].mxu0
      %1808 = vdwg.mxu0
      %v1809 = vadd.f32 %v1731, %v1803
      %v1810 = vadd.f32 %v1732, %v1806
      %v1811 = vld [vmem:[%s5 + $0x100] sm:$0xf]
      %v1812 = vld [vmem:[%s5 + $0x104] sm:$0xf]
      %v1813 = vld [vmem:[%s5 + $0x108] sm:$0xf]
      %v1814 = vld [vmem:[%s5 + $0x10c] sm:$0xf]
      %v1815 = vld [vmem:[%s5 + $0x110] sm:$0xf]
      %v1816 = vld [vmem:[%s5 + $0x114] sm:$0xf]
      %v1817 = vld [vmem:[%s5 + $0x118] sm:$0xf]
      %v1818 = vld [vmem:[%s5 + $0x11c] sm:$0xf]
      %v1827 = vunpack.c.l.b16 %v1811
      %v1828 = vunpack.c.l.b16 %v1812
      %v1829 = vunpack.c.l.b16 %v1813
      %v1830 = vunpack.c.l.b16 %v1814
      %v1831 = vunpack.c.l.b16 %v1815
      %v1832 = vunpack.c.l.b16 %v1816
      %v1833 = vunpack.c.l.b16 %v1817
      %v1834 = vunpack.c.l.b16 %v1818
      %v1835 = vpack.c.b16 %v1828, %v1827
      %v1836 = vpack.c.b16 %v1830, %v1829
      %v1837 = vpack.c.b16 %v1832, %v1831
      %v1838 = vpack.c.b16 %v1834, %v1833
      %v1844 = vsel %vm1049, %v1190, 0
      %1846 = vmatprep.subr.bf16.mxu0 0
      %1847 = vmatpush1.bf16.msra.mxu0 %v1835
      %1848 = vmatprep.subr.bf16.mxu0 0
      %1849 = vmatpush1.bf16.msra.mxu0 %v1836
      %1850 = vmatprep.subr.bf16.mxu0 0
      %1851 = vmatpush1.bf16.msra.mxu0 %v1837
      %1852 = vmatprep.subr.bf16.mxu0 0
      %1853 = vmatpush1.bf16.msra.mxu0 %v1838
      %1854 = vmatprep.subr.bf16.mxu0 0
      %1855 = vmatpush1.bf16.msra.mxu0 0
      %1856 = vmatprep.subr.bf16.mxu0 0
      %1857 = vmatpush1.bf16.msra.mxu0 0
      %1858 = vmatprep.subr.bf16.mxu0 0
      %1859 = vmatpush1.bf16.msra.mxu0 0
      %1860 = vmatprep.subr.bf16.mxu0 0
      %1861 = vmatpush1.bf16.msra.mxu0 0
      %1862 = vmatprep.subr.bf16.mxu0 0
      %1863 = vmatpush1.bf16.msra.mxu0 0
      %1864 = vmatprep.subr.bf16.mxu0 0
      %1865 = vmatpush1.bf16.msra.mxu0 0
      %1866 = vmatprep.subr.bf16.mxu0 0
      %1867 = vmatpush1.bf16.msra.mxu0 0
      %1868 = vmatprep.subr.bf16.mxu0 0
      %1869 = vmatpush1.bf16.msra.mxu0 0
      %1870 = vmatprep.subr.bf16.mxu0 0
      %1871 = vmatpush1.bf16.msra.mxu0 0
      %1872 = vmatprep.subr.bf16.mxu0 0
      %1873 = vmatpush1.bf16.msra.mxu0 0
      %1874 = vmatprep.subr.bf16.mxu0 0
      %1875 = vmatpush1.bf16.msra.mxu0 0
      %1876 = vmatprep.subr.bf16.mxu0 0
      %1877 = vmatpush1.bf16.msra.mxu0 0
      %1878 = vmatprep.mubr.bf16.mxu0 0
      %1879 = vmatmul.mubr.bf16.gmra.mrb[0].mxu0 %v1844
      %v1880 = vpop.f32.mrb[0].mxu0
      %v1881 = vadd.f32 0.0, %v1880
      %v1882 = vpop.f32.mrb[0].mxu0
      %v1883 = vpop.f32.mrb[0].mxu0
      %v1884 = vadd.f32 0.0, %v1883
      %v1885 = vpop.f32.mrb[0].mxu0
      %1886 = vdwg.mxu0
      %v1887 = vadd.f32 %v1809, %v1881
      %v1888 = vadd.f32 %v1810, %v1884
      %v1889 = vld [vmem:[%s6] sm:$0x1]
      %v1891 = vlaneseq
      %v1892 = vshrl.u32 %v1891, 7
      %v1893 = vsub.s32 0, %v1892
      %v1894 = vrot.slane %v1889, %v1893
      %v1896 = vadd.f32 %v1887, %v1894
      %v1897 = vadd.f32 %v1888, %v1894
      %vm1898 = vcmp.ge.f32.partialorder %v1896, 0.0
      %vm1899 = vcmp.ge.f32.partialorder %v1897, 0.0
      %v1900 = vmul.f32 %v1896, 0.01
      %v1901 = vmul.f32 %v1897, 0.01
      %v1902 = vsel %vm1898, %v1896, %v1900
      %v1903 = vsel %vm1899, %v1897, %v1901
      %v1904 = vpack.c.bf16 %v1903, %v1902
      %v1905 = vld [vmem:[%s7] sm:$0xf]
      %v1906 = vld [vmem:[%s7 + $0x4] sm:$0xf]
      %v1907 = vld [vmem:[%s7 + $0x8] sm:$0xf]
      %v1908 = vld [vmem:[%s7 + $0xc] sm:$0xf]
      %v1909 = vld [vmem:[%s7 + $0x10] sm:$0x3]
      %v1915 = vunpack.c.l.b16 %v1905
      %v1916 = vunpack.c.l.b16 %v1906
      %v1917 = vunpack.c.l.b16 %v1907
      %v1918 = vunpack.c.l.b16 %v1908
      %v1919 = vunpack.c.l.b16 %v1909
      %v1920 = vpack.c.b16 %v1916, %v1915
      %v1921 = vpack.c.b16 %v1918, %v1917
      %v1922 = vpack.c.b16 %v1919, %v1919
      %vm1923 = vcmask 130048
      %v1925 = vsel %vm1923, %v1920, 0
      %v1928 = vsel %vm1923, %v1921, 0
      %v1931 = vsel %vm1923, %v1922, 0
      %1933 = vmatprep.subr.bf16.mxu0 0
      %1934 = vmatpush1.bf16.msra.mxu0 %v1904
      %1935 = vmatprep.subr.bf16.mxu0 0
      %1936 = vmatpush1.bf16.msra.mxu0 0
      %1937 = vmatprep.subr.bf16.mxu0 0
      %1938 = vmatpush1.bf16.msra.mxu0 0
      %1939 = vmatprep.subr.bf16.mxu0 0
      %1940 = vmatpush1.bf16.msra.mxu0 0
      %1941 = vmatprep.subr.bf16.mxu0 0
      %1942 = vmatpush1.bf16.msra.mxu0 0
      %1943 = vmatprep.subr.bf16.mxu0 0
      %1944 = vmatpush1.bf16.msra.mxu0 0
      %1945 = vmatprep.subr.bf16.mxu0 0
      %1946 = vmatpush1.bf16.msra.mxu0 0
      %1947 = vmatprep.subr.bf16.mxu0 0
      %1948 = vmatpush1.bf16.msra.mxu0 0
      %1949 = vmatprep.subr.bf16.mxu0 0
      %1950 = vmatpush1.bf16.msra.mxu0 0
      %1951 = vmatprep.subr.bf16.mxu0 0
      %1952 = vmatpush1.bf16.msra.mxu0 0
      %1953 = vmatprep.subr.bf16.mxu0 0
      %1954 = vmatpush1.bf16.msra.mxu0 0
      %1955 = vmatprep.subr.bf16.mxu0 0
      %1956 = vmatpush1.bf16.msra.mxu0 0
      %1957 = vmatprep.subr.bf16.mxu0 0
      %1958 = vmatpush1.bf16.msra.mxu0 0
      %1959 = vmatprep.subr.bf16.mxu0 0
      %1960 = vmatpush1.bf16.msra.mxu0 0
      %1961 = vmatprep.subr.bf16.mxu0 0
      %1962 = vmatpush1.bf16.msra.mxu0 0
      %1963 = vmatprep.subr.bf16.mxu0 0
      %1964 = vmatpush1.bf16.msra.mxu0 0
      %1965 = vmatprep.mubr.bf16.mxu0 0
      %1966 = vmatmul.mubr.bf16.gmra.mrb[0].mxu0 %v1925
      %v1967 = vpop.f32.mrb[0].mxu0
      %v1968 = vadd.f32 0.0, %v1967
      %v1969 = vpop.f32.mrb[0].mxu0
      %v1970 = vpop.f32.mrb[0].mxu0
      %v1971 = vadd.f32 0.0, %v1970
      %v1972 = vpop.f32.mrb[0].mxu0
      %1973 = vmatprep.mubr.bf16.mxu0 0
      %1974 = vmatmul.mubr.bf16.gmra.mrb[0].mxu0 %v1928
      %v1975 = vpop.f32.mrb[0].mxu0
      %v1976 = vadd.f32 0.0, %v1975
      %v1977 = vpop.f32.mrb[0].mxu0
      %v1978 = vpop.f32.mrb[0].mxu0
      %v1979 = vadd.f32 0.0, %v1978
      %v1980 = vpop.f32.mrb[0].mxu0
      %1981 = vmatprep.mubr.bf16.mxu0 0
      %1982 = vmatmul.mubr.bf16.gmra.mrb[0].mxu0 %v1931
      %v1983 = vpop.f32.mrb[0].mxu0
      %v1984 = vadd.f32 0.0, %v1983
      %v1985 = vpop.f32.mrb[0].mxu0
      %v1986 = vpop.f32.mrb[0].mxu0
      %v1987 = vpop.f32.mrb[0].mxu0
      %1988 = vdwg.mxu0
      %v1989 = vpack.c.bf16 %v1971, %v1968
      %v1990 = vpack.c.bf16 %v1979, %v1976
      %v1991 = vpack.c.bf16 %v1984, %v1984
      %v1992 = vld [vmem:[%s8] sm:$0xff]
      %v1993 = vld [vmem:[%s8 + $0x8] sm:$0xff]
      %v1994 = vld [vmem:[%s8 + $0x10] sm:$0xff]
      %v1995 = vld [vmem:[%s8 + $0x18] sm:$0xff]
      %v1996 = vld [vmem:[%s8 + $0x20] sm:$0xff]
      %v1997 = vld [vmem:[%s8 + $0x28] sm:$0xff]
      %v1998 = vld [vmem:[%s8 + $0x30] sm:$0xff]
      %v1999 = vld [vmem:[%s8 + $0x38] sm:$0xff]
      %v2000 = vld [vmem:[%s8 + $0x40] sm:$0xff]
      %v2001 = vld [vmem:[%s8 + $0x48] sm:$0xff]
      %v2002 = vld [vmem:[%s8 + $0x50] sm:$0xff]
      %v2003 = vld [vmem:[%s8 + $0x58] sm:$0xff]
      %v2004 = vld [vmem:[%s8 + $0x60] sm:$0xff]
      %v2005 = vld [vmem:[%s8 + $0x68] sm:$0xff]
      %v2006 = vld [vmem:[%s8 + $0x70] sm:$0xff]
      %v2007 = vld [vmem:[%s8 + $0x78] sm:$0xff]
      %v2008 = vld [vmem:[%s8 + $0x80] sm:$0xff]
      %v2009 = vld [vmem:[%s8 + $0x88] sm:$0xff]
      %v2010 = vld [vmem:[%s8 + $0x90] sm:$0xff]
      %v2011 = vld [vmem:[%s8 + $0x98] sm:$0xff]
      %v2012 = vld [vmem:[%s8 + $0xa0] sm:$0xff]
      %v2013 = vld [vmem:[%s8 + $0xa8] sm:$0xff]
      %v2014 = vld [vmem:[%s8 + $0xb0] sm:$0xff]
      %v2015 = vld [vmem:[%s8 + $0xb8] sm:$0xff]
      %v2016 = vld [vmem:[%s8 + $0xc0] sm:$0xff]
      %v2017 = vld [vmem:[%s8 + $0xc8] sm:$0xff]
      %v2018 = vld [vmem:[%s8 + $0xd0] sm:$0xff]
      %v2019 = vld [vmem:[%s8 + $0xd8] sm:$0xff]
      %v2020 = vld [vmem:[%s8 + $0xe0] sm:$0xff]
      %v2021 = vld [vmem:[%s8 + $0xe8] sm:$0xff]
      %v2022 = vld [vmem:[%s8 + $0xf0] sm:$0xff]
      %v2023 = vld [vmem:[%s8 + $0xf8] sm:$0xff]
      %v2025 = vrot.slane %v1989, 2
      %v2043 = vunpack.c.l.b16 %v2008
      %v2044 = vunpack.c.h.b16 %v2008
      %v2045 = vunpack.c.l.b16 %v2009
      %v2046 = vunpack.c.h.b16 %v2009
      %v2047 = vunpack.c.l.b16 %v2010
      %v2048 = vunpack.c.h.b16 %v2010
      %v2049 = vunpack.c.l.b16 %v2011
      %v2050 = vunpack.c.h.b16 %v2011
      %v2051 = vunpack.c.l.b16 %v2012
      %v2052 = vunpack.c.h.b16 %v2012
      %v2053 = vunpack.c.l.b16 %v2013
      %v2054 = vunpack.c.h.b16 %v2013
      %v2055 = vunpack.c.l.b16 %v2014
      %v2056 = vunpack.c.h.b16 %v2014
      %v2057 = vunpack.c.l.b16 %v2015
      %v2058 = vunpack.c.h.b16 %v2015
      %v2059 = vunpack.c.l.b16 %v2016
      %v2060 = vunpack.c.h.b16 %v2016
      %v2061 = vunpack.c.l.b16 %v2017
      %v2062 = vunpack.c.h.b16 %v2017
      %v2063 = vunpack.c.l.b16 %v2018
      %v2064 = vunpack.c.h.b16 %v2018
      %v2065 = vunpack.c.l.b16 %v2019
      %v2066 = vunpack.c.h.b16 %v2019
      %v2067 = vunpack.c.l.b16 %v2020
      %v2068 = vunpack.c.h.b16 %v2020
      %v2069 = vunpack.c.l.b16 %v2021
      %v2070 = vunpack.c.h.b16 %v2021
      %v2071 = vunpack.c.l.b16 %v2022
      %v2072 = vunpack.c.h.b16 %v2022
      %v2073 = vunpack.c.l.b16 %v2023
      %v2074 = vunpack.c.h.b16 %v2023
      %v2075 = vpack.c.b16 %v2045, %v2043
      %v2076 = vpack.c.b16 %v2046, %v2044
      %v2077 = vpack.c.b16 %v2049, %v2047
      %v2078 = vpack.c.b16 %v2050, %v2048
      %v2079 = vpack.c.b16 %v2053, %v2051
      %v2080 = vpack.c.b16 %v2054, %v2052
      %v2081 = vpack.c.b16 %v2057, %v2055
      %v2082 = vpack.c.b16 %v2058, %v2056
      %v2083 = vpack.c.b16 %v2061, %v2059
      %v2084 = vpack.c.b16 %v2062, %v2060
      %v2085 = vpack.c.b16 %v2065, %v2063
      %v2086 = vpack.c.b16 %v2066, %v2064
      %v2087 = vpack.c.b16 %v2069, %v2067
      %v2088 = vpack.c.b16 %v2070, %v2068
      %v2089 = vpack.c.b16 %v2073, %v2071
      %v2090 = vpack.c.b16 %v2074, %v2072
      %2107 = vmatprep.subr.bf16.mxu0 %v2076
      %2108 = vmatpush1.bf16.msra.mxu0 %v2075
      %2109 = vmatprep.subr.bf16.mxu0 %v2078
      %2110 = vmatpush1.bf16.msra.mxu0 %v2077
      %2111 = vmatprep.subr.bf16.mxu0 %v2080
      %2112 = vmatpush1.bf16.msra.mxu0 %v2079
      %2113 = vmatprep.subr.bf16.mxu0 %v2082
      %2114 = vmatpush1.bf16.msra.mxu0 %v2081
      %2115 = vmatprep.subr.bf16.mxu0 %v2084
      %2116 = vmatpush1.bf16.msra.mxu0 %v2083
      %2117 = vmatprep.subr.bf16.mxu0 %v2086
      %2118 = vmatpush1.bf16.msra.mxu0 %v2085
      %2119 = vmatprep.subr.bf16.mxu0 %v2088
      %2120 = vmatpush1.bf16.msra.mxu0 %v2087
      %2121 = vmatprep.subr.bf16.mxu0 %v2090
      %2122 = vmatpush1.bf16.msra.mxu0 %v2089
      %2123 = vmatprep.subr.bf16.mxu0 0
      %2124 = vmatpush1.bf16.msra.mxu0 0
      %2125 = vmatprep.subr.bf16.mxu0 0
      %2126 = vmatpush1.bf16.msra.mxu0 0
      %2127 = vmatprep.subr.bf16.mxu0 0
      %2128 = vmatpush1.bf16.msra.mxu0 0
      %2129 = vmatprep.subr.bf16.mxu0 0
      %2130 = vmatpush1.bf16.msra.mxu0 0
      %2131 = vmatprep.subr.bf16.mxu0 0
      %2132 = vmatpush1.bf16.msra.mxu0 0
      %2133 = vmatprep.subr.bf16.mxu0 0
      %2134 = vmatpush1.bf16.msra.mxu0 0
      %2135 = vmatprep.subr.bf16.mxu0 0
      %2136 = vmatpush1.bf16.msra.mxu0 0
      %2137 = vmatprep.subr.bf16.mxu0 0
      %2138 = vmatpush1.bf16.msra.mxu0 0
      %2139 = vmatprep.mubr.bf16.mxu0 0
      %2140 = vmatmul.mubr.bf16.gmra.mrb[0].mxu0 %v2025
      %v2141 = vpop.f32.mrb[0].mxu0
      %v2142 = vadd.f32 0.0, %v2141
      %v2143 = vpop.f32.mrb[0].mxu0
      %v2144 = vadd.f32 0.0, %v2143
      %v2145 = vpop.f32.mrb[0].mxu0
      %v2146 = vpop.f32.mrb[0].mxu0
      %2147 = vdwg.mxu0
      %v2164 = vunpack.c.l.b16 %v1992
      %v2165 = vunpack.c.h.b16 %v1992
      %v2166 = vunpack.c.l.b16 %v1993
      %v2167 = vunpack.c.h.b16 %v1993
      %v2168 = vunpack.c.l.b16 %v1994
      %v2169 = vunpack.c.h.b16 %v1994
      %v2170 = vunpack.c.l.b16 %v1995
      %v2171 = vunpack.c.h.b16 %v1995
      %v2172 = vunpack.c.l.b16 %v1996
      %v2173 = vunpack.c.h.b16 %v1996
      %v2174 = vunpack.c.l.b16 %v1997
      %v2175 = vunpack.c.h.b16 %v1997
      %v2176 = vunpack.c.l.b16 %v1998
      %v2177 = vunpack.c.h.b16 %v1998
      %v2178 = vunpack.c.l.b16 %v1999
      %v2179 = vunpack.c.h.b16 %v1999
      %v2180 = vunpack.c.l.b16 %v2000
      %v2181 = vunpack.c.h.b16 %v2000
      %v2182 = vunpack.c.l.b16 %v2001
      %v2183 = vunpack.c.h.b16 %v2001
      %v2184 = vunpack.c.l.b16 %v2002
      %v2185 = vunpack.c.h.b16 %v2002
      %v2186 = vunpack.c.l.b16 %v2003
      %v2187 = vunpack.c.h.b16 %v2003
      %v2188 = vunpack.c.l.b16 %v2004
      %v2189 = vunpack.c.h.b16 %v2004
      %v2190 = vunpack.c.l.b16 %v2005
      %v2191 = vunpack.c.h.b16 %v2005
      %v2192 = vunpack.c.l.b16 %v2006
      %v2193 = vunpack.c.h.b16 %v2006
      %v2194 = vunpack.c.l.b16 %v2007
      %v2195 = vunpack.c.h.b16 %v2007
      %v2196 = vpack.c.b16 %v2166, %v2164
      %v2197 = vpack.c.b16 %v2167, %v2165
      %v2198 = vpack.c.b16 %v2170, %v2168
      %v2199 = vpack.c.b16 %v2171, %v2169
      %v2200 = vpack.c.b16 %v2174, %v2172
      %v2201 = vpack.c.b16 %v2175, %v2173
      %v2202 = vpack.c.b16 %v2178, %v2176
      %v2203 = vpack.c.b16 %v2179, %v2177
      %v2204 = vpack.c.b16 %v2182, %v2180
      %v2205 = vpack.c.b16 %v2183, %v2181
      %v2206 = vpack.c.b16 %v2186, %v2184
      %v2207 = vpack.c.b16 %v2187, %v2185
      %v2208 = vpack.c.b16 %v2190, %v2188
      %v2209 = vpack.c.b16 %v2191, %v2189
      %v2210 = vpack.c.b16 %v2194, %v2192
      %v2211 = vpack.c.b16 %v2195, %v2193
      %2228 = vmatprep.subr.bf16.mxu0 %v2197
      %2229 = vmatpush1.bf16.msra.mxu0 %v2196
      %2230 = vmatprep.subr.bf16.mxu0 %v2199
      %2231 = vmatpush1.bf16.msra.mxu0 %v2198
      %2232 = vmatprep.subr.bf16.mxu0 %v2201
      %2233 = vmatpush1.bf16.msra.mxu0 %v2200
      %2234 = vmatprep.subr.bf16.mxu0 %v2203
      %2235 = vmatpush1.bf16.msra.mxu0 %v2202
      %2236 = vmatprep.subr.bf16.mxu0 %v2205
      %2237 = vmatpush1.bf16.msra.mxu0 %v2204
      %2238 = vmatprep.subr.bf16.mxu0 %v2207
      %2239 = vmatpush1.bf16.msra.mxu0 %v2206
      %2240 = vmatprep.subr.bf16.mxu0 %v2209
      %2241 = vmatpush1.bf16.msra.mxu0 %v2208
      %2242 = vmatprep.subr.bf16.mxu0 %v2211
      %2243 = vmatpush1.bf16.msra.mxu0 %v2210
      %2244 = vmatprep.subr.bf16.mxu0 0
      %2245 = vmatpush1.bf16.msra.mxu0 0
      %2246 = vmatprep.subr.bf16.mxu0 0
      %2247 = vmatpush1.bf16.msra.mxu0 0
      %2248 = vmatprep.subr.bf16.mxu0 0
      %2249 = vmatpush1.bf16.msra.mxu0 0
      %2250 = vmatprep.subr.bf16.mxu0 0
      %2251 = vmatpush1.bf16.msra.mxu0 0
      %2252 = vmatprep.subr.bf16.mxu0 0
      %2253 = vmatpush1.bf16.msra.mxu0 0
      %2254 = vmatprep.subr.bf16.mxu0 0
      %2255 = vmatpush1.bf16.msra.mxu0 0
      %2256 = vmatprep.subr.bf16.mxu0 0
      %2257 = vmatpush1.bf16.msra.mxu0 0
      %2258 = vmatprep.subr.bf16.mxu0 0
      %2259 = vmatpush1.bf16.msra.mxu0 0
      %2260 = vmatprep.mubr.bf16.mxu0 0
      %2261 = vmatmul.mubr.bf16.gmra.mrb[0].mxu0 %v1989
      %v2262 = vpop.f32.mrb[0].mxu0
      %v2263 = vadd.f32 %v2142, %v2262
      %v2264 = vpop.f32.mrb[0].mxu0
      %v2265 = vadd.f32 %v2144, %v2264
      %v2266 = vpop.f32.mrb[0].mxu0
      %v2267 = vpop.f32.mrb[0].mxu0
      %2268 = vdwg.mxu0
      %v2269 = vld [vmem:[%s8 + $0x100] sm:$0xff]
      %v2270 = vld [vmem:[%s8 + $0x108] sm:$0xff]
      %v2271 = vld [vmem:[%s8 + $0x110] sm:$0xff]
      %v2272 = vld [vmem:[%s8 + $0x118] sm:$0xff]
      %v2273 = vld [vmem:[%s8 + $0x120] sm:$0xff]
      %v2274 = vld [vmem:[%s8 + $0x128] sm:$0xff]
      %v2275 = vld [vmem:[%s8 + $0x130] sm:$0xff]
      %v2276 = vld [vmem:[%s8 + $0x138] sm:$0xff]
      %v2277 = vld [vmem:[%s8 + $0x140] sm:$0xff]
      %v2278 = vld [vmem:[%s8 + $0x148] sm:$0xff]
      %v2279 = vld [vmem:[%s8 + $0x150] sm:$0xff]
      %v2280 = vld [vmem:[%s8 + $0x158] sm:$0xff]
      %v2281 = vld [vmem:[%s8 + $0x160] sm:$0xff]
      %v2282 = vld [vmem:[%s8 + $0x168] sm:$0xff]
      %v2283 = vld [vmem:[%s8 + $0x170] sm:$0xff]
      %v2284 = vld [vmem:[%s8 + $0x178] sm:$0xff]
      %v2285 = vrot.slane %v1989, 4
      %v2303 = vunpack.c.l.b16 %v2269
      %v2304 = vunpack.c.h.b16 %v2269
      %v2305 = vunpack.c.l.b16 %v2270
      %v2306 = vunpack.c.h.b16 %v2270
      %v2307 = vunpack.c.l.b16 %v2271
      %v2308 = vunpack.c.h.b16 %v2271
      %v2309 = vunpack.c.l.b16 %v2272
      %v2310 = vunpack.c.h.b16 %v2272
      %v2311 = vunpack.c.l.b16 %v2273
      %v2312 = vunpack.c.h.b16 %v2273
      %v2313 = vunpack.c.l.b16 %v2274
      %v2314 = vunpack.c.h.b16 %v2274
      %v2315 = vunpack.c.l.b16 %v2275
      %v2316 = vunpack.c.h.b16 %v2275
      %v2317 = vunpack.c.l.b16 %v2276
      %v2318 = vunpack.c.h.b16 %v2276
      %v2319 = vunpack.c.l.b16 %v2277
      %v2320 = vunpack.c.h.b16 %v2277
      %v2321 = vunpack.c.l.b16 %v2278
      %v2322 = vunpack.c.h.b16 %v2278
      %v2323 = vunpack.c.l.b16 %v2279
      %v2324 = vunpack.c.h.b16 %v2279
      %v2325 = vunpack.c.l.b16 %v2280
      %v2326 = vunpack.c.h.b16 %v2280
      %v2327 = vunpack.c.l.b16 %v2281
      %v2328 = vunpack.c.h.b16 %v2281
      %v2329 = vunpack.c.l.b16 %v2282
      %v2330 = vunpack.c.h.b16 %v2282
      %v2331 = vunpack.c.l.b16 %v2283
      %v2332 = vunpack.c.h.b16 %v2283
      %v2333 = vunpack.c.l.b16 %v2284
      %v2334 = vunpack.c.h.b16 %v2284
      %v2335 = vpack.c.b16 %v2305, %v2303
      %v2336 = vpack.c.b16 %v2306, %v2304
      %v2337 = vpack.c.b16 %v2309, %v2307
      %v2338 = vpack.c.b16 %v2310, %v2308
      %v2339 = vpack.c.b16 %v2313, %v2311
      %v2340 = vpack.c.b16 %v2314, %v2312
      %v2341 = vpack.c.b16 %v2317, %v2315
      %v2342 = vpack.c.b16 %v2318, %v2316
      %v2343 = vpack.c.b16 %v2321, %v2319
      %v2344 = vpack.c.b16 %v2322, %v2320
      %v2345 = vpack.c.b16 %v2325, %v2323
      %v2346 = vpack.c.b16 %v2326, %v2324
      %v2347 = vpack.c.b16 %v2329, %v2327
      %v2348 = vpack.c.b16 %v2330, %v2328
      %v2349 = vpack.c.b16 %v2333, %v2331
      %v2350 = vpack.c.b16 %v2334, %v2332
      %2367 = vmatprep.subr.bf16.mxu0 %v2336
      %2368 = vmatpush1.bf16.msra.mxu0 %v2335
      %2369 = vmatprep.subr.bf16.mxu0 %v2338
      %2370 = vmatpush1.bf16.msra.mxu0 %v2337
      %2371 = vmatprep.subr.bf16.mxu0 %v2340
      %2372 = vmatpush1.bf16.msra.mxu0 %v2339
      %2373 = vmatprep.subr.bf16.mxu0 %v2342
      %2374 = vmatpush1.bf16.msra.mxu0 %v2341
      %2375 = vmatprep.subr.bf16.mxu0 %v2344
      %2376 = vmatpush1.bf16.msra.mxu0 %v2343
      %2377 = vmatprep.subr.bf16.mxu0 %v2346
      %2378 = vmatpush1.bf16.msra.mxu0 %v2345
      %2379 = vmatprep.subr.bf16.mxu0 %v2348
      %2380 = vmatpush1.bf16.msra.mxu0 %v2347
      %2381 = vmatprep.subr.bf16.mxu0 %v2350
      %2382 = vmatpush1.bf16.msra.mxu0 %v2349
      %2383 = vmatprep.subr.bf16.mxu0 0
      %2384 = vmatpush1.bf16.msra.mxu0 0
      %2385 = vmatprep.subr.bf16.mxu0 0
      %2386 = vmatpush1.bf16.msra.mxu0 0
      %2387 = vmatprep.subr.bf16.mxu0 0
      %2388 = vmatpush1.bf16.msra.mxu0 0
      %2389 = vmatprep.subr.bf16.mxu0 0
      %2390 = vmatpush1.bf16.msra.mxu0 0
      %2391 = vmatprep.subr.bf16.mxu0 0
      %2392 = vmatpush1.bf16.msra.mxu0 0
      %2393 = vmatprep.subr.bf16.mxu0 0
      %2394 = vmatpush1.bf16.msra.mxu0 0
      %2395 = vmatprep.subr.bf16.mxu0 0
      %2396 = vmatpush1.bf16.msra.mxu0 0
      %2397 = vmatprep.subr.bf16.mxu0 0
      %2398 = vmatpush1.bf16.msra.mxu0 0
      %2399 = vmatprep.mubr.bf16.mxu0 0
      %2400 = vmatmul.mubr.bf16.gmra.mrb[0].mxu0 %v2285
      %v2401 = vpop.f32.mrb[0].mxu0
      %v2402 = vadd.f32 0.0, %v2401
      %v2403 = vpop.f32.mrb[0].mxu0
      %v2404 = vadd.f32 0.0, %v2403
      %v2405 = vpop.f32.mrb[0].mxu0
      %v2406 = vpop.f32.mrb[0].mxu0
      %2407 = vdwg.mxu0
      %v2408 = vadd.f32 %v2263, %v2402
      %v2409 = vadd.f32 %v2265, %v2404
      %v2410 = vld [vmem:[%s8 + $0x180] sm:$0xff]
      %v2411 = vld [vmem:[%s8 + $0x188] sm:$0xff]
      %v2412 = vld [vmem:[%s8 + $0x190] sm:$0xff]
      %v2413 = vld [vmem:[%s8 + $0x198] sm:$0xff]
      %v2414 = vld [vmem:[%s8 + $0x1a0] sm:$0xff]
      %v2415 = vld [vmem:[%s8 + $0x1a8] sm:$0xff]
      %v2416 = vld [vmem:[%s8 + $0x1b0] sm:$0xff]
      %v2417 = vld [vmem:[%s8 + $0x1b8] sm:$0xff]
      %v2418 = vld [vmem:[%s8 + $0x1c0] sm:$0xff]
      %v2419 = vld [vmem:[%s8 + $0x1c8] sm:$0xff]
      %v2420 = vld [vmem:[%s8 + $0x1d0] sm:$0xff]
      %v2421 = vld [vmem:[%s8 + $0x1d8] sm:$0xff]
      %v2422 = vld [vmem:[%s8 + $0x1e0] sm:$0xff]
      %v2423 = vld [vmem:[%s8 + $0x1e8] sm:$0xff]
      %v2424 = vld [vmem:[%s8 + $0x1f0] sm:$0xff]
      %v2425 = vld [vmem:[%s8 + $0x1f8] sm:$0xff]
      %v2426 = vrot.slane %v1989, 6
      %v2444 = vunpack.c.l.b16 %v2410
      %v2445 = vunpack.c.h.b16 %v2410
      %v2446 = vunpack.c.l.b16 %v2411
      %v2447 = vunpack.c.h.b16 %v2411
      %v2448 = vunpack.c.l.b16 %v2412
      %v2449 = vunpack.c.h.b16 %v2412
      %v2450 = vunpack.c.l.b16 %v2413
      %v2451 = vunpack.c.h.b16 %v2413
      %v2452 = vunpack.c.l.b16 %v2414
      %v2453 = vunpack.c.h.b16 %v2414
      %v2454 = vunpack.c.l.b16 %v2415
      %v2455 = vunpack.c.h.b16 %v2415
      %v2456 = vunpack.c.l.b16 %v2416
      %v2457 = vunpack.c.h.b16 %v2416
      %v2458 = vunpack.c.l.b16 %v2417
      %v2459 = vunpack.c.h.b16 %v2417
      %v2460 = vunpack.c.l.b16 %v2418
      %v2461 = vunpack.c.h.b16 %v2418
      %v2462 = vunpack.c.l.b16 %v2419
      %v2463 = vunpack.c.h.b16 %v2419
      %v2464 = vunpack.c.l.b16 %v2420
      %v2465 = vunpack.c.h.b16 %v2420
      %v2466 = vunpack.c.l.b16 %v2421
      %v2467 = vunpack.c.h.b16 %v2421
      %v2468 = vunpack.c.l.b16 %v2422
      %v2469 = vunpack.c.h.b16 %v2422
      %v2470 = vunpack.c.l.b16 %v2423
      %v2471 = vunpack.c.h.b16 %v2423
      %v2472 = vunpack.c.l.b16 %v2424
      %v2473 = vunpack.c.h.b16 %v2424
      %v2474 = vunpack.c.l.b16 %v2425
      %v2475 = vunpack.c.h.b16 %v2425
      %v2476 = vpack.c.b16 %v2446, %v2444
      %v2477 = vpack.c.b16 %v2447, %v2445
      %v2478 = vpack.c.b16 %v2450, %v2448
      %v2479 = vpack.c.b16 %v2451, %v2449
      %v2480 = vpack.c.b16 %v2454, %v2452
      %v2481 = vpack.c.b16 %v2455, %v2453
      %v2482 = vpack.c.b16 %v2458, %v2456
      %v2483 = vpack.c.b16 %v2459, %v2457
      %v2484 = vpack.c.b16 %v2462, %v2460
      %v2485 = vpack.c.b16 %v2463, %v2461
      %v2486 = vpack.c.b16 %v2466, %v2464
      %v2487 = vpack.c.b16 %v2467, %v2465
      %v2488 = vpack.c.b16 %v2470, %v2468
      %v2489 = vpack.c.b16 %v2471, %v2469
      %v2490 = vpack.c.b16 %v2474, %v2472
      %v2491 = vpack.c.b16 %v2475, %v2473
      %2508 = vmatprep.subr.bf16.mxu0 %v2477
      %2509 = vmatpush1.bf16.msra.mxu0 %v2476
      %2510 = vmatprep.subr.bf16.mxu0 %v2479
      %2511 = vmatpush1.bf16.msra.mxu0 %v2478
      %2512 = vmatprep.subr.bf16.mxu0 %v2481
      %2513 = vmatpush1.bf16.msra.mxu0 %v2480
      %2514 = vmatprep.subr.bf16.mxu0 %v2483
      %2515 = vmatpush1.bf16.msra.mxu0 %v2482
      %2516 = vmatprep.subr.bf16.mxu0 %v2485
      %2517 = vmatpush1.bf16.msra.mxu0 %v2484
      %2518 = vmatprep.subr.bf16.mxu0 %v2487
      %2519 = vmatpush1.bf16.msra.mxu0 %v2486
      %2520 = vmatprep.subr.bf16.mxu0 %v2489
      %2521 = vmatpush1.bf16.msra.mxu0 %v2488
      %2522 = vmatprep.subr.bf16.mxu0 %v2491
      %2523 = vmatpush1.bf16.msra.mxu0 %v2490
      %2524 = vmatprep.subr.bf16.mxu0 0
      %2525 = vmatpush1.bf16.msra.mxu0 0
      %2526 = vmatprep.subr.bf16.mxu0 0
      %2527 = vmatpush1.bf16.msra.mxu0 0
      %2528 = vmatprep.subr.bf16.mxu0 0
      %2529 = vmatpush1.bf16.msra.mxu0 0
      %2530 = vmatprep.subr.bf16.mxu0 0
      %2531 = vmatpush1.bf16.msra.mxu0 0
      %2532 = vmatprep.subr.bf16.mxu0 0
      %2533 = vmatpush1.bf16.msra.mxu0 0
      %2534 = vmatprep.subr.bf16.mxu0 0
      %2535 = vmatpush1.bf16.msra.mxu0 0
      %2536 = vmatprep.subr.bf16.mxu0 0
      %2537 = vmatpush1.bf16.msra.mxu0 0
      %2538 = vmatprep.subr.bf16.mxu0 0
      %2539 = vmatpush1.bf16.msra.mxu0 0
      %2540 = vmatprep.mubr.bf16.mxu0 0
      %2541 = vmatmul.mubr.bf16.gmra.mrb[0].mxu0 %v2426
      %v2542 = vpop.f32.mrb[0].mxu0
      %v2543 = vadd.f32 0.0, %v2542
      %v2544 = vpop.f32.mrb[0].mxu0
      %v2545 = vadd.f32 0.0, %v2544
      %v2546 = vpop.f32.mrb[0].mxu0
      %v2547 = vpop.f32.mrb[0].mxu0
      %2548 = vdwg.mxu0
      %v2549 = vadd.f32 %v2408, %v2543
      %v2550 = vadd.f32 %v2409, %v2545
      %v2551 = vld [vmem:[%s8 + $0x200] sm:$0xff]
      %v2552 = vld [vmem:[%s8 + $0x208] sm:$0xff]
      %v2553 = vld [vmem:[%s8 + $0x210] sm:$0xff]
      %v2554 = vld [vmem:[%s8 + $0x218] sm:$0xff]
      %v2555 = vld [vmem:[%s8 + $0x220] sm:$0xff]
      %v2556 = vld [vmem:[%s8 + $0x228] sm:$0xff]
      %v2557 = vld [vmem:[%s8 + $0x230] sm:$0xff]
      %v2558 = vld [vmem:[%s8 + $0x238] sm:$0xff]
      %v2559 = vld [vmem:[%s8 + $0x240] sm:$0xff]
      %v2560 = vld [vmem:[%s8 + $0x248] sm:$0xff]
      %v2561 = vld [vmem:[%s8 + $0x250] sm:$0xff]
      %v2562 = vld [vmem:[%s8 + $0x258] sm:$0xff]
      %v2563 = vld [vmem:[%s8 + $0x260] sm:$0xff]
      %v2564 = vld [vmem:[%s8 + $0x268] sm:$0xff]
      %v2565 = vld [vmem:[%s8 + $0x270] sm:$0xff]
      %v2566 = vld [vmem:[%s8 + $0x278] sm:$0xff]
      %v2583 = vunpack.c.l.b16 %v2551
      %v2584 = vunpack.c.h.b16 %v2551
      %v2585 = vunpack.c.l.b16 %v2552
      %v2586 = vunpack.c.h.b16 %v2552
      %v2587 = vunpack.c.l.b16 %v2553
      %v2588 = vunpack.c.h.b16 %v2553
      %v2589 = vunpack.c.l.b16 %v2554
      %v2590 = vunpack.c.h.b16 %v2554
      %v2591 = vunpack.c.l.b16 %v2555
      %v2592 = vunpack.c.h.b16 %v2555
      %v2593 = vunpack.c.l.b16 %v2556
      %v2594 = vunpack.c.h.b16 %v2556
      %v2595 = vunpack.c.l.b16 %v2557
      %v2596 = vunpack.c.h.b16 %v2557
      %v2597 = vunpack.c.l.b16 %v2558
      %v2598 = vunpack.c.h.b16 %v2558
      %v2599 = vunpack.c.l.b16 %v2559
      %v2600 = vunpack.c.h.b16 %v2559
      %v2601 = vunpack.c.l.b16 %v2560
      %v2602 = vunpack.c.h.b16 %v2560
      %v2603 = vunpack.c.l.b16 %v2561
      %v2604 = vunpack.c.h.b16 %v2561
      %v2605 = vunpack.c.l.b16 %v2562
      %v2606 = vunpack.c.h.b16 %v2562
      %v2607 = vunpack.c.l.b16 %v2563
      %v2608 = vunpack.c.h.b16 %v2563
      %v2609 = vunpack.c.l.b16 %v2564
      %v2610 = vunpack.c.h.b16 %v2564
      %v2611 = vunpack.c.l.b16 %v2565
      %v2612 = vunpack.c.h.b16 %v2565
      %v2613 = vunpack.c.l.b16 %v2566
      %v2614 = vunpack.c.h.b16 %v2566
      %v2615 = vpack.c.b16 %v2585, %v2583
      %v2616 = vpack.c.b16 %v2586, %v2584
      %v2617 = vpack.c.b16 %v2589, %v2587
      %v2618 = vpack.c.b16 %v2590, %v2588
      %v2619 = vpack.c.b16 %v2593, %v2591
      %v2620 = vpack.c.b16 %v2594, %v2592
      %v2621 = vpack.c.b16 %v2597, %v2595
      %v2622 = vpack.c.b16 %v2598, %v2596
      %v2623 = vpack.c.b16 %v2601, %v2599
      %v2624 = vpack.c.b16 %v2602, %v2600
      %v2625 = vpack.c.b16 %v2605, %v2603
      %v2626 = vpack.c.b16 %v2606, %v2604
      %v2627 = vpack.c.b16 %v2609, %v2607
      %v2628 = vpack.c.b16 %v2610, %v2608
      %v2629 = vpack.c.b16 %v2613, %v2611
      %v2630 = vpack.c.b16 %v2614, %v2612
      %2647 = vmatprep.subr.bf16.mxu0 %v2616
      %2648 = vmatpush1.bf16.msra.mxu0 %v2615
      %2649 = vmatprep.subr.bf16.mxu0 %v2618
      %2650 = vmatpush1.bf16.msra.mxu0 %v2617
      %2651 = vmatprep.subr.bf16.mxu0 %v2620
      %2652 = vmatpush1.bf16.msra.mxu0 %v2619
      %2653 = vmatprep.subr.bf16.mxu0 %v2622
      %2654 = vmatpush1.bf16.msra.mxu0 %v2621
      %2655 = vmatprep.subr.bf16.mxu0 %v2624
      %2656 = vmatpush1.bf16.msra.mxu0 %v2623
      %2657 = vmatprep.subr.bf16.mxu0 %v2626
      %2658 = vmatpush1.bf16.msra.mxu0 %v2625
      %2659 = vmatprep.subr.bf16.mxu0 %v2628
      %2660 = vmatpush1.bf16.msra.mxu0 %v2627
      %2661 = vmatprep.subr.bf16.mxu0 %v2630
      %2662 = vmatpush1.bf16.msra.mxu0 %v2629
      %2663 = vmatprep.subr.bf16.mxu0 0
      %2664 = vmatpush1.bf16.msra.mxu0 0
      %2665 = vmatprep.subr.bf16.mxu0 0
      %2666 = vmatpush1.bf16.msra.mxu0 0
      %2667 = vmatprep.subr.bf16.mxu0 0
      %2668 = vmatpush1.bf16.msra.mxu0 0
      %2669 = vmatprep.subr.bf16.mxu0 0
      %2670 = vmatpush1.bf16.msra.mxu0 0
      %2671 = vmatprep.subr.bf16.mxu0 0
      %2672 = vmatpush1.bf16.msra.mxu0 0
      %2673 = vmatprep.subr.bf16.mxu0 0
      %2674 = vmatpush1.bf16.msra.mxu0 0
      %2675 = vmatprep.subr.bf16.mxu0 0
      %2676 = vmatpush1.bf16.msra.mxu0 0
      %2677 = vmatprep.subr.bf16.mxu0 0
      %2678 = vmatpush1.bf16.msra.mxu0 0
      %2679 = vmatprep.mubr.bf16.mxu0 0
      %2680 = vmatmul.mubr.bf16.gmra.mrb[0].mxu0 %v1990
      %v2681 = vpop.f32.mrb[0].mxu0
      %v2682 = vadd.f32 0.0, %v2681
      %v2683 = vpop.f32.mrb[0].mxu0
      %v2684 = vadd.f32 0.0, %v2683
      %v2685 = vpop.f32.mrb[0].mxu0
      %v2686 = vpop.f32.mrb[0].mxu0
      %2687 = vdwg.mxu0
      %v2688 = vadd.f32 %v2549, %v2682
      %v2689 = vadd.f32 %v2550, %v2684
      %v2690 = vld [vmem:[%s8 + $0x280] sm:$0xff]
      %v2691 = vld [vmem:[%s8 + $0x288] sm:$0xff]
      %v2692 = vld [vmem:[%s8 + $0x290] sm:$0xff]
      %v2693 = vld [vmem:[%s8 + $0x298] sm:$0xff]
      %v2694 = vld [vmem:[%s8 + $0x2a0] sm:$0xff]
      %v2695 = vld [vmem:[%s8 + $0x2a8] sm:$0xff]
      %v2696 = vld [vmem:[%s8 + $0x2b0] sm:$0xff]
      %v2697 = vld [vmem:[%s8 + $0x2b8] sm:$0xff]
      %v2698 = vld [vmem:[%s8 + $0x2c0] sm:$0xff]
      %v2699 = vld [vmem:[%s8 + $0x2c8] sm:$0xff]
      %v2700 = vld [vmem:[%s8 + $0x2d0] sm:$0xff]
      %v2701 = vld [vmem:[%s8 + $0x2d8] sm:$0xff]
      %v2702 = vld [vmem:[%s8 + $0x2e0] sm:$0xff]
      %v2703 = vld [vmem:[%s8 + $0x2e8] sm:$0xff]
      %v2704 = vld [vmem:[%s8 + $0x2f0] sm:$0xff]
      %v2705 = vld [vmem:[%s8 + $0x2f8] sm:$0xff]
      %v2707 = vrot.slane %v1990, 2
      %v2725 = vunpack.c.l.b16 %v2690
      %v2726 = vunpack.c.h.b16 %v2690
      %v2727 = vunpack.c.l.b16 %v2691
      %v2728 = vunpack.c.h.b16 %v2691
      %v2729 = vunpack.c.l.b16 %v2692
      %v2730 = vunpack.c.h.b16 %v2692
      %v2731 = vunpack.c.l.b16 %v2693
      %v2732 = vunpack.c.h.b16 %v2693
      %v2733 = vunpack.c.l.b16 %v2694
      %v2734 = vunpack.c.h.b16 %v2694
      %v2735 = vunpack.c.l.b16 %v2695
      %v2736 = vunpack.c.h.b16 %v2695
      %v2737 = vunpack.c.l.b16 %v2696
      %v2738 = vunpack.c.h.b16 %v2696
      %v2739 = vunpack.c.l.b16 %v2697
      %v2740 = vunpack.c.h.b16 %v2697
      %v2741 = vunpack.c.l.b16 %v2698
      %v2742 = vunpack.c.h.b16 %v2698
      %v2743 = vunpack.c.l.b16 %v2699
      %v2744 = vunpack.c.h.b16 %v2699
      %v2745 = vunpack.c.l.b16 %v2700
      %v2746 = vunpack.c.h.b16 %v2700
      %v2747 = vunpack.c.l.b16 %v2701
      %v2748 = vunpack.c.h.b16 %v2701
      %v2749 = vunpack.c.l.b16 %v2702
      %v2750 = vunpack.c.h.b16 %v2702
      %v2751 = vunpack.c.l.b16 %v2703
      %v2752 = vunpack.c.h.b16 %v2703
      %v2753 = vunpack.c.l.b16 %v2704
      %v2754 = vunpack.c.h.b16 %v2704
      %v2755 = vunpack.c.l.b16 %v2705
      %v2756 = vunpack.c.h.b16 %v2705
      %v2757 = vpack.c.b16 %v2727, %v2725
      %v2758 = vpack.c.b16 %v2728, %v2726
      %v2759 = vpack.c.b16 %v2731, %v2729
      %v2760 = vpack.c.b16 %v2732, %v2730
      %v2761 = vpack.c.b16 %v2735, %v2733
      %v2762 = vpack.c.b16 %v2736, %v2734
      %v2763 = vpack.c.b16 %v2739, %v2737
      %v2764 = vpack.c.b16 %v2740, %v2738
      %v2765 = vpack.c.b16 %v2743, %v2741
      %v2766 = vpack.c.b16 %v2744, %v2742
      %v2767 = vpack.c.b16 %v2747, %v2745
      %v2768 = vpack.c.b16 %v2748, %v2746
      %v2769 = vpack.c.b16 %v2751, %v2749
      %v2770 = vpack.c.b16 %v2752, %v2750
      %v2771 = vpack.c.b16 %v2755, %v2753
      %v2772 = vpack.c.b16 %v2756, %v2754
      %2789 = vmatprep.subr.bf16.mxu0 %v2758
      %2790 = vmatpush1.bf16.msra.mxu0 %v2757
      %2791 = vmatprep.subr.bf16.mxu0 %v2760
      %2792 = vmatpush1.bf16.msra.mxu0 %v2759
      %2793 = vmatprep.subr.bf16.mxu0 %v2762
      %2794 = vmatpush1.bf16.msra.mxu0 %v2761
      %2795 = vmatprep.subr.bf16.mxu0 %v2764
      %2796 = vmatpush1.bf16.msra.mxu0 %v2763
      %2797 = vmatprep.subr.bf16.mxu0 %v2766
      %2798 = vmatpush1.bf16.msra.mxu0 %v2765
      %2799 = vmatprep.subr.bf16.mxu0 %v2768
      %2800 = vmatpush1.bf16.msra.mxu0 %v2767
      %2801 = vmatprep.subr.bf16.mxu0 %v2770
      %2802 = vmatpush1.bf16.msra.mxu0 %v2769
      %2803 = vmatprep.subr.bf16.mxu0 %v2772
      %2804 = vmatpush1.bf16.msra.mxu0 %v2771
      %2805 = vmatprep.subr.bf16.mxu0 0
      %2806 = vmatpush1.bf16.msra.mxu0 0
      %2807 = vmatprep.subr.bf16.mxu0 0
      %2808 = vmatpush1.bf16.msra.mxu0 0
      %2809 = vmatprep.subr.bf16.mxu0 0
      %2810 = vmatpush1.bf16.msra.mxu0 0
      %2811 = vmatprep.subr.bf16.mxu0 0
      %2812 = vmatpush1.bf16.msra.mxu0 0
      %2813 = vmatprep.subr.bf16.mxu0 0
      %2814 = vmatpush1.bf16.msra.mxu0 0
      %2815 = vmatprep.subr.bf16.mxu0 0
      %2816 = vmatpush1.bf16.msra.mxu0 0
      %2817 = vmatprep.subr.bf16.mxu0 0
      %2818 = vmatpush1.bf16.msra.mxu0 0
      %2819 = vmatprep.subr.bf16.mxu0 0
      %2820 = vmatpush1.bf16.msra.mxu0 0
      %2821 = vmatprep.mubr.bf16.mxu0 0
      %2822 = vmatmul.mubr.bf16.gmra.mrb[0].mxu0 %v2707
      %v2823 = vpop.f32.mrb[0].mxu0
      %v2824 = vadd.f32 0.0, %v2823
      %v2825 = vpop.f32.mrb[0].mxu0
      %v2826 = vadd.f32 0.0, %v2825
      %v2827 = vpop.f32.mrb[0].mxu0
      %v2828 = vpop.f32.mrb[0].mxu0
      %2829 = vdwg.mxu0
      %v2830 = vadd.f32 %v2688, %v2824
      %v2831 = vadd.f32 %v2689, %v2826
      %v2832 = vld [vmem:[%s8 + $0x300] sm:$0xff]
      %v2833 = vld [vmem:[%s8 + $0x308] sm:$0xff]
      %v2834 = vld [vmem:[%s8 + $0x310] sm:$0xff]
      %v2835 = vld [vmem:[%s8 + $0x318] sm:$0xff]
      %v2836 = vld [vmem:[%s8 + $0x320] sm:$0xff]
      %v2837 = vld [vmem:[%s8 + $0x328] sm:$0xff]
      %v2838 = vld [vmem:[%s8 + $0x330] sm:$0xff]
      %v2839 = vld [vmem:[%s8 + $0x338] sm:$0xff]
      %v2840 = vld [vmem:[%s8 + $0x340] sm:$0xff]
      %v2841 = vld [vmem:[%s8 + $0x348] sm:$0xff]
      %v2842 = vld [vmem:[%s8 + $0x350] sm:$0xff]
      %v2843 = vld [vmem:[%s8 + $0x358] sm:$0xff]
      %v2844 = vld [vmem:[%s8 + $0x360] sm:$0xff]
      %v2845 = vld [vmem:[%s8 + $0x368] sm:$0xff]
      %v2846 = vld [vmem:[%s8 + $0x370] sm:$0xff]
      %v2847 = vld [vmem:[%s8 + $0x378] sm:$0xff]
      %v2848 = vrot.slane %v1990, 4
      %v2866 = vunpack.c.l.b16 %v2832
      %v2867 = vunpack.c.h.b16 %v2832
      %v2868 = vunpack.c.l.b16 %v2833
      %v2869 = vunpack.c.h.b16 %v2833
      %v2870 = vunpack.c.l.b16 %v2834
      %v2871 = vunpack.c.h.b16 %v2834
      %v2872 = vunpack.c.l.b16 %v2835
      %v2873 = vunpack.c.h.b16 %v2835
      %v2874 = vunpack.c.l.b16 %v2836
      %v2875 = vunpack.c.h.b16 %v2836
      %v2876 = vunpack.c.l.b16 %v2837
      %v2877 = vunpack.c.h.b16 %v2837
      %v2878 = vunpack.c.l.b16 %v2838
      %v2879 = vunpack.c.h.b16 %v2838
      %v2880 = vunpack.c.l.b16 %v2839
      %v2881 = vunpack.c.h.b16 %v2839
      %v2882 = vunpack.c.l.b16 %v2840
      %v2883 = vunpack.c.h.b16 %v2840
      %v2884 = vunpack.c.l.b16 %v2841
      %v2885 = vunpack.c.h.b16 %v2841
      %v2886 = vunpack.c.l.b16 %v2842
      %v2887 = vunpack.c.h.b16 %v2842
      %v2888 = vunpack.c.l.b16 %v2843
      %v2889 = vunpack.c.h.b16 %v2843
      %v2890 = vunpack.c.l.b16 %v2844
      %v2891 = vunpack.c.h.b16 %v2844
      %v2892 = vunpack.c.l.b16 %v2845
      %v2893 = vunpack.c.h.b16 %v2845
      %v2894 = vunpack.c.l.b16 %v2846
      %v2895 = vunpack.c.h.b16 %v2846
      %v2896 = vunpack.c.l.b16 %v2847
      %v2897 = vunpack.c.h.b16 %v2847
      %v2898 = vpack.c.b16 %v2868, %v2866
      %v2899 = vpack.c.b16 %v2869, %v2867
      %v2900 = vpack.c.b16 %v2872, %v2870
      %v2901 = vpack.c.b16 %v2873, %v2871
      %v2902 = vpack.c.b16 %v2876, %v2874
      %v2903 = vpack.c.b16 %v2877, %v2875
      %v2904 = vpack.c.b16 %v2880, %v2878
      %v2905 = vpack.c.b16 %v2881, %v2879
      %v2906 = vpack.c.b16 %v2884, %v2882
      %v2907 = vpack.c.b16 %v2885, %v2883
      %v2908 = vpack.c.b16 %v2888, %v2886
      %v2909 = vpack.c.b16 %v2889, %v2887
      %v2910 = vpack.c.b16 %v2892, %v2890
      %v2911 = vpack.c.b16 %v2893, %v2891
      %v2912 = vpack.c.b16 %v2896, %v2894
      %v2913 = vpack.c.b16 %v2897, %v2895
      %2930 = vmatprep.subr.bf16.mxu0 %v2899
      %2931 = vmatpush1.bf16.msra.mxu0 %v2898
      %2932 = vmatprep.subr.bf16.mxu0 %v2901
      %2933 = vmatpush1.bf16.msra.mxu0 %v2900
      %2934 = vmatprep.subr.bf16.mxu0 %v2903
      %2935 = vmatpush1.bf16.msra.mxu0 %v2902
      %2936 = vmatprep.subr.bf16.mxu0 %v2905
      %2937 = vmatpush1.bf16.msra.mxu0 %v2904
      %2938 = vmatprep.subr.bf16.mxu0 %v2907
      %2939 = vmatpush1.bf16.msra.mxu0 %v2906
      %2940 = vmatprep.subr.bf16.mxu0 %v2909
      %2941 = vmatpush1.bf16.msra.mxu0 %v2908
      %2942 = vmatprep.subr.bf16.mxu0 %v2911
      %2943 = vmatpush1.bf16.msra.mxu0 %v2910
      %2944 = vmatprep.subr.bf16.mxu0 %v2913
      %2945 = vmatpush1.bf16.msra.mxu0 %v2912
      %2946 = vmatprep.subr.bf16.mxu0 0
      %2947 = vmatpush1.bf16.msra.mxu0 0
      %2948 = vmatprep.subr.bf16.mxu0 0
      %2949 = vmatpush1.bf16.msra.mxu0 0
      %2950 = vmatprep.subr.bf16.mxu0 0
      %2951 = vmatpush1.bf16.msra.mxu0 0
      %2952 = vmatprep.subr.bf16.mxu0 0
      %2953 = vmatpush1.bf16.msra.mxu0 0
      %2954 = vmatprep.subr.bf16.mxu0 0
      %2955 = vmatpush1.bf16.msra.mxu0 0
      %2956 = vmatprep.subr.bf16.mxu0 0
      %2957 = vmatpush1.bf16.msra.mxu0 0
      %2958 = vmatprep.subr.bf16.mxu0 0
      %2959 = vmatpush1.bf16.msra.mxu0 0
      %2960 = vmatprep.subr.bf16.mxu0 0
      %2961 = vmatpush1.bf16.msra.mxu0 0
      %2962 = vmatprep.mubr.bf16.mxu0 0
      %2963 = vmatmul.mubr.bf16.gmra.mrb[0].mxu0 %v2848
      %v2964 = vpop.f32.mrb[0].mxu0
      %v2965 = vadd.f32 0.0, %v2964
      %v2966 = vpop.f32.mrb[0].mxu0
      %v2967 = vadd.f32 0.0, %v2966
      %v2968 = vpop.f32.mrb[0].mxu0
      %v2969 = vpop.f32.mrb[0].mxu0
      %2970 = vdwg.mxu0
      %v2971 = vadd.f32 %v2830, %v2965
      %v2972 = vadd.f32 %v2831, %v2967
      %v2973 = vld [vmem:[%s8 + $0x380] sm:$0xff]
      %v2974 = vld [vmem:[%s8 + $0x388] sm:$0xff]
      %v2975 = vld [vmem:[%s8 + $0x390] sm:$0xff]
      %v2976 = vld [vmem:[%s8 + $0x398] sm:$0xff]
      %v2977 = vld [vmem:[%s8 + $0x3a0] sm:$0xff]
      %v2978 = vld [vmem:[%s8 + $0x3a8] sm:$0xff]
      %v2979 = vld [vmem:[%s8 + $0x3b0] sm:$0xff]
      %v2980 = vld [vmem:[%s8 + $0x3b8] sm:$0xff]
      %v2981 = vld [vmem:[%s8 + $0x3c0] sm:$0xff]
      %v2982 = vld [vmem:[%s8 + $0x3c8] sm:$0xff]
      %v2983 = vld [vmem:[%s8 + $0x3d0] sm:$0xff]
      %v2984 = vld [vmem:[%s8 + $0x3d8] sm:$0xff]
      %v2985 = vld [vmem:[%s8 + $0x3e0] sm:$0xff]
      %v2986 = vld [vmem:[%s8 + $0x3e8] sm:$0xff]
      %v2987 = vld [vmem:[%s8 + $0x3f0] sm:$0xff]
      %v2988 = vld [vmem:[%s8 + $0x3f8] sm:$0xff]
      %v2989 = vrot.slane %v1990, 6
      %v3007 = vunpack.c.l.b16 %v2973
      %v3008 = vunpack.c.h.b16 %v2973
      %v3009 = vunpack.c.l.b16 %v2974
      %v3010 = vunpack.c.h.b16 %v2974
      %v3011 = vunpack.c.l.b16 %v2975
      %v3012 = vunpack.c.h.b16 %v2975
      %v3013 = vunpack.c.l.b16 %v2976
      %v3014 = vunpack.c.h.b16 %v2976
      %v3015 = vunpack.c.l.b16 %v2977
      %v3016 = vunpack.c.h.b16 %v2977
      %v3017 = vunpack.c.l.b16 %v2978
      %v3018 = vunpack.c.h.b16 %v2978
      %v3019 = vunpack.c.l.b16 %v2979
      %v3020 = vunpack.c.h.b16 %v2979
      %v3021 = vunpack.c.l.b16 %v2980
      %v3022 = vunpack.c.h.b16 %v2980
      %v3023 = vunpack.c.l.b16 %v2981
      %v3024 = vunpack.c.h.b16 %v2981
      %v3025 = vunpack.c.l.b16 %v2982
      %v3026 = vunpack.c.h.b16 %v2982
      %v3027 = vunpack.c.l.b16 %v2983
      %v3028 = vunpack.c.h.b16 %v2983
      %v3029 = vunpack.c.l.b16 %v2984
      %v3030 = vunpack.c.h.b16 %v2984
      %v3031 = vunpack.c.l.b16 %v2985
      %v3032 = vunpack.c.h.b16 %v2985
      %v3033 = vunpack.c.l.b16 %v2986
      %v3034 = vunpack.c.h.b16 %v2986
      %v3035 = vunpack.c.l.b16 %v2987
      %v3036 = vunpack.c.h.b16 %v2987
      %v3037 = vunpack.c.l.b16 %v2988
      %v3038 = vunpack.c.h.b16 %v2988
      %v3039 = vpack.c.b16 %v3009, %v3007
      %v3040 = vpack.c.b16 %v3010, %v3008
      %v3041 = vpack.c.b16 %v3013, %v3011
      %v3042 = vpack.c.b16 %v3014, %v3012
      %v3043 = vpack.c.b16 %v3017, %v3015
      %v3044 = vpack.c.b16 %v3018, %v3016
      %v3045 = vpack.c.b16 %v3021, %v3019
      %v3046 = vpack.c.b16 %v3022, %v3020
      %v3047 = vpack.c.b16 %v3025, %v3023
      %v3048 = vpack.c.b16 %v3026, %v3024
      %v3049 = vpack.c.b16 %v3029, %v3027
      %v3050 = vpack.c.b16 %v3030, %v3028
      %v3051 = vpack.c.b16 %v3033, %v3031
      %v3052 = vpack.c.b16 %v3034, %v3032
      %v3053 = vpack.c.b16 %v3037, %v3035
      %v3054 = vpack.c.b16 %v3038, %v3036
      %3071 = vmatprep.subr.bf16.mxu0 %v3040
      %3072 = vmatpush1.bf16.msra.mxu0 %v3039
      %3073 = vmatprep.subr.bf16.mxu0 %v3042
      %3074 = vmatpush1.bf16.msra.mxu0 %v3041
      %3075 = vmatprep.subr.bf16.mxu0 %v3044
      %3076 = vmatpush1.bf16.msra.mxu0 %v3043
      %3077 = vmatprep.subr.bf16.mxu0 %v3046
      %3078 = vmatpush1.bf16.msra.mxu0 %v3045
      %3079 = vmatprep.subr.bf16.mxu0 %v3048
      %3080 = vmatpush1.bf16.msra.mxu0 %v3047
      %3081 = vmatprep.subr.bf16.mxu0 %v3050
      %3082 = vmatpush1.bf16.msra.mxu0 %v3049
      %3083 = vmatprep.subr.bf16.mxu0 %v3052
      %3084 = vmatpush1.bf16.msra.mxu0 %v3051
      %3085 = vmatprep.subr.bf16.mxu0 %v3054
      %3086 = vmatpush1.bf16.msra.mxu0 %v3053
      %3087 = vmatprep.subr.bf16.mxu0 0
      %3088 = vmatpush1.bf16.msra.mxu0 0
      %3089 = vmatprep.subr.bf16.mxu0 0
      %3090 = vmatpush1.bf16.msra.mxu0 0
      %3091 = vmatprep.subr.bf16.mxu0 0
      %3092 = vmatpush1.bf16.msra.mxu0 0
      %3093 = vmatprep.subr.bf16.mxu0 0
      %3094 = vmatpush1.bf16.msra.mxu0 0
      %3095 = vmatprep.subr.bf16.mxu0 0
      %3096 = vmatpush1.bf16.msra.mxu0 0
      %3097 = vmatprep.subr.bf16.mxu0 0
      %3098 = vmatpush1.bf16.msra.mxu0 0
      %3099 = vmatprep.subr.bf16.mxu0 0
      %3100 = vmatpush1.bf16.msra.mxu0 0
      %3101 = vmatprep.subr.bf16.mxu0 0
      %3102 = vmatpush1.bf16.msra.mxu0 0
      %3103 = vmatprep.mubr.bf16.mxu0 0
      %3104 = vmatmul.mubr.bf16.gmra.mrb[0].mxu0 %v2989
      %v3105 = vpop.f32.mrb[0].mxu0
      %v3106 = vadd.f32 0.0, %v3105
      %v3107 = vpop.f32.mrb[0].mxu0
      %v3108 = vadd.f32 0.0, %v3107
      %v3109 = vpop.f32.mrb[0].mxu0
      %v3110 = vpop.f32.mrb[0].mxu0
      %3111 = vdwg.mxu0
      %v3112 = vadd.f32 %v2971, %v3106
      %v3113 = vadd.f32 %v2972, %v3108
      %v3114 = vld [vmem:[%s8 + $0x400] sm:$0xff]
      %v3115 = vld [vmem:[%s8 + $0x408] sm:$0xff]
      %v3116 = vld [vmem:[%s8 + $0x410] sm:$0xff]
      %v3117 = vld [vmem:[%s8 + $0x418] sm:$0xff]
      %v3118 = vld [vmem:[%s8 + $0x420] sm:$0xff]
      %v3119 = vld [vmem:[%s8 + $0x428] sm:$0xff]
      %v3120 = vld [vmem:[%s8 + $0x430] sm:$0xff]
      %v3121 = vld [vmem:[%s8 + $0x438] sm:$0xff]
      %v3122 = vld [vmem:[%s8 + $0x440] sm:$0xff]
      %v3123 = vld [vmem:[%s8 + $0x448] sm:$0xff]
      %v3124 = vld [vmem:[%s8 + $0x450] sm:$0xff]
      %v3125 = vld [vmem:[%s8 + $0x458] sm:$0xff]
      %v3126 = vld [vmem:[%s8 + $0x460] sm:$0xff]
      %v3127 = vld [vmem:[%s8 + $0x468] sm:$0xff]
      %v3128 = vld [vmem:[%s8 + $0x470] sm:$0xff]
      %v3129 = vld [vmem:[%s8 + $0x478] sm:$0xff]
      %v3146 = vunpack.c.l.b16 %v3114
      %v3147 = vunpack.c.h.b16 %v3114
      %v3148 = vunpack.c.l.b16 %v3115
      %v3149 = vunpack.c.h.b16 %v3115
      %v3150 = vunpack.c.l.b16 %v3116
      %v3151 = vunpack.c.h.b16 %v3116
      %v3152 = vunpack.c.l.b16 %v3117
      %v3153 = vunpack.c.h.b16 %v3117
      %v3154 = vunpack.c.l.b16 %v3118
      %v3155 = vunpack.c.h.b16 %v3118
      %v3156 = vunpack.c.l.b16 %v3119
      %v3157 = vunpack.c.h.b16 %v3119
      %v3158 = vunpack.c.l.b16 %v3120
      %v3159 = vunpack.c.h.b16 %v3120
      %v3160 = vunpack.c.l.b16 %v3121
      %v3161 = vunpack.c.h.b16 %v3121
      %v3162 = vunpack.c.l.b16 %v3122
      %v3163 = vunpack.c.h.b16 %v3122
      %v3164 = vunpack.c.l.b16 %v3123
      %v3165 = vunpack.c.h.b16 %v3123
      %v3166 = vunpack.c.l.b16 %v3124
      %v3167 = vunpack.c.h.b16 %v3124
      %v3168 = vunpack.c.l.b16 %v3125
      %v3169 = vunpack.c.h.b16 %v3125
      %v3170 = vunpack.c.l.b16 %v3126
      %v3171 = vunpack.c.h.b16 %v3126
      %v3172 = vunpack.c.l.b16 %v3127
      %v3173 = vunpack.c.h.b16 %v3127
      %v3174 = vunpack.c.l.b16 %v3128
      %v3175 = vunpack.c.h.b16 %v3128
      %v3176 = vunpack.c.l.b16 %v3129
      %v3177 = vunpack.c.h.b16 %v3129
      %v3178 = vpack.c.b16 %v3148, %v3146
      %v3179 = vpack.c.b16 %v3149, %v3147
      %v3180 = vpack.c.b16 %v3152, %v3150
      %v3181 = vpack.c.b16 %v3153, %v3151
      %v3182 = vpack.c.b16 %v3156, %v3154
      %v3183 = vpack.c.b16 %v3157, %v3155
      %v3184 = vpack.c.b16 %v3160, %v3158
      %v3185 = vpack.c.b16 %v3161, %v3159
      %v3186 = vpack.c.b16 %v3164, %v3162
      %v3187 = vpack.c.b16 %v3165, %v3163
      %v3188 = vpack.c.b16 %v3168, %v3166
      %v3189 = vpack.c.b16 %v3169, %v3167
      %v3190 = vpack.c.b16 %v3172, %v3170
      %v3191 = vpack.c.b16 %v3173, %v3171
      %v3192 = vpack.c.b16 %v3176, %v3174
      %v3193 = vpack.c.b16 %v3177, %v3175
      %3210 = vmatprep.subr.bf16.mxu0 %v3179
      %3211 = vmatpush1.bf16.msra.mxu0 %v3178
      %3212 = vmatprep.subr.bf16.mxu0 %v3181
      %3213 = vmatpush1.bf16.msra.mxu0 %v3180
      %3214 = vmatprep.subr.bf16.mxu0 %v3183
      %3215 = vmatpush1.bf16.msra.mxu0 %v3182
      %3216 = vmatprep.subr.bf16.mxu0 %v3185
      %3217 = vmatpush1.bf16.msra.mxu0 %v3184
      %3218 = vmatprep.subr.bf16.mxu0 %v3187
      %3219 = vmatpush1.bf16.msra.mxu0 %v3186
      %3220 = vmatprep.subr.bf16.mxu0 %v3189
      %3221 = vmatpush1.bf16.msra.mxu0 %v3188
      %3222 = vmatprep.subr.bf16.mxu0 %v3191
      %3223 = vmatpush1.bf16.msra.mxu0 %v3190
      %3224 = vmatprep.subr.bf16.mxu0 %v3193
      %3225 = vmatpush1.bf16.msra.mxu0 %v3192
      %3226 = vmatprep.subr.bf16.mxu0 0
      %3227 = vmatpush1.bf16.msra.mxu0 0
      %3228 = vmatprep.subr.bf16.mxu0 0
      %3229 = vmatpush1.bf16.msra.mxu0 0
      %3230 = vmatprep.subr.bf16.mxu0 0
      %3231 = vmatpush1.bf16.msra.mxu0 0
      %3232 = vmatprep.subr.bf16.mxu0 0
      %3233 = vmatpush1.bf16.msra.mxu0 0
      %3234 = vmatprep.subr.bf16.mxu0 0
      %3235 = vmatpush1.bf16.msra.mxu0 0
      %3236 = vmatprep.subr.bf16.mxu0 0
      %3237 = vmatpush1.bf16.msra.mxu0 0
      %3238 = vmatprep.subr.bf16.mxu0 0
      %3239 = vmatpush1.bf16.msra.mxu0 0
      %3240 = vmatprep.subr.bf16.mxu0 0
      %3241 = vmatpush1.bf16.msra.mxu0 0
      %3242 = vmatprep.mubr.bf16.mxu0 0
      %3243 = vmatmul.mubr.bf16.gmra.mrb[0].mxu0 %v1991
      %v3244 = vpop.f32.mrb[0].mxu0
      %v3245 = vadd.f32 0.0, %v3244
      %v3246 = vpop.f32.mrb[0].mxu0
      %v3247 = vadd.f32 0.0, %v3246
      %v3248 = vpop.f32.mrb[0].mxu0
      %v3249 = vpop.f32.mrb[0].mxu0
      %3250 = vdwg.mxu0
      %v3251 = vadd.f32 %v3112, %v3245
      %v3252 = vadd.f32 %v3113, %v3247
      %v3253 = vld [vmem:[%s9] sm:$0x3]
      %v3255 = vlaneseq
      %v3256 = vshrl.u32 %v3255, 7
      %v3257 = vsub.s32 0, %v3256
      %v3258 = vrot.slane %v3253, %v3257
      %v3259 = vlaneseq
      %v3260 = vshrl.u32 %v3259, 7
      %v3261 = vsub.s32 1, %v3260
      %v3262 = vrot.slane %v3253, %v3261
      %v3265 = vadd.f32 %v3251, %v3258
      %v3266 = vadd.f32 %v3252, %v3262
      %vm3267 = vcmp.ge.f32.partialorder %v3265, 0.0
      %vm3268 = vcmp.ge.f32.partialorder %v3266, 0.0
      %v3269 = vmul.f32 %v3265, 0.01
      %v3270 = vmul.f32 %v3266, 0.01
      %v3271 = vsel %vm3267, %v3265, %v3269
      %v3272 = vsel %vm3268, %v3266, %v3270
      %v3273 = vpack.c.bf16 %v3271, %v3271
      %v3274 = vpack.c.bf16 %v3272, %v3272
      %v3275 = vld [vmem:[%s10] sm:$0xf]
      %v3276 = vld [vmem:[%s10 + $0x4] sm:$0xf]
      %v3277 = vld [vmem:[%s10 + $0x8] sm:$0xf]
      %v3278 = vld [vmem:[%s10 + $0xc] sm:$0xf]
      %v3279 = vld [vmem:[%s10 + $0x10] sm:$0xf]
      %v3280 = vld [vmem:[%s10 + $0x14] sm:$0xf]
      %v3281 = vld [vmem:[%s10 + $0x18] sm:$0xf]
      %v3282 = vld [vmem:[%s10 + $0x1c] sm:$0xf]
      %v3283 = vld [vmem:[%s10 + $0x20] sm:$0xf]
      %v3284 = vld [vmem:[%s10 + $0x24] sm:$0xf]
      %v3285 = vld [vmem:[%s10 + $0x28] sm:$0xf]
      %v3286 = vld [vmem:[%s10 + $0x2c] sm:$0xf]
      %v3287 = vld [vmem:[%s10 + $0x30] sm:$0xf]
      %v3288 = vld [vmem:[%s10 + $0x34] sm:$0xf]
      %v3289 = vld [vmem:[%s10 + $0x38] sm:$0xf]
      %v3290 = vld [vmem:[%s10 + $0x3c] sm:$0xf]
      %v3291 = vld [vmem:[%s10 + $0x40] sm:$0xf]
      %v3292 = vld [vmem:[%s10 + $0x44] sm:$0xf]
      %v3293 = vld [vmem:[%s10 + $0x48] sm:$0xf]
      %v3294 = vld [vmem:[%s10 + $0x4c] sm:$0xf]
      %v3295 = vld [vmem:[%s10 + $0x50] sm:$0xf]
      %v3296 = vld [vmem:[%s10 + $0x54] sm:$0xf]
      %v3297 = vld [vmem:[%s10 + $0x58] sm:$0xf]
      %v3298 = vld [vmem:[%s10 + $0x5c] sm:$0xf]
      %v3299 = vld [vmem:[%s10 + $0x60] sm:$0xf]
      %v3300 = vld [vmem:[%s10 + $0x64] sm:$0xf]
      %v3301 = vld [vmem:[%s10 + $0x68] sm:$0xf]
      %v3302 = vld [vmem:[%s10 + $0x6c] sm:$0xf]
      %v3303 = vld [vmem:[%s10 + $0x70] sm:$0xf]
      %v3304 = vld [vmem:[%s10 + $0x74] sm:$0xf]
      %v3305 = vld [vmem:[%s10 + $0x78] sm:$0xf]
      %v3306 = vld [vmem:[%s10 + $0x7c] sm:$0xf]
      %s3307 = scalar_lea.vmem %s10, 128
      %v3308 = vld [vmem:[%s3307] sm:$0xf]
      %v3309 = vld [vmem:[%s3307 + $0x4] sm:$0xf]
      %v3310 = vld [vmem:[%s3307 + $0x8] sm:$0xf]
      %v3311 = vld [vmem:[%s3307 + $0xc] sm:$0xf]
      %v3312 = vld [vmem:[%s3307 + $0x10] sm:$0xf]
      %v3313 = vld [vmem:[%s3307 + $0x14] sm:$0xf]
      %v3314 = vld [vmem:[%s3307 + $0x18] sm:$0xf]
      %v3315 = vld [vmem:[%s3307 + $0x1c] sm:$0xf]
      %v3316 = vld [vmem:[%s3307 + $0x20] sm:$0xf]
      %v3317 = vld [vmem:[%s3307 + $0x24] sm:$0xf]
      %v3318 = vld [vmem:[%s3307 + $0x28] sm:$0xf]
      %v3319 = vld [vmem:[%s3307 + $0x2c] sm:$0xf]
      %v3320 = vld [vmem:[%s3307 + $0x30] sm:$0xf]
      %v3321 = vld [vmem:[%s3307 + $0x34] sm:$0xf]
      %v3322 = vld [vmem:[%s3307 + $0x38] sm:$0xf]
      %v3323 = vld [vmem:[%s3307 + $0x3c] sm:$0xf]
      %v3324 = vld [vmem:[%s3307 + $0x40] sm:$0xf]
      %v3325 = vld [vmem:[%s3307 + $0x44] sm:$0xf]
      %v3326 = vld [vmem:[%s3307 + $0x48] sm:$0xf]
      %v3327 = vld [vmem:[%s3307 + $0x4c] sm:$0xf]
      %v3328 = vld [vmem:[%s3307 + $0x50] sm:$0xf]
      %v3329 = vld [vmem:[%s3307 + $0x54] sm:$0xf]
      %v3330 = vld [vmem:[%s3307 + $0x58] sm:$0xf]
      %v3331 = vld [vmem:[%s3307 + $0x5c] sm:$0xf]
      %v3332 = vld [vmem:[%s3307 + $0x60] sm:$0xf]
      %v3333 = vld [vmem:[%s3307 + $0x64] sm:$0xf]
      %v3334 = vld [vmem:[%s3307 + $0x68] sm:$0xf]
      %v3335 = vld [vmem:[%s3307 + $0x6c] sm:$0xf]
      %v3336 = vld [vmem:[%s3307 + $0x70] sm:$0xf]
      %v3337 = vld [vmem:[%s3307 + $0x74] sm:$0xf]
      %v3338 = vld [vmem:[%s3307 + $0x78] sm:$0xf]
      %v3339 = vld [vmem:[%s3307 + $0x7c] sm:$0xf]
      %v3341 = vshrl.u32 %v3273, 16
      %v3344 = vshrl.u32 %v3274, 16
      %v3380 = vunpack.c.l.b16 %v3308
      %v3381 = vunpack.c.l.b16 %v3309
      %v3382 = vunpack.c.l.b16 %v3310
      %v3383 = vunpack.c.l.b16 %v3311
      %v3384 = vunpack.c.l.b16 %v3312
      %v3385 = vunpack.c.l.b16 %v3313
      %v3386 = vunpack.c.l.b16 %v3314
      %v3387 = vunpack.c.l.b16 %v3315
      %v3388 = vunpack.c.l.b16 %v3316
      %v3389 = vunpack.c.l.b16 %v3317
      %v3390 = vunpack.c.l.b16 %v3318
      %v3391 = vunpack.c.l.b16 %v3319
      %v3392 = vunpack.c.l.b16 %v3320
      %v3393 = vunpack.c.l.b16 %v3321
      %v3394 = vunpack.c.l.b16 %v3322
      %v3395 = vunpack.c.l.b16 %v3323
      %v3396 = vunpack.c.l.b16 %v3324
      %v3397 = vunpack.c.l.b16 %v3325
      %v3398 = vunpack.c.l.b16 %v3326
      %v3399 = vunpack.c.l.b16 %v3327
      %v3400 = vunpack.c.l.b16 %v3328
      %v3401 = vunpack.c.l.b16 %v3329
      %v3402 = vunpack.c.l.b16 %v3330
      %v3403 = vunpack.c.l.b16 %v3331
      %v3404 = vunpack.c.l.b16 %v3332
      %v3405 = vunpack.c.l.b16 %v3333
      %v3406 = vunpack.c.l.b16 %v3334
      %v3407 = vunpack.c.l.b16 %v3335
      %v3408 = vunpack.c.l.b16 %v3336
      %v3409 = vunpack.c.l.b16 %v3337
      %v3410 = vunpack.c.l.b16 %v3338
      %v3411 = vunpack.c.l.b16 %v3339
      %v3412 = vpack.c.b16 %v3381, %v3380
      %v3413 = vpack.c.b16 %v3383, %v3382
      %v3414 = vpack.c.b16 %v3385, %v3384
      %v3415 = vpack.c.b16 %v3387, %v3386
      %v3416 = vpack.c.b16 %v3389, %v3388
      %v3417 = vpack.c.b16 %v3391, %v3390
      %v3418 = vpack.c.b16 %v3393, %v3392
      %v3419 = vpack.c.b16 %v3395, %v3394
      %v3420 = vpack.c.b16 %v3397, %v3396
      %v3421 = vpack.c.b16 %v3399, %v3398
      %v3422 = vpack.c.b16 %v3401, %v3400
      %v3423 = vpack.c.b16 %v3403, %v3402
      %v3424 = vpack.c.b16 %v3405, %v3404
      %v3425 = vpack.c.b16 %v3407, %v3406
      %v3426 = vpack.c.b16 %v3409, %v3408
      %v3427 = vpack.c.b16 %v3411, %v3410
      %3444 = vmatprep.subr.bf16.mxu0 0
      %3445 = vmatpush1.bf16.msra.mxu0 %v3412
      %3446 = vmatprep.subr.bf16.mxu0 0
      %3447 = vmatpush1.bf16.msra.mxu0 %v3413
      %3448 = vmatprep.subr.bf16.mxu0 0
      %3449 = vmatpush1.bf16.msra.mxu0 %v3414
      %3450 = vmatprep.subr.bf16.mxu0 0
      %3451 = vmatpush1.bf16.msra.mxu0 %v3415
      %3452 = vmatprep.subr.bf16.mxu0 0
      %3453 = vmatpush1.bf16.msra.mxu0 %v3416
      %3454 = vmatprep.subr.bf16.mxu0 0
      %3455 = vmatpush1.bf16.msra.mxu0 %v3417
      %3456 = vmatprep.subr.bf16.mxu0 0
      %3457 = vmatpush1.bf16.msra.mxu0 %v3418
      %3458 = vmatprep.subr.bf16.mxu0 0
      %3459 = vmatpush1.bf16.msra.mxu0 %v3419
      %3460 = vmatprep.subr.bf16.mxu0 0
      %3461 = vmatpush1.bf16.msra.mxu0 %v3420
      %3462 = vmatprep.subr.bf16.mxu0 0
      %3463 = vmatpush1.bf16.msra.mxu0 %v3421
      %3464 = vmatprep.subr.bf16.mxu0 0
      %3465 = vmatpush1.bf16.msra.mxu0 %v3422
      %3466 = vmatprep.subr.bf16.mxu0 0
      %3467 = vmatpush1.bf16.msra.mxu0 %v3423
      %3468 = vmatprep.subr.bf16.mxu0 0
      %3469 = vmatpush1.bf16.msra.mxu0 %v3424
      %3470 = vmatprep.subr.bf16.mxu0 0
      %3471 = vmatpush1.bf16.msra.mxu0 %v3425
      %3472 = vmatprep.subr.bf16.mxu0 0
      %3473 = vmatpush1.bf16.msra.mxu0 %v3426
      %3474 = vmatprep.subr.bf16.mxu0 0
      %3475 = vmatpush1.bf16.msra.mxu0 %v3427
      %3476 = vmatprep.mubr.bf16.mxu0 %v3344
      %3477 = vmatmul.mubr.bf16.gmra.mrb[0].mxu0 %v3341
      %v3478 = vpop.f32.mrb[0].mxu0
      %v3479 = vadd.f32 0.0, %v3478
      %v3480 = vpop.f32.mrb[0].mxu0
      %v3481 = vpop.f32.mrb[0].mxu0
      %v3482 = vpop.f32.mrb[0].mxu0
      %3483 = vdwg.mxu0
      %v3516 = vunpack.c.l.b16 %v3275
      %v3517 = vunpack.c.l.b16 %v3276
      %v3518 = vunpack.c.l.b16 %v3277
      %v3519 = vunpack.c.l.b16 %v3278
      %v3520 = vunpack.c.l.b16 %v3279
      %v3521 = vunpack.c.l.b16 %v3280
      %v3522 = vunpack.c.l.b16 %v3281
      %v3523 = vunpack.c.l.b16 %v3282
      %v3524 = vunpack.c.l.b16 %v3283
      %v3525 = vunpack.c.l.b16 %v3284
      %v3526 = vunpack.c.l.b16 %v3285
      %v3527 = vunpack.c.l.b16 %v3286
      %v3528 = vunpack.c.l.b16 %v3287
      %v3529 = vunpack.c.l.b16 %v3288
      %v3530 = vunpack.c.l.b16 %v3289
      %v3531 = vunpack.c.l.b16 %v3290
      %v3532 = vunpack.c.l.b16 %v3291
      %v3533 = vunpack.c.l.b16 %v3292
      %v3534 = vunpack.c.l.b16 %v3293
      %v3535 = vunpack.c.l.b16 %v3294
      %v3536 = vunpack.c.l.b16 %v3295
      %v3537 = vunpack.c.l.b16 %v3296
      %v3538 = vunpack.c.l.b16 %v3297
      %v3539 = vunpack.c.l.b16 %v3298
      %v3540 = vunpack.c.l.b16 %v3299
      %v3541 = vunpack.c.l.b16 %v3300
      %v3542 = vunpack.c.l.b16 %v3301
      %v3543 = vunpack.c.l.b16 %v3302
      %v3544 = vunpack.c.l.b16 %v3303
      %v3545 = vunpack.c.l.b16 %v3304
      %v3546 = vunpack.c.l.b16 %v3305
      %v3547 = vunpack.c.l.b16 %v3306
      %v3548 = vpack.c.b16 %v3517, %v3516
      %v3549 = vpack.c.b16 %v3519, %v3518
      %v3550 = vpack.c.b16 %v3521, %v3520
      %v3551 = vpack.c.b16 %v3523, %v3522
      %v3552 = vpack.c.b16 %v3525, %v3524
      %v3553 = vpack.c.b16 %v3527, %v3526
      %v3554 = vpack.c.b16 %v3529, %v3528
      %v3555 = vpack.c.b16 %v3531, %v3530
      %v3556 = vpack.c.b16 %v3533, %v3532
      %v3557 = vpack.c.b16 %v3535, %v3534
      %v3558 = vpack.c.b16 %v3537, %v3536
      %v3559 = vpack.c.b16 %v3539, %v3538
      %v3560 = vpack.c.b16 %v3541, %v3540
      %v3561 = vpack.c.b16 %v3543, %v3542
      %v3562 = vpack.c.b16 %v3545, %v3544
      %v3563 = vpack.c.b16 %v3547, %v3546
      %3580 = vmatprep.subr.bf16.mxu0 0
      %3581 = vmatpush1.bf16.msra.mxu0 %v3548
      %3582 = vmatprep.subr.bf16.mxu0 0
      %3583 = vmatpush1.bf16.msra.mxu0 %v3549
      %3584 = vmatprep.subr.bf16.mxu0 0
      %3585 = vmatpush1.bf16.msra.mxu0 %v3550
      %3586 = vmatprep.subr.bf16.mxu0 0
      %3587 = vmatpush1.bf16.msra.mxu0 %v3551
      %3588 = vmatprep.subr.bf16.mxu0 0
      %3589 = vmatpush1.bf16.msra.mxu0 %v3552
      %3590 = vmatprep.subr.bf16.mxu0 0
      %3591 = vmatpush1.bf16.msra.mxu0 %v3553
      %3592 = vmatprep.subr.bf16.mxu0 0
      %3593 = vmatpush1.bf16.msra.mxu0 %v3554
      %3594 = vmatprep.subr.bf16.mxu0 0
      %3595 = vmatpush1.bf16.msra.mxu0 %v3555
      %3596 = vmatprep.subr.bf16.mxu0 0
      %3597 = vmatpush1.bf16.msra.mxu0 %v3556
      %3598 = vmatprep.subr.bf16.mxu0 0
      %3599 = vmatpush1.bf16.msra.mxu0 %v3557
      %3600 = vmatprep.subr.bf16.mxu0 0
      %3601 = vmatpush1.bf16.msra.mxu0 %v3558
      %3602 = vmatprep.subr.bf16.mxu0 0
      %3603 = vmatpush1.bf16.msra.mxu0 %v3559
      %3604 = vmatprep.subr.bf16.mxu0 0
      %3605 = vmatpush1.bf16.msra.mxu0 %v3560
      %3606 = vmatprep.subr.bf16.mxu0 0
      %3607 = vmatpush1.bf16.msra.mxu0 %v3561
      %3608 = vmatprep.subr.bf16.mxu0 0
      %3609 = vmatpush1.bf16.msra.mxu0 %v3562
      %3610 = vmatprep.subr.bf16.mxu0 0
      %3611 = vmatpush1.bf16.msra.mxu0 %v3563
      %3612 = vmatprep.mubr.bf16.mxu0 %v3274
      %3613 = vmatmul.mubr.bf16.gmra.mrb[0].mxu0 %v3273
      %v3614 = vpop.f32.mrb[0].mxu0
      %v3615 = vadd.f32 %v3479, %v3614
      %v3616 = vpop.f32.mrb[0].mxu0
      %v3617 = vpop.f32.mrb[0].mxu0
      %v3618 = vpop.f32.mrb[0].mxu0
      %3619 = vdwg.mxu0
      %s3620 = scalar_lea.vmem %s10, 256
      %v3621 = vld [vmem:[%s3620] sm:$0xf]
      %v3622 = vld [vmem:[%s3620 + $0x4] sm:$0xf]
      %v3623 = vld [vmem:[%s3620 + $0x8] sm:$0xf]
      %v3624 = vld [vmem:[%s3620 + $0xc] sm:$0xf]
      %v3625 = vld [vmem:[%s3620 + $0x10] sm:$0xf]
      %v3626 = vld [vmem:[%s3620 + $0x14] sm:$0xf]
      %v3627 = vld [vmem:[%s3620 + $0x18] sm:$0xf]
      %v3628 = vld [vmem:[%s3620 + $0x1c] sm:$0xf]
      %v3629 = vld [vmem:[%s3620 + $0x20] sm:$0xf]
      %v3630 = vld [vmem:[%s3620 + $0x24] sm:$0xf]
      %v3631 = vld [vmem:[%s3620 + $0x28] sm:$0xf]
      %v3632 = vld [vmem:[%s3620 + $0x2c] sm:$0xf]
      %v3633 = vld [vmem:[%s3620 + $0x30] sm:$0xf]
      %v3634 = vld [vmem:[%s3620 + $0x34] sm:$0xf]
      %v3635 = vld [vmem:[%s3620 + $0x38] sm:$0xf]
      %v3636 = vld [vmem:[%s3620 + $0x3c] sm:$0xf]
      %v3637 = vld [vmem:[%s3620 + $0x40] sm:$0xf]
      %v3638 = vld [vmem:[%s3620 + $0x44] sm:$0xf]
      %v3639 = vld [vmem:[%s3620 + $0x48] sm:$0xf]
      %v3640 = vld [vmem:[%s3620 + $0x4c] sm:$0xf]
      %v3641 = vld [vmem:[%s3620 + $0x50] sm:$0xf]
      %v3642 = vld [vmem:[%s3620 + $0x54] sm:$0xf]
      %v3643 = vld [vmem:[%s3620 + $0x58] sm:$0xf]
      %v3644 = vld [vmem:[%s3620 + $0x5c] sm:$0xf]
      %v3645 = vld [vmem:[%s3620 + $0x60] sm:$0xf]
      %v3646 = vld [vmem:[%s3620 + $0x64] sm:$0xf]
      %v3647 = vld [vmem:[%s3620 + $0x68] sm:$0xf]
      %v3648 = vld [vmem:[%s3620 + $0x6c] sm:$0xf]
      %v3649 = vld [vmem:[%s3620 + $0x70] sm:$0xf]
      %v3650 = vld [vmem:[%s3620 + $0x74] sm:$0xf]
      %v3651 = vld [vmem:[%s3620 + $0x78] sm:$0xf]
      %v3652 = vld [vmem:[%s3620 + $0x7c] sm:$0xf]
      %v3655 = vrot.slane %v3273, 1
      %v3656 = vrot.slane %v3274, 1
      %v3691 = vunpack.c.l.b16 %v3621
      %v3692 = vunpack.c.l.b16 %v3622
      %v3693 = vunpack.c.l.b16 %v3623
      %v3694 = vunpack.c.l.b16 %v3624
      %v3695 = vunpack.c.l.b16 %v3625
      %v3696 = vunpack.c.l.b16 %v3626
      %v3697 = vunpack.c.l.b16 %v3627
      %v3698 = vunpack.c.l.b16 %v3628
      %v3699 = vunpack.c.l.b16 %v3629
      %v3700 = vunpack.c.l.b16 %v3630
      %v3701 = vunpack.c.l.b16 %v3631
      %v3702 = vunpack.c.l.b16 %v3632
      %v3703 = vunpack.c.l.b16 %v3633
      %v3704 = vunpack.c.l.b16 %v3634
      %v3705 = vunpack.c.l.b16 %v3635
      %v3706 = vunpack.c.l.b16 %v3636
      %v3707 = vunpack.c.l.b16 %v3637
      %v3708 = vunpack.c.l.b16 %v3638
      %v3709 = vunpack.c.l.b16 %v3639
      %v3710 = vunpack.c.l.b16 %v3640
      %v3711 = vunpack.c.l.b16 %v3641
      %v3712 = vunpack.c.l.b16 %v3642
      %v3713 = vunpack.c.l.b16 %v3643
      %v3714 = vunpack.c.l.b16 %v3644
      %v3715 = vunpack.c.l.b16 %v3645
      %v3716 = vunpack.c.l.b16 %v3646
      %v3717 = vunpack.c.l.b16 %v3647
      %v3718 = vunpack.c.l.b16 %v3648
      %v3719 = vunpack.c.l.b16 %v3649
      %v3720 = vunpack.c.l.b16 %v3650
      %v3721 = vunpack.c.l.b16 %v3651
      %v3722 = vunpack.c.l.b16 %v3652
      %v3723 = vpack.c.b16 %v3692, %v3691
      %v3724 = vpack.c.b16 %v3694, %v3693
      %v3725 = vpack.c.b16 %v3696, %v3695
      %v3726 = vpack.c.b16 %v3698, %v3697
      %v3727 = vpack.c.b16 %v3700, %v3699
      %v3728 = vpack.c.b16 %v3702, %v3701
      %v3729 = vpack.c.b16 %v3704, %v3703
      %v3730 = vpack.c.b16 %v3706, %v3705
      %v3731 = vpack.c.b16 %v3708, %v3707
      %v3732 = vpack.c.b16 %v3710, %v3709
      %v3733 = vpack.c.b16 %v3712, %v3711
      %v3734 = vpack.c.b16 %v3714, %v3713
      %v3735 = vpack.c.b16 %v3716, %v3715
      %v3736 = vpack.c.b16 %v3718, %v3717
      %v3737 = vpack.c.b16 %v3720, %v3719
      %v3738 = vpack.c.b16 %v3722, %v3721
      %3755 = vmatprep.subr.bf16.mxu0 0
      %3756 = vmatpush1.bf16.msra.mxu0 %v3723
      %3757 = vmatprep.subr.bf16.mxu0 0
      %3758 = vmatpush1.bf16.msra.mxu0 %v3724
      %3759 = vmatprep.subr.bf16.mxu0 0
      %3760 = vmatpush1.bf16.msra.mxu0 %v3725
      %3761 = vmatprep.subr.bf16.mxu0 0
      %3762 = vmatpush1.bf16.msra.mxu0 %v3726
      %3763 = vmatprep.subr.bf16.mxu0 0
      %3764 = vmatpush1.bf16.msra.mxu0 %v3727
      %3765 = vmatprep.subr.bf16.mxu0 0
      %3766 = vmatpush1.bf16.msra.mxu0 %v3728
      %3767 = vmatprep.subr.bf16.mxu0 0
      %3768 = vmatpush1.bf16.msra.mxu0 %v3729
      %3769 = vmatprep.subr.bf16.mxu0 0
      %3770 = vmatpush1.bf16.msra.mxu0 %v3730
      %3771 = vmatprep.subr.bf16.mxu0 0
      %3772 = vmatpush1.bf16.msra.mxu0 %v3731
      %3773 = vmatprep.subr.bf16.mxu0 0
      %3774 = vmatpush1.bf16.msra.mxu0 %v3732
      %3775 = vmatprep.subr.bf16.mxu0 0
      %3776 = vmatpush1.bf16.msra.mxu0 %v3733
      %3777 = vmatprep.subr.bf16.mxu0 0
      %3778 = vmatpush1.bf16.msra.mxu0 %v3734
      %3779 = vmatprep.subr.bf16.mxu0 0
      %3780 = vmatpush1.bf16.msra.mxu0 %v3735
      %3781 = vmatprep.subr.bf16.mxu0 0
      %3782 = vmatpush1.bf16.msra.mxu0 %v3736
      %3783 = vmatprep.subr.bf16.mxu0 0
      %3784 = vmatpush1.bf16.msra.mxu0 %v3737
      %3785 = vmatprep.subr.bf16.mxu0 0
      %3786 = vmatpush1.bf16.msra.mxu0 %v3738
      %3787 = vmatprep.mubr.bf16.mxu0 %v3656
      %3788 = vmatmul.mubr.bf16.gmra.mrb[0].mxu0 %v3655
      %v3789 = vpop.f32.mrb[0].mxu0
      %v3790 = vadd.f32 0.0, %v3789
      %v3791 = vpop.f32.mrb[0].mxu0
      %v3792 = vpop.f32.mrb[0].mxu0
      %v3793 = vpop.f32.mrb[0].mxu0
      %3794 = vdwg.mxu0
      %v3795 = vadd.f32 %v3615, %v3790
      %s3796 = scalar_lea.vmem %s10, 384
      %v3797 = vld [vmem:[%s3796] sm:$0xf]
      %v3798 = vld [vmem:[%s3796 + $0x4] sm:$0xf]
      %v3799 = vld [vmem:[%s3796 + $0x8] sm:$0xf]
      %v3800 = vld [vmem:[%s3796 + $0xc] sm:$0xf]
      %v3801 = vld [vmem:[%s3796 + $0x10] sm:$0xf]
      %v3802 = vld [vmem:[%s3796 + $0x14] sm:$0xf]
      %v3803 = vld [vmem:[%s3796 + $0x18] sm:$0xf]
      %v3804 = vld [vmem:[%s3796 + $0x1c] sm:$0xf]
      %v3805 = vld [vmem:[%s3796 + $0x20] sm:$0xf]
      %v3806 = vld [vmem:[%s3796 + $0x24] sm:$0xf]
      %v3807 = vld [vmem:[%s3796 + $0x28] sm:$0xf]
      %v3808 = vld [vmem:[%s3796 + $0x2c] sm:$0xf]
      %v3809 = vld [vmem:[%s3796 + $0x30] sm:$0xf]
      %v3810 = vld [vmem:[%s3796 + $0x34] sm:$0xf]
      %v3811 = vld [vmem:[%s3796 + $0x38] sm:$0xf]
      %v3812 = vld [vmem:[%s3796 + $0x3c] sm:$0xf]
      %v3813 = vld [vmem:[%s3796 + $0x40] sm:$0xf]
      %v3814 = vld [vmem:[%s3796 + $0x44] sm:$0xf]
      %v3815 = vld [vmem:[%s3796 + $0x48] sm:$0xf]
      %v3816 = vld [vmem:[%s3796 + $0x4c] sm:$0xf]
      %v3817 = vld [vmem:[%s3796 + $0x50] sm:$0xf]
      %v3818 = vld [vmem:[%s3796 + $0x54] sm:$0xf]
      %v3819 = vld [vmem:[%s3796 + $0x58] sm:$0xf]
      %v3820 = vld [vmem:[%s3796 + $0x5c] sm:$0xf]
      %v3821 = vld [vmem:[%s3796 + $0x60] sm:$0xf]
      %v3822 = vld [vmem:[%s3796 + $0x64] sm:$0xf]
      %v3823 = vld [vmem:[%s3796 + $0x68] sm:$0xf]
      %v3824 = vld [vmem:[%s3796 + $0x6c] sm:$0xf]
      %v3825 = vld [vmem:[%s3796 + $0x70] sm:$0xf]
      %v3826 = vld [vmem:[%s3796 + $0x74] sm:$0xf]
      %v3827 = vld [vmem:[%s3796 + $0x78] sm:$0xf]
      %v3828 = vld [vmem:[%s3796 + $0x7c] sm:$0xf]
      %v3829 = vrot.slane %v3341, 1
      %v3830 = vrot.slane %v3344, 1
      %v3865 = vunpack.c.l.b16 %v3797
      %v3866 = vunpack.c.l.b16 %v3798
      %v3867 = vunpack.c.l.b16 %v3799
      %v3868 = vunpack.c.l.b16 %v3800
      %v3869 = vunpack.c.l.b16 %v3801
      %v3870 = vunpack.c.l.b16 %v3802
      %v3871 = vunpack.c.l.b16 %v3803
      %v3872 = vunpack.c.l.b16 %v3804
      %v3873 = vunpack.c.l.b16 %v3805
      %v3874 = vunpack.c.l.b16 %v3806
      %v3875 = vunpack.c.l.b16 %v3807
      %v3876 = vunpack.c.l.b16 %v3808
      %v3877 = vunpack.c.l.b16 %v3809
      %v3878 = vunpack.c.l.b16 %v3810
      %v3879 = vunpack.c.l.b16 %v3811
      %v3880 = vunpack.c.l.b16 %v3812
      %v3881 = vunpack.c.l.b16 %v3813
      %v3882 = vunpack.c.l.b16 %v3814
      %v3883 = vunpack.c.l.b16 %v3815
      %v3884 = vunpack.c.l.b16 %v3816
      %v3885 = vunpack.c.l.b16 %v3817
      %v3886 = vunpack.c.l.b16 %v3818
      %v3887 = vunpack.c.l.b16 %v3819
      %v3888 = vunpack.c.l.b16 %v3820
      %v3889 = vunpack.c.l.b16 %v3821
      %v3890 = vunpack.c.l.b16 %v3822
      %v3891 = vunpack.c.l.b16 %v3823
      %v3892 = vunpack.c.l.b16 %v3824
      %v3893 = vunpack.c.l.b16 %v3825
      %v3894 = vunpack.c.l.b16 %v3826
      %v3895 = vunpack.c.l.b16 %v3827
      %v3896 = vunpack.c.l.b16 %v3828
      %v3897 = vpack.c.b16 %v3866, %v3865
      %v3898 = vpack.c.b16 %v3868, %v3867
      %v3899 = vpack.c.b16 %v3870, %v3869
      %v3900 = vpack.c.b16 %v3872, %v3871
      %v3901 = vpack.c.b16 %v3874, %v3873
      %v3902 = vpack.c.b16 %v3876, %v3875
      %v3903 = vpack.c.b16 %v3878, %v3877
      %v3904 = vpack.c.b16 %v3880, %v3879
      %v3905 = vpack.c.b16 %v3882, %v3881
      %v3906 = vpack.c.b16 %v3884, %v3883
      %v3907 = vpack.c.b16 %v3886, %v3885
      %v3908 = vpack.c.b16 %v3888, %v3887
      %v3909 = vpack.c.b16 %v3890, %v3889
      %v3910 = vpack.c.b16 %v3892, %v3891
      %v3911 = vpack.c.b16 %v3894, %v3893
      %v3912 = vpack.c.b16 %v3896, %v3895
      %3929 = vmatprep.subr.bf16.mxu0 0
      %3930 = vmatpush1.bf16.msra.mxu0 %v3897
      %3931 = vmatprep.subr.bf16.mxu0 0
      %3932 = vmatpush1.bf16.msra.mxu0 %v3898
      %3933 = vmatprep.subr.bf16.mxu0 0
      %3934 = vmatpush1.bf16.msra.mxu0 %v3899
      %3935 = vmatprep.subr.bf16.mxu0 0
      %3936 = vmatpush1.bf16.msra.mxu0 %v3900
      %3937 = vmatprep.subr.bf16.mxu0 0
      %3938 = vmatpush1.bf16.msra.mxu0 %v3901
      %3939 = vmatprep.subr.bf16.mxu0 0
      %3940 = vmatpush1.bf16.msra.mxu0 %v3902
      %3941 = vmatprep.subr.bf16.mxu0 0
      %3942 = vmatpush1.bf16.msra.mxu0 %v3903
      %3943 = vmatprep.subr.bf16.mxu0 0
      %3944 = vmatpush1.bf16.msra.mxu0 %v3904
      %3945 = vmatprep.subr.bf16.mxu0 0
      %3946 = vmatpush1.bf16.msra.mxu0 %v3905
      %3947 = vmatprep.subr.bf16.mxu0 0
      %3948 = vmatpush1.bf16.msra.mxu0 %v3906
      %3949 = vmatprep.subr.bf16.mxu0 0
      %3950 = vmatpush1.bf16.msra.mxu0 %v3907
      %3951 = vmatprep.subr.bf16.mxu0 0
      %3952 = vmatpush1.bf16.msra.mxu0 %v3908
      %3953 = vmatprep.subr.bf16.mxu0 0
      %3954 = vmatpush1.bf16.msra.mxu0 %v3909
      %3955 = vmatprep.subr.bf16.mxu0 0
      %3956 = vmatpush1.bf16.msra.mxu0 %v3910
      %3957 = vmatprep.subr.bf16.mxu0 0
      %3958 = vmatpush1.bf16.msra.mxu0 %v3911
      %3959 = vmatprep.subr.bf16.mxu0 0
      %3960 = vmatpush1.bf16.msra.mxu0 %v3912
      %3961 = vmatprep.mubr.bf16.mxu0 %v3830
      %3962 = vmatmul.mubr.bf16.gmra.mrb[0].mxu0 %v3829
      %v3963 = vpop.f32.mrb[0].mxu0
      %v3964 = vadd.f32 0.0, %v3963
      %v3965 = vpop.f32.mrb[0].mxu0
      %v3966 = vpop.f32.mrb[0].mxu0
      %v3967 = vpop.f32.mrb[0].mxu0
      %3968 = vdwg.mxu0
      %v3969 = vadd.f32 %v3795, %v3964
      %v3970 = vld [vmem:[#allocation2] sm:$0x1]
      %3972 = vset.pattern.permute.xlu0 0
      %3973 = vperm.xlu0 %3972, %v3970
      %v3974 = vpop.permute.xlu0 %3973
      %v3976 = vlaneseq
      %v3977 = vshrl.u32 %v3976, 7
      %v3978 = vsub.s32 0, %v3977
      %v3979 = vrot.slane %v3974, %v3978
      %v3980 = vadd.f32 %v3969, %v3979
      %vm3981 = vcmp.ge.f32.partialorder %v3980, 0.0
      %v3982 = vmul.f32 %v3980, 0.01
      %v3983 = vsel %vm3981, %v3980, %v3982
      %v3984 = vld [vmem:[%s452] sm:$0x3]
      %v3985 = vld [vmem:[%s12] sm:$0xff]
      %v3986 = vld [vmem:[%s12 + $0x8] sm:$0xff]
      %v3987 = vld [vmem:[%s12 + $0x10] sm:$0xff]
      %v3988 = vld [vmem:[%s12 + $0x18] sm:$0xff]
      %v3989 = vld [vmem:[%s12 + $0x20] sm:$0xff]
      %v3990 = vld [vmem:[%s12 + $0x28] sm:$0xff]
      %v3991 = vld [vmem:[%s12 + $0x30] sm:$0xff]
      %v3992 = vld [vmem:[%s12 + $0x38] sm:$0xff]
      %v3993 = vld [vmem:[%s12 + $0x40] sm:$0xff]
      %v3994 = vld [vmem:[%s12 + $0x48] sm:$0xff]
      %v3995 = vld [vmem:[%s12 + $0x50] sm:$0xff]
      %v3996 = vld [vmem:[%s12 + $0x58] sm:$0xff]
      %v3997 = vld [vmem:[%s12 + $0x60] sm:$0xff]
      %v3998 = vld [vmem:[%s12 + $0x68] sm:$0xff]
      %v3999 = vld [vmem:[%s12 + $0x70] sm:$0xff]
      %v4000 = vld [vmem:[%s12 + $0x78] sm:$0xff]
      %v4001 = vld [vmem:[%s12 + $0x80] sm:$0xff]
      %v4002 = vld [vmem:[%s12 + $0x88] sm:$0xff]
      %v4003 = vld [vmem:[%s12 + $0x90] sm:$0xff]
      %v4004 = vld [vmem:[%s12 + $0x98] sm:$0xff]
      %v4005 = vld [vmem:[%s12 + $0xa0] sm:$0xff]
      %v4006 = vld [vmem:[%s12 + $0xa8] sm:$0xff]
      %v4007 = vld [vmem:[%s12 + $0xb0] sm:$0xff]
      %v4008 = vld [vmem:[%s12 + $0xb8] sm:$0xff]
      %v4009 = vld [vmem:[%s12 + $0xc0] sm:$0xff]
      %v4010 = vld [vmem:[%s12 + $0xc8] sm:$0xff]
      %v4011 = vld [vmem:[%s12 + $0xd0] sm:$0xff]
      %v4012 = vld [vmem:[%s12 + $0xd8] sm:$0xff]
      %v4013 = vld [vmem:[%s12 + $0xe0] sm:$0xff]
      %v4014 = vld [vmem:[%s12 + $0xe8] sm:$0xff]
      %v4015 = vld [vmem:[%s12 + $0xf0] sm:$0xff]
      %v4016 = vld [vmem:[%s12 + $0xf8] sm:$0xff]
      %v4018 = vlaneseq
      %v4019 = vshrl.u32 %v4018, 7
      %v4020 = vsub.s32 0, %v4019
      %v4021 = vrot.slane %v3984, %v4020
      %v4022 = vlaneseq
      %v4023 = vshrl.u32 %v4022, 7
      %v4024 = vsub.s32 1, %v4023
      %v4025 = vrot.slane %v3984, %v4024
      %4028 = vmatprep.subr.mxu0 0.0
      %4029 = vmatpush1.msra.mxu0 %v3985
      %4030 = vmatprep.subr.mxu0 0.0
      %4031 = vmatpush1.msra.mxu0 %v3986
      %4032 = vmatprep.subr.mxu0 0.0
      %4033 = vmatpush1.msra.mxu0 %v3987
      %4034 = vmatprep.subr.mxu0 0.0
      %4035 = vmatpush1.msra.mxu0 %v3988
      %4036 = vmatprep.subr.mxu0 0.0
      %4037 = vmatpush1.msra.mxu0 %v3989
      %4038 = vmatprep.subr.mxu0 0.0
      %4039 = vmatpush1.msra.mxu0 %v3990
      %4040 = vmatprep.subr.mxu0 0.0
      %4041 = vmatpush1.msra.mxu0 %v3991
      %4042 = vmatprep.subr.mxu0 0.0
      %4043 = vmatpush1.msra.mxu0 %v3992
      %4044 = vmatprep.subr.mxu0 0.0
      %4045 = vmatpush1.msra.mxu0 %v3993
      %4046 = vmatprep.subr.mxu0 0.0
      %4047 = vmatpush1.msra.mxu0 %v3994
      %4048 = vmatprep.subr.mxu0 0.0
      %4049 = vmatpush1.msra.mxu0 %v3995
      %4050 = vmatprep.subr.mxu0 0.0
      %4051 = vmatpush1.msra.mxu0 %v3996
      %4052 = vmatprep.subr.mxu0 0.0
      %4053 = vmatpush1.msra.mxu0 %v3997
      %4054 = vmatprep.subr.mxu0 0.0
      %4055 = vmatpush1.msra.mxu0 %v3998
      %4056 = vmatprep.subr.mxu0 0.0
      %4057 = vmatpush1.msra.mxu0 %v3999
      %4058 = vmatprep.subr.mxu0 0.0
      %4059 = vmatpush1.msra.mxu0 %v4000
      %4060 = vmatprep.subr.mxu0 0.0
      %4061 = vmatpush1.msra.mxu0 %v4001
      %4062 = vmatprep.subr.mxu0 0.0
      %4063 = vmatpush1.msra.mxu0 %v4002
      %4064 = vmatprep.subr.mxu0 0.0
      %4065 = vmatpush1.msra.mxu0 %v4003
      %4066 = vmatprep.subr.mxu0 0.0
      %4067 = vmatpush1.msra.mxu0 %v4004
      %4068 = vmatprep.subr.mxu0 0.0
      %4069 = vmatpush1.msra.mxu0 %v4005
      %4070 = vmatprep.subr.mxu0 0.0
      %4071 = vmatpush1.msra.mxu0 %v4006
      %4072 = vmatprep.subr.mxu0 0.0
      %4073 = vmatpush1.msra.mxu0 %v4007
      %4074 = vmatprep.subr.mxu0 0.0
      %4075 = vmatpush1.msra.mxu0 %v4008
      %4076 = vmatprep.subr.mxu0 0.0
      %4077 = vmatpush1.msra.mxu0 %v4009
      %4078 = vmatprep.subr.mxu0 0.0
      %4079 = vmatpush1.msra.mxu0 %v4010
      %4080 = vmatprep.subr.mxu0 0.0
      %4081 = vmatpush1.msra.mxu0 %v4011
      %4082 = vmatprep.subr.mxu0 0.0
      %4083 = vmatpush1.msra.mxu0 %v4012
      %4084 = vmatprep.subr.mxu0 0.0
      %4085 = vmatpush1.msra.mxu0 %v4013
      %4086 = vmatprep.subr.mxu0 0.0
      %4087 = vmatpush1.msra.mxu0 %v4014
      %4088 = vmatprep.subr.mxu0 0.0
      %4089 = vmatpush1.msra.mxu0 %v4015
      %4090 = vmatprep.subr.mxu0 0.0
      %4091 = vmatpush1.msra.mxu0 %v4016
      %4092 = vmatprep.mubr.f32.mxu0 %v4025
      %4093 = vmatmul.mubr.f32.gmra.mrb[0].mxu0 %v4021
      %v4094 = vpop.f32.mrb[0].mxu0
      %v4095 = vadd.f32 0.0, %v4094
      %v4096 = vpop.f32.mrb[0].mxu0
      %4097 = vdwg.mxu0
      %v4098 = vmul.f32 %v4095, %v3983
      %v4099 = vsub.f32 0.0, %v4098
      %v4100 = vmul.f32 %v4099, 1.442695
      %v4101 = vpow.pop %v4100
      %v4102 = vadd.f32 %v4101, 1.0
      %v4103 = vrcp.pop %v4102
      %v4104 = vmul.f32 1.0, %v4103
      %vm4105 = vcmask 24576
      %4106 = vst.msk [vmem:[%s455] sm:$0x1] %vm4105, %v4104
      %p4107 = scmp.lt.s32.totalorder %s26, 1
      %s4108 = scalar_select %p4107, %s26, 1
      %s4109 = scalar_lea.vmem %s13, %s4108
      // Predicated region
      $region73: #{cnn_d_forward.1} parent=71 // pred_check
        %p4110 = pneg %p327
      $region74: #{cnn_d_forward.1} parent=71 // pred_check_branch
        %4112 = sbr.rel (%p4110) target = $region76
      $region75: #{cnn_d_forward.1} parent=71 // pred_region
        _
      $region76: #{cnn_d_forward.1} parent=71 // pred_fallthru
        _
    $region72: #{cnn_d_forward.1} parent=5 // pred_fallthru
      _
    %p4113 = scmp.le.s32.totalorder 2, %s21
    // Predicated region
    $region77: #{cnn_d_forward.1} parent=5 // pred_check
      %p4114 = pneg %p4113
    $region78: #{cnn_d_forward.1} parent=5 // pred_check_branch
      %4116 = sbr.rel (%p4114) target = $region80
    $region79: #{cnn_d_forward.1} parent=5 // pred_region
      %s4117 = ssub.s32 %s21, 2
      // Predicated region
      $region81: #{cnn_d_forward.1} parent=79 // pred_check
        %p4118 = pneg %p333
      $region82: #{cnn_d_forward.1} parent=79 // pred_check_branch
        %4120 = sbr.rel (%p4118) target = $region84
      $region83: #{cnn_d_forward.1} parent=79 // pred_region
        %p4121 = scmp.lt.s32.totalorder %s27, 1
        %s4122 = scalar_select %p4121, %s27, 1
        %s4123 = scalar_lea.vmem %s13, %s4122
      $region84: #{cnn_d_forward.1} parent=79 // pred_fallthru
        _
    $region80: #{cnn_d_forward.1} parent=5 // pred_fallthru
      _
  $region6: #{cnn_d_forward.1} parent=0 // loop_footer
    %s25 = sadd.s32 1, %s21
  $region7: #{cnn_d_forward.1} parent=0 // loop_footer_branch
    %20 = sbr.rel target = $region3
  $region8: #{cnn_d_forward.1} parent=0 // loop_exit
    _

</llo_original>
